<compile_context>
chip_gen: v7x
topology: tpu7x:2x2x1
jax: 0.10.0
libtpu: 0.0.40
codegen_flags: <defaults>
</compile_context>

<pallas_src>
import functools

import numpy as np

import jax
import jax.numpy as jnp
from jax.experimental import pallas as pl
from jax.experimental.pallas import tpu as pltpu


# -----------------------------------------------------------------------------
# Fused Pallas kernel
# -----------------------------------------------------------------------------
# Per-tile activation layouts (TB = batch-tile size):
#   input x        : (TB*32, 32)   row = b*32 + y,  col = x
#   conv1 col-pool : (TB*32, 84)   row = b*32 + y,  col = c*14 + xo   (pre-act)
#   pool1 output   : (TB*16, 84)   row = b*16 + yo, col = c*14 + xo   (post-tanh)
#   conv2 col-pool : (TB*16, 80)   row = b*16 + y2, col = co*5 + x3   (pre-act)
#   pool2 output   : (TB*8,  80)   row = b*8  + y3, col = co*5 + x3   (post-tanh)
#   fc stages      : (TB, 120) / (TB, 84) / (TB, 128-padded logits)
def _lenet5_kernel(x_ref, m1e_ref, m1o_ref, b1_ref,
                   m2e_ref, m2o_ref, b2_ref,
                   h1_ref, bf1_ref, wf2_ref, bf2_ref, wf3_ref, bf3_ref,
                   out_ref,
                   cp1_sc, p1_sc, cp2_sc, p2_sc):
    dot = functools.partial(jnp.dot, preferred_element_type=jnp.float32)
    bf16 = jnp.bfloat16
    f32 = jnp.float32

    rows32 = x_ref.shape[0]          # TB * 32
    tb = out_ref.shape[0]            # TB
    rows16 = tb * 16
    rows8 = tb * 8
    r1 = rows32 - 4                  # valid conv1 rows (per tile)
    r2 = rows16 - 4                  # valid conv2 rows (per tile)

    # ---- Conv1 (1->6, k=5, valid): even/odd output-x tap matmuls ----------
    # Column (2x1) max-pool is the jnp.maximum of the two accumulators; tanh
    # and bias are deferred past the row pool (tanh monotone, bias per-column).
    x0 = x_ref[pl.ds(0, r1), :].astype(bf16)
    acc_e = dot(x0, m1e_ref[0])
    acc_o = dot(x0, m1o_ref[0])
    for i in range(1, 5):
        xi = x_ref[pl.ds(i, r1), :].astype(bf16)
        acc_e = acc_e + dot(xi, m1e_ref[i])
        acc_o = acc_o + dot(xi, m1o_ref[i])
    cp1_sc[pl.ds(0, r1), :] = jnp.maximum(acc_e, acc_o)
    # Zero the 4 tail rows so the strided row-pool below never reads stale VMEM
    # (those rows only ever feed discarded outputs, but keep them deterministic).
    cp1_sc[pl.ds(r1, 4), :] = jnp.zeros((4, cp1_sc.shape[1]), f32)

    # ---- Pool1 rows: VPU max over stride-2 sublane reads, + bias + tanh ----
    p1_sc[...] = jnp.tanh(
        jnp.maximum(cp1_sc[pl.ds(0, rows16, stride=2), :],
                    cp1_sc[pl.ds(1, rows16, stride=2), :]) + b1_ref[...])

    # ---- Conv2 (6->16, k=5, valid): even/odd output-x tap matmuls ----------
    p0 = p1_sc[pl.ds(0, r2), :].astype(bf16)
    acc2e = dot(p0, m2e_ref[0])
    acc2o = dot(p0, m2o_ref[0])
    for i in range(1, 5):
        pi = p1_sc[pl.ds(i, r2), :].astype(bf16)
        acc2e = acc2e + dot(pi, m2e_ref[i])
        acc2o = acc2o + dot(pi, m2o_ref[i])
    cp2_sc[pl.ds(0, r2), :] = jnp.maximum(acc2e, acc2o)
    cp2_sc[pl.ds(r2, 4), :] = jnp.zeros((4, cp2_sc.shape[1]), f32)

    # ---- Pool2 rows: strided VPU max, + bias + tanh -------------------------
    p2_sc[...] = jnp.tanh(
        jnp.maximum(cp2_sc[pl.ds(0, rows8, stride=2), :],
                    cp2_sc[pl.ds(1, rows8, stride=2), :]) + b2_ref[...])

    # ---- FC1: per-y3 pooled rows via stride-8 reads; NCHW flatten is in h1 --
    accf = dot(p2_sc[pl.ds(0, tb, stride=8), :].astype(bf16), h1_ref[0])
    for y3 in range(1, 5):
        accf = accf + dot(p2_sc[pl.ds(y3, tb, stride=8), :].astype(bf16),
                          h1_ref[y3])
    f1 = jnp.tanh(accf + bf1_ref[...])                           # (TB, 120)

    # ---- FC2 + tanh, FC3 (lane-padded logits -> lane-dense HBM store) ------
    f2 = jnp.tanh(dot(f1.astype(bf16), wf2_ref[...]) + bf2_ref[...])   # (TB, 84)
    out = dot(f2.astype(bf16), wf3_ref[...]) + bf3_ref[...]            # (TB, NCP)
    out_ref[...] = out.astype(out_ref.dtype)


# -----------------------------------------------------------------------------
# Host-side constant preparation (done ONCE, outside the jitted forward).
# None of these depend on the batch tile any more.
# -----------------------------------------------------------------------------
def _prepare_constants(params, num_classes):
    f = lambda a: np.asarray(a, dtype=np.float32)
    w1, b1 = f(params["conv1_w"]), f(params["conv1_b"])       # (6,1,5,5), (6,)
    w2, b2 = f(params["conv2_w"]), f(params["conv2_b"])       # (16,6,5,5), (16,)
    fw1, fb1 = f(params["fc1_w"]), f(params["fc1_b"])         # (120,400), (120,)
    fw2, fb2 = f(params["fc2_w"]), f(params["fc2_b"])         # (84,120),  (84,)
    fw3, fb3 = f(params["fc3_w"]), f(params["fc3_b"])         # (nc,84),   (nc,)

    # Conv1 tap matrices, split into even / odd output x (column pool fused):
    #   (X[row+i] @ m1e[i])[c*14+xo] = sum_j X[row+i, 2*xo   + j] * w1[c,0,i,j]
    #   (X[row+i] @ m1o[i])[c*14+xo] = sum_j X[row+i, 2*xo+1 + j] * w1[c,0,i,j]
    m1e = np.zeros((5, 32, 84), np.float32)
    m1o = np.zeros((5, 32, 84), np.float32)
    for i in range(5):
        for j in range(5):
            for c in range(6):
                for xo in range(14):
                    m1e[i, 2 * xo + j, c * 14 + xo] = w1[c, 0, i, j]
                    m1o[i, 2 * xo + 1 + j, c * 14 + xo] = w1[c, 0, i, j]
    b1r = np.repeat(b1, 14)[None, :]                           # (1, 84)

    # Conv2 tap matrices, rows ci*14 + (x2 + j), even/odd x2 split, out col co*5+x3.
    m2e = np.zeros((5, 84, 80), np.float32)
    m2o = np.zeros((5, 84, 80), np.float32)
    for i in range(5):
        for j in range(5):
            for ci in range(6):
                for co in range(16):
                    for x3 in range(5):
                        m2e[i, ci * 14 + 2 * x3 + j, co * 5 + x3] = w2[co, ci, i, j]
                        m2o[i, ci * 14 + 2 * x3 + 1 + j, co * 5 + x3] = w2[co, ci, i, j]
    b2r = np.repeat(b2, 5)[None, :]                            # (1, 80)

    # FC1 weight slices per pool2 output row y3: PyTorch NCHW flatten index
    # = c*25 + y3*5 + x3; pooled-row layout is col co*5 + x3.
    h1 = np.zeros((5, 80, 120), np.float32)
    for y3 in range(5):
        for co in range(16):
            for x3 in range(5):
                h1[y3, co * 5 + x3, :] = fw1[:, co * 25 + y3 * 5 + x3]
    bf1 = fb1[None, :]                                          # (1, 120)

    wf2 = np.ascontiguousarray(fw2.T)                           # (120, 84)
    bf2 = fb2[None, :]                                          # (1, 84)

    ncp = ((max(num_classes, 1) + 127) // 128) * 128            # lane-dense logits
    wf3 = np.zeros((84, ncp), np.float32)
    wf3[:, :num_classes] = fw3.T
    bf3 = np.zeros((1, ncp), np.float32)
    bf3[0, :num_classes] = fb3

    bf16 = jnp.bfloat16
    consts = (
        jnp.asarray(m1e, bf16), jnp.asarray(m1o, bf16), jnp.asarray(b1r),
        jnp.asarray(m2e, bf16), jnp.asarray(m2o, bf16), jnp.asarray(b2r),
        jnp.asarray(h1, bf16), jnp.asarray(bf1),
        jnp.asarray(wf2, bf16), jnp.asarray(bf2),
        jnp.asarray(wf3, bf16), jnp.asarray(bf3),
    )
    return consts, ncp


# -----------------------------------------------------------------------------
# Public builder: returns a jitted forward(x_nchw) -> logits
# -----------------------------------------------------------------------------
def build_lenet5_forward(params, num_classes, *, tile_b_max=32):
    consts, ncp = _prepare_constants(params, num_classes)

    def _resident_spec(arr):
        nd = arr.ndim
        return pl.BlockSpec(arr.shape, lambda i, _nd=nd: (0,) * _nd)

    @jax.jit
    def forward(x_nchw):
        B = x_nchw.shape[0]
        # Batch tile: multiple of 8, capped at tile_b_max, and chosen so the
        # grid keeps >= 2 steps when the batch allows (v7x has 2 TensorCores).
        tb = max(8, min(tile_b_max, -(-B // 2)))
        tb = ((tb + 7) // 8) * 8
        bp = ((B + tb - 1) // tb) * tb
        grid = (bp // tb,)

        x = x_nchw.astype(jnp.float32).reshape(B * 32, 32)
        if bp != B:
            x = jnp.pad(x, ((0, (bp - B) * 32), (0, 0)))

        in_specs = [pl.BlockSpec((tb * 32, 32), lambda i: (i, 0))]
        in_specs += [_resident_spec(c) for c in consts]
        out_spec = pl.BlockSpec((tb, ncp), lambda i: (i, 0))

        out = pl.pallas_call(
            _lenet5_kernel,
            out_shape=jax.ShapeDtypeStruct((bp, ncp), jnp.float32),
            grid=grid,
            in_specs=in_specs,
            out_specs=out_spec,
            scratch_shapes=[
                pltpu.VMEM((tb * 32, 84), jnp.float32),  # conv1 col-pooled pre-act
                pltpu.VMEM((tb * 16, 84), jnp.float32),  # pool1 output (post-tanh)
                pltpu.VMEM((tb * 16, 80), jnp.float32),  # conv2 col-pooled pre-act
                pltpu.VMEM((tb * 8, 80), jnp.float32),   # pool2 output (post-tanh)
            ],
            compiler_params=pltpu.CompilerParams(
                dimension_semantics=("parallel",),
                vmem_limit_bytes=32 * 1024 * 1024),
        )(x, *consts)
        return out[:B, :num_classes]

    return forward


# -----------------------------------------------------------------------------
# Parameter init (PyTorch shape conventions) and plain-JAX reference
# -----------------------------------------------------------------------------
def init_lenet5_params(num_classes, key):
    ks = jax.random.split(key, 10)
    s = 0.1
    return {
        "conv1_w": s * jax.random.normal(ks[0], (6, 1, 5, 5), jnp.float32),
        "conv1_b": s * jax.random.normal(ks[1], (6,), jnp.float32),
        "conv2_w": s * jax.random.normal(ks[2], (16, 6, 5, 5), jnp.float32),
        "conv2_b": s * jax.random.normal(ks[3], (16,), jnp.float32),
        "fc1_w": s * jax.random.normal(ks[4], (120, 400), jnp.float32),
        "fc1_b": s * jax.random.normal(ks[5], (120,), jnp.float32),
        "fc2_w": s * jax.random.normal(ks[6], (84, 120), jnp.float32),
        "fc2_b": s * jax.random.normal(ks[7], (84,), jnp.float32),
        "fc3_w": s * jax.random.normal(ks[8], (num_classes, 84), jnp.float32),
        "fc3_b": s * jax.random.normal(ks[9], (num_classes,), jnp.float32),
    }


def _lenet5_reference(params, x):
    hp = jax.lax.Precision.HIGHEST
    dn = ("NCHW", "OIHW", "NCHW")
    y = jax.lax.conv_general_dilated(x, params["conv1_w"], (1, 1), "VALID",
                                     dimension_numbers=dn, precision=hp)
    y = jnp.tanh(y + params["conv1_b"][None, :, None, None])
    y = jax.lax.reduce_window(y, -jnp.inf, jax.lax.max,
                              (1, 1, 2, 2), (1, 1, 2, 2), "VALID")
    y = jax.lax.conv_general_dilated(y, params["conv2_w"], (1, 1), "VALID",
                                     dimension_numbers=dn, precision=hp)
    y = jnp.tanh(y + params["conv2_b"][None, :, None, None])
    y = jax.lax.reduce_window(y, -jnp.inf, jax.lax.max,
                              (1, 1, 2, 2), (1, 1, 2, 2), "VALID")
    y = y.reshape(y.shape[0], -1)                       # PyTorch NCHW flatten
    y = jnp.tanh(jnp.dot(y, params["fc1_w"].T, precision=hp) + params["fc1_b"])
    y = jnp.tanh(jnp.dot(y, params["fc2_w"].T, precision=hp) + params["fc2_b"])
    return jnp.dot(y, params["fc3_w"].T, precision=hp) + params["fc3_b"]


if __name__ == "__main__":
    num_classes = 10
    key = jax.random.PRNGKey(0)
    pkey, xkey1, xkey2 = jax.random.split(key, 3)

    params = init_lenet5_params(num_classes, pkey)
    forward = build_lenet5_forward(params, num_classes, tile_b_max=32)

    # Small batch, not a multiple of the 8-row tile -> exercises padding and a
    # 2-step grid (both v7x TensorCores busy).
    x_small = jax.random.normal(xkey1, (12, 1, 32, 32), jnp.float32)
    logits = forward(x_small)
    jax.block_until_ready(logits)
    assert logits.shape == (12, num_classes), logits.shape
    assert logits.dtype == jnp.float32
    assert bool(jnp.all(jnp.isfinite(logits)))
    ref = _lenet5_reference(params, x_small)
    err = float(jnp.max(jnp.abs(logits - ref)))
    assert err < 1e-1, f"max |pallas - reference| = {err}"  # bf16 matmul inputs

    # Larger batch -> exercises the tile_b=32 path (the perf-relevant config).
    x_big = jax.random.normal(xkey2, (80, 1, 32, 32), jnp.float32)
    logits_big = forward(x_big)
    jax.block_until_ready(logits_big)
    ref_big = _lenet5_reference(params, x_big)
    err_big = float(jnp.max(jnp.abs(logits_big - ref_big)))
    assert logits_big.shape == (80, num_classes)
    assert bool(jnp.all(jnp.isfinite(logits_big)))
    assert err_big < 1e-1, f"max |pallas - reference| (tile 32) = {err_big}"

    print("KERNEL_OK")
</pallas_src>

<mosaic_0001>
module attributes {stable_mosaic.version = 11 : i64} {
  func.func @_lenet5_kernel(%arg0: i32, %arg1: memref<256x32xf32, #tpu.memory_space<vmem>>, %arg2: memref<5x32x84xbf16, #tpu.memory_space<vmem>>, %arg3: memref<5x32x84xbf16, #tpu.memory_space<vmem>>, %arg4: memref<1x84xf32, #tpu.memory_space<vmem>>, %arg5: memref<5x84x80xbf16, #tpu.memory_space<vmem>>, %arg6: memref<5x84x80xbf16, #tpu.memory_space<vmem>>, %arg7: memref<1x80xf32, #tpu.memory_space<vmem>>, %arg8: memref<5x80x120xbf16, #tpu.memory_space<vmem>>, %arg9: memref<1x120xf32, #tpu.memory_space<vmem>>, %arg10: memref<120x84xbf16, #tpu.memory_space<vmem>>, %arg11: memref<1x84xf32, #tpu.memory_space<vmem>>, %arg12: memref<84x128xbf16, #tpu.memory_space<vmem>>, %arg13: memref<1x128xf32, #tpu.memory_space<vmem>>, %arg14: memref<8x128xf32, #tpu.memory_space<vmem>>, %arg15: memref<256x84xf32, #tpu.memory_space<vmem>>, %arg16: memref<128x84xf32, #tpu.memory_space<vmem>>, %arg17: memref<128x80xf32, #tpu.memory_space<vmem>>, %arg18: memref<64x80xf32, #tpu.memory_space<vmem>>) attributes {dimension_semantics = [#tpu.dimension_semantics<parallel>], iteration_bounds = array<i64: 2>, scalar_prefetch = 0 : i64, scratch_operands = 4 : i64, tpu.core_type = #tpu.core_type<tc>, window_params = [{transform_indices = @transform_0, window_bounds = array<i64: 256, 32>}, {pipeline_mode = #tpu.pipeline_mode<synchronous>, transform_indices = @transform_1, window_bounds = array<i64: 5, 32, 84>}, {pipeline_mode = #tpu.pipeline_mode<synchronous>, transform_indices = @transform_2, window_bounds = array<i64: 5, 32, 84>}, {pipeline_mode = #tpu.pipeline_mode<synchronous>, transform_indices = @transform_3, window_bounds = array<i64: 1, 84>}, {pipeline_mode = #tpu.pipeline_mode<synchronous>, transform_indices = @transform_4, window_bounds = array<i64: 5, 84, 80>}, {pipeline_mode = #tpu.pipeline_mode<synchronous>, transform_indices = @transform_5, window_bounds = array<i64: 5, 84, 80>}, {pipeline_mode = #tpu.pipeline_mode<synchronous>, transform_indices = @transform_6, window_bounds = array<i64: 1, 80>}, {pipeline_mode = #tpu.pipeline_mode<synchronous>, transform_indices = @transform_7, window_bounds = array<i64: 5, 80, 120>}, {pipeline_mode = #tpu.pipeline_mode<synchronous>, transform_indices = @transform_8, window_bounds = array<i64: 1, 120>}, {pipeline_mode = #tpu.pipeline_mode<synchronous>, transform_indices = @transform_9, window_bounds = array<i64: 120, 84>}, {pipeline_mode = #tpu.pipeline_mode<synchronous>, transform_indices = @transform_10, window_bounds = array<i64: 1, 84>}, {pipeline_mode = #tpu.pipeline_mode<synchronous>, transform_indices = @transform_11, window_bounds = array<i64: 84, 128>}, {pipeline_mode = #tpu.pipeline_mode<synchronous>, transform_indices = @transform_12, window_bounds = array<i64: 1, 128>}, {transform_indices = @transform_13, window_bounds = array<i64: 8, 128>}]} {
    %c0 = arith.constant 0 : index
    %c0_0 = arith.constant 0 : index
    %0 = vector.load %arg1[%c0, %c0_0] : memref<256x32xf32, #tpu.memory_space<vmem>>, vector<252x32xf32>
    %1 = arith.truncf %0 : vector<252x32xf32> to vector<252x32xbf16>
    %c0_1 = arith.constant 0 : index
    %c0_2 = arith.constant 0 : index
    %c0_3 = arith.constant 0 : index
    %2 = vector.load %arg2[%c0_1, %c0_2, %c0_3] : memref<5x32x84xbf16, #tpu.memory_space<vmem>>, vector<1x32x84xbf16>
    %3 = vector.shape_cast %2 : vector<1x32x84xbf16> to vector<32x84xbf16>
    %cst = arith.constant dense<0.000000e+00> : vector<252x84xf32>
    %4 = tpu.matmul %1, %3, %cst {dimension_numbers = #tpu.dot_dimension_numbers<[1], [0], [0], [1], [0, 0, 1, 1], [], []>} : vector<252x32xbf16>, vector<32x84xbf16>, vector<252x84xf32> -> vector<252x84xf32>
    %c0_4 = arith.constant 0 : index
    %c0_5 = arith.constant 0 : index
    %c0_6 = arith.constant 0 : index
    %5 = vector.load %arg3[%c0_4, %c0_5, %c0_6] : memref<5x32x84xbf16, #tpu.memory_space<vmem>>, vector<1x32x84xbf16>
    %6 = vector.shape_cast %5 : vector<1x32x84xbf16> to vector<32x84xbf16>
    %cst_7 = arith.constant dense<0.000000e+00> : vector<252x84xf32>
    %7 = tpu.matmul %1, %6, %cst_7 {dimension_numbers = #tpu.dot_dimension_numbers<[1], [0], [0], [1], [0, 0, 1, 1], [], []>} : vector<252x32xbf16>, vector<32x84xbf16>, vector<252x84xf32> -> vector<252x84xf32>
    %c1 = arith.constant 1 : index
    %c0_8 = arith.constant 0 : index
    %8 = vector.load %arg1[%c1, %c0_8] : memref<256x32xf32, #tpu.memory_space<vmem>>, vector<252x32xf32>
    %9 = arith.truncf %8 : vector<252x32xf32> to vector<252x32xbf16>
    %c1_9 = arith.constant 1 : index
    %c0_10 = arith.constant 0 : index
    %c0_11 = arith.constant 0 : index
    %10 = vector.load %arg2[%c1_9, %c0_10, %c0_11] : memref<5x32x84xbf16, #tpu.memory_space<vmem>>, vector<1x32x84xbf16>
    %11 = vector.shape_cast %10 : vector<1x32x84xbf16> to vector<32x84xbf16>
    %cst_12 = arith.constant dense<0.000000e+00> : vector<252x84xf32>
    %12 = tpu.matmul %9, %11, %cst_12 {dimension_numbers = #tpu.dot_dimension_numbers<[1], [0], [0], [1], [0, 0, 1, 1], [], []>} : vector<252x32xbf16>, vector<32x84xbf16>, vector<252x84xf32> -> vector<252x84xf32>
    %13 = arith.addf %4, %12 : vector<252x84xf32>
    %c1_13 = arith.constant 1 : index
    %c0_14 = arith.constant 0 : index
    %c0_15 = arith.constant 0 : index
    %14 = vector.load %arg3[%c1_13, %c0_14, %c0_15] : memref<5x32x84xbf16, #tpu.memory_space<vmem>>, vector<1x32x84xbf16>
    %15 = vector.shape_cast %14 : vector<1x32x84xbf16> to vector<32x84xbf16>
    %cst_16 = arith.constant dense<0.000000e+00> : vector<252x84xf32>
    %16 = tpu.matmul %9, %15, %cst_16 {dimension_numbers = #tpu.dot_dimension_numbers<[1], [0], [0], [1], [0, 0, 1, 1], [], []>} : vector<252x32xbf16>, vector<32x84xbf16>, vector<252x84xf32> -> vector<252x84xf32>
    %17 = arith.addf %7, %16 : vector<252x84xf32>
    %c2 = arith.constant 2 : index
    %c0_17 = arith.constant 0 : index
    %18 = vector.load %arg1[%c2, %c0_17] : memref<256x32xf32, #tpu.memory_space<vmem>>, vector<252x32xf32>
    %19 = arith.truncf %18 : vector<252x32xf32> to vector<252x32xbf16>
    %c2_18 = arith.constant 2 : index
    %c0_19 = arith.constant 0 : index
    %c0_20 = arith.constant 0 : index
    %20 = vector.load %arg2[%c2_18, %c0_19, %c0_20] : memref<5x32x84xbf16, #tpu.memory_space<vmem>>, vector<1x32x84xbf16>
    %21 = vector.shape_cast %20 : vector<1x32x84xbf16> to vector<32x84xbf16>
    %cst_21 = arith.constant dense<0.000000e+00> : vector<252x84xf32>
    %22 = tpu.matmul %19, %21, %cst_21 {dimension_numbers = #tpu.dot_dimension_numbers<[1], [0], [0], [1], [0, 0, 1, 1], [], []>} : vector<252x32xbf16>, vector<32x84xbf16>, vector<252x84xf32> -> vector<252x84xf32>
    %23 = arith.addf %13, %22 : vector<252x84xf32>
    %c2_22 = arith.constant 2 : index
    %c0_23 = arith.constant 0 : index
    %c0_24 = arith.constant 0 : index
    %24 = vector.load %arg3[%c2_22, %c0_23, %c0_24] : memref<5x32x84xbf16, #tpu.memory_space<vmem>>, vector<1x32x84xbf16>
    %25 = vector.shape_cast %24 : vector<1x32x84xbf16> to vector<32x84xbf16>
    %cst_25 = arith.constant dense<0.000000e+00> : vector<252x84xf32>
    %26 = tpu.matmul %19, %25, %cst_25 {dimension_numbers = #tpu.dot_dimension_numbers<[1], [0], [0], [1], [0, 0, 1, 1], [], []>} : vector<252x32xbf16>, vector<32x84xbf16>, vector<252x84xf32> -> vector<252x84xf32>
    %27 = arith.addf %17, %26 : vector<252x84xf32>
    %c3 = arith.constant 3 : index
    %c0_26 = arith.constant 0 : index
    %28 = vector.load %arg1[%c3, %c0_26] : memref<256x32xf32, #tpu.memory_space<vmem>>, vector<252x32xf32>
    %29 = arith.truncf %28 : vector<252x32xf32> to vector<252x32xbf16>
    %c3_27 = arith.constant 3 : index
    %c0_28 = arith.constant 0 : index
    %c0_29 = arith.constant 0 : index
    %30 = vector.load %arg2[%c3_27, %c0_28, %c0_29] : memref<5x32x84xbf16, #tpu.memory_space<vmem>>, vector<1x32x84xbf16>
    %31 = vector.shape_cast %30 : vector<1x32x84xbf16> to vector<32x84xbf16>
    %cst_30 = arith.constant dense<0.000000e+00> : vector<252x84xf32>
    %32 = tpu.matmul %29, %31, %cst_30 {dimension_numbers = #tpu.dot_dimension_numbers<[1], [0], [0], [1], [0, 0, 1, 1], [], []>} : vector<252x32xbf16>, vector<32x84xbf16>, vector<252x84xf32> -> vector<252x84xf32>
    %33 = arith.addf %23, %32 : vector<252x84xf32>
    %c3_31 = arith.constant 3 : index
    %c0_32 = arith.constant 0 : index
    %c0_33 = arith.constant 0 : index
    %34 = vector.load %arg3[%c3_31, %c0_32, %c0_33] : memref<5x32x84xbf16, #tpu.memory_space<vmem>>, vector<1x32x84xbf16>
    %35 = vector.shape_cast %34 : vector<1x32x84xbf16> to vector<32x84xbf16>
    %cst_34 = arith.constant dense<0.000000e+00> : vector<252x84xf32>
    %36 = tpu.matmul %29, %35, %cst_34 {dimension_numbers = #tpu.dot_dimension_numbers<[1], [0], [0], [1], [0, 0, 1, 1], [], []>} : vector<252x32xbf16>, vector<32x84xbf16>, vector<252x84xf32> -> vector<252x84xf32>
    %37 = arith.addf %27, %36 : vector<252x84xf32>
    %c4 = arith.constant 4 : index
    %c0_35 = arith.constant 0 : index
    %38 = vector.load %arg1[%c4, %c0_35] : memref<256x32xf32, #tpu.memory_space<vmem>>, vector<252x32xf32>
    %39 = arith.truncf %38 : vector<252x32xf32> to vector<252x32xbf16>
    %c4_36 = arith.constant 4 : index
    %c0_37 = arith.constant 0 : index
    %c0_38 = arith.constant 0 : index
    %40 = vector.load %arg2[%c4_36, %c0_37, %c0_38] : memref<5x32x84xbf16, #tpu.memory_space<vmem>>, vector<1x32x84xbf16>
    %41 = vector.shape_cast %40 : vector<1x32x84xbf16> to vector<32x84xbf16>
    %cst_39 = arith.constant dense<0.000000e+00> : vector<252x84xf32>
    %42 = tpu.matmul %39, %41, %cst_39 {dimension_numbers = #tpu.dot_dimension_numbers<[1], [0], [0], [1], [0, 0, 1, 1], [], []>} : vector<252x32xbf16>, vector<32x84xbf16>, vector<252x84xf32> -> vector<252x84xf32>
    %43 = arith.addf %33, %42 : vector<252x84xf32>
    %c4_40 = arith.constant 4 : index
    %c0_41 = arith.constant 0 : index
    %c0_42 = arith.constant 0 : index
    %44 = vector.load %arg3[%c4_40, %c0_41, %c0_42] : memref<5x32x84xbf16, #tpu.memory_space<vmem>>, vector<1x32x84xbf16>
    %45 = vector.shape_cast %44 : vector<1x32x84xbf16> to vector<32x84xbf16>
    %cst_43 = arith.constant dense<0.000000e+00> : vector<252x84xf32>
    %46 = tpu.matmul %39, %45, %cst_43 {dimension_numbers = #tpu.dot_dimension_numbers<[1], [0], [0], [1], [0, 0, 1, 1], [], []>} : vector<252x32xbf16>, vector<32x84xbf16>, vector<252x84xf32> -> vector<252x84xf32>
    %47 = arith.addf %37, %46 : vector<252x84xf32>
    %48 = arith.maximumf %43, %47 : vector<252x84xf32>
    %c0_44 = arith.constant 0 : index
    %c0_45 = arith.constant 0 : index
    %49 = vector.load %arg15[%c0_44, %c0_45] : memref<256x84xf32, #tpu.memory_space<vmem>>, vector<252x84xf32>
    tpu.vector_store %arg15[%c0_44, %c0_45], %48 {strides = array<i32>} : memref<256x84xf32, #tpu.memory_space<vmem>>, vector<252x84xf32>,
    %cst_46 = arith.constant 0.000000e+00 : f32
    %50 = vector.broadcast %cst_46 : f32 to vector<4x84xf32>
    %c252 = arith.constant 252 : index
    %c0_47 = arith.constant 0 : index
    %51 = vector.load %arg15[%c252, %c0_47] : memref<256x84xf32, #tpu.memory_space<vmem>>, vector<4x84xf32>
    tpu.vector_store %arg15[%c252, %c0_47], %50 {strides = array<i32>} : memref<256x84xf32, #tpu.memory_space<vmem>>, vector<4x84xf32>,
    %c0_48 = arith.constant 0 : index
    %c0_49 = arith.constant 0 : index
    %52 = tpu.strided_load %arg15[%c0_48, %c0_49] {strides = array<i32: 2, 1>} : memref<256x84xf32, #tpu.memory_space<vmem>>, vector<128x84xf32>
    %c1_50 = arith.constant 1 : index
    %c0_51 = arith.constant 0 : index
    %53 = tpu.strided_load %arg15[%c1_50, %c0_51] {strides = array<i32: 2, 1>} : memref<256x84xf32, #tpu.memory_space<vmem>>, vector<128x84xf32>
    %54 = arith.maximumf %52, %53 : vector<128x84xf32>
    %c0_52 = arith.constant 0 : index
    %c0_53 = arith.constant 0 : index
    %55 = vector.load %arg4[%c0_52, %c0_53] : memref<1x84xf32, #tpu.memory_space<vmem>>, vector<1x84xf32>
    %56 = vector.broadcast %55 : vector<1x84xf32> to vector<128x84xf32>
    %57 = arith.addf %54, %56 : vector<128x84xf32>
    %58 = math.tanh %57 : vector<128x84xf32>
    %c0_54 = arith.constant 0 : index
    %c0_55 = arith.constant 0 : index
    %59 = vector.load %arg16[%c0_54, %c0_55] : memref<128x84xf32, #tpu.memory_space<vmem>>, vector<128x84xf32>
    tpu.vector_store %arg16[%c0_54, %c0_55], %58 {strides = array<i32>} : memref<128x84xf32, #tpu.memory_space<vmem>>, vector<128x84xf32>,
    %c0_56 = arith.constant 0 : index
    %c0_57 = arith.constant 0 : index
    %60 = vector.load %arg16[%c0_56, %c0_57] : memref<128x84xf32, #tpu.memory_space<vmem>>, vector<124x84xf32>
    %61 = arith.truncf %60 : vector<124x84xf32> to vector<124x84xbf16>
    %c0_58 = arith.constant 0 : index
    %c0_59 = arith.constant 0 : index
    %c0_60 = arith.constant 0 : index
    %62 = vector.load %arg5[%c0_58, %c0_59, %c0_60] : memref<5x84x80xbf16, #tpu.memory_space<vmem>>, vector<1x84x80xbf16>
    %63 = vector.shape_cast %62 : vector<1x84x80xbf16> to vector<84x80xbf16>
    %cst_61 = arith.constant dense<0.000000e+00> : vector<124x80xf32>
    %64 = tpu.matmul %61, %63, %cst_61 {dimension_numbers = #tpu.dot_dimension_numbers<[1], [0], [0], [1], [0, 0, 1, 1], [], []>} : vector<124x84xbf16>, vector<84x80xbf16>, vector<124x80xf32> -> vector<124x80xf32>
    %c0_62 = arith.constant 0 : index
    %c0_63 = arith.constant 0 : index
    %c0_64 = arith.constant 0 : index
    %65 = vector.load %arg6[%c0_62, %c0_63, %c0_64] : memref<5x84x80xbf16, #tpu.memory_space<vmem>>, vector<1x84x80xbf16>
    %66 = vector.shape_cast %65 : vector<1x84x80xbf16> to vector<84x80xbf16>
    %cst_65 = arith.constant dense<0.000000e+00> : vector<124x80xf32>
    %67 = tpu.matmul %61, %66, %cst_65 {dimension_numbers = #tpu.dot_dimension_numbers<[1], [0], [0], [1], [0, 0, 1, 1], [], []>} : vector<124x84xbf16>, vector<84x80xbf16>, vector<124x80xf32> -> vector<124x80xf32>
    %c1_66 = arith.constant 1 : index
    %c0_67 = arith.constant 0 : index
    %68 = vector.load %arg16[%c1_66, %c0_67] : memref<128x84xf32, #tpu.memory_space<vmem>>, vector<124x84xf32>
    %69 = arith.truncf %68 : vector<124x84xf32> to vector<124x84xbf16>
    %c1_68 = arith.constant 1 : index
    %c0_69 = arith.constant 0 : index
    %c0_70 = arith.constant 0 : index
    %70 = vector.load %arg5[%c1_68, %c0_69, %c0_70] : memref<5x84x80xbf16, #tpu.memory_space<vmem>>, vector<1x84x80xbf16>
    %71 = vector.shape_cast %70 : vector<1x84x80xbf16> to vector<84x80xbf16>
    %cst_71 = arith.constant dense<0.000000e+00> : vector<124x80xf32>
    %72 = tpu.matmul %69, %71, %cst_71 {dimension_numbers = #tpu.dot_dimension_numbers<[1], [0], [0], [1], [0, 0, 1, 1], [], []>} : vector<124x84xbf16>, vector<84x80xbf16>, vector<124x80xf32> -> vector<124x80xf32>
    %73 = arith.addf %64, %72 : vector<124x80xf32>
    %c1_72 = arith.constant 1 : index
    %c0_73 = arith.constant 0 : index
    %c0_74 = arith.constant 0 : index
    %74 = vector.load %arg6[%c1_72, %c0_73, %c0_74] : memref<5x84x80xbf16, #tpu.memory_space<vmem>>, vector<1x84x80xbf16>
    %75 = vector.shape_cast %74 : vector<1x84x80xbf16> to vector<84x80xbf16>
    %cst_75 = arith.constant dense<0.000000e+00> : vector<124x80xf32>
    %76 = tpu.matmul %69, %75, %cst_75 {dimension_numbers = #tpu.dot_dimension_numbers<[1], [0], [0], [1], [0, 0, 1, 1], [], []>} : vector<124x84xbf16>, vector<84x80xbf16>, vector<124x80xf32> -> vector<124x80xf32>
    %77 = arith.addf %67, %76 : vector<124x80xf32>
    %c2_76 = arith.constant 2 : index
    %c0_77 = arith.constant 0 : index
    %78 = vector.load %arg16[%c2_76, %c0_77] : memref<128x84xf32, #tpu.memory_space<vmem>>, vector<124x84xf32>
    %79 = arith.truncf %78 : vector<124x84xf32> to vector<124x84xbf16>
    %c2_78 = arith.constant 2 : index
    %c0_79 = arith.constant 0 : index
    %c0_80 = arith.constant 0 : index
    %80 = vector.load %arg5[%c2_78, %c0_79, %c0_80] : memref<5x84x80xbf16, #tpu.memory_space<vmem>>, vector<1x84x80xbf16>
    %81 = vector.shape_cast %80 : vector<1x84x80xbf16> to vector<84x80xbf16>
    %cst_81 = arith.constant dense<0.000000e+00> : vector<124x80xf32>
    %82 = tpu.matmul %79, %81, %cst_81 {dimension_numbers = #tpu.dot_dimension_numbers<[1], [0], [0], [1], [0, 0, 1, 1], [], []>} : vector<124x84xbf16>, vector<84x80xbf16>, vector<124x80xf32> -> vector<124x80xf32>
    %83 = arith.addf %73, %82 : vector<124x80xf32>
    %c2_82 = arith.constant 2 : index
    %c0_83 = arith.constant 0 : index
    %c0_84 = arith.constant 0 : index
    %84 = vector.load %arg6[%c2_82, %c0_83, %c0_84] : memref<5x84x80xbf16, #tpu.memory_space<vmem>>, vector<1x84x80xbf16>
    %85 = vector.shape_cast %84 : vector<1x84x80xbf16> to vector<84x80xbf16>
    %cst_85 = arith.constant dense<0.000000e+00> : vector<124x80xf32>
    %86 = tpu.matmul %79, %85, %cst_85 {dimension_numbers = #tpu.dot_dimension_numbers<[1], [0], [0], [1], [0, 0, 1, 1], [], []>} : vector<124x84xbf16>, vector<84x80xbf16>, vector<124x80xf32> -> vector<124x80xf32>
    %87 = arith.addf %77, %86 : vector<124x80xf32>
    %c3_86 = arith.constant 3 : index
    %c0_87 = arith.constant 0 : index
    %88 = vector.load %arg16[%c3_86, %c0_87] : memref<128x84xf32, #tpu.memory_space<vmem>>, vector<124x84xf32>
    %89 = arith.truncf %88 : vector<124x84xf32> to vector<124x84xbf16>
    %c3_88 = arith.constant 3 : index
    %c0_89 = arith.constant 0 : index
    %c0_90 = arith.constant 0 : index
    %90 = vector.load %arg5[%c3_88, %c0_89, %c0_90] : memref<5x84x80xbf16, #tpu.memory_space<vmem>>, vector<1x84x80xbf16>
    %91 = vector.shape_cast %90 : vector<1x84x80xbf16> to vector<84x80xbf16>
    %cst_91 = arith.constant dense<0.000000e+00> : vector<124x80xf32>
    %92 = tpu.matmul %89, %91, %cst_91 {dimension_numbers = #tpu.dot_dimension_numbers<[1], [0], [0], [1], [0, 0, 1, 1], [], []>} : vector<124x84xbf16>, vector<84x80xbf16>, vector<124x80xf32> -> vector<124x80xf32>
    %93 = arith.addf %83, %92 : vector<124x80xf32>
    %c3_92 = arith.constant 3 : index
    %c0_93 = arith.constant 0 : index
    %c0_94 = arith.constant 0 : index
    %94 = vector.load %arg6[%c3_92, %c0_93, %c0_94] : memref<5x84x80xbf16, #tpu.memory_space<vmem>>, vector<1x84x80xbf16>
    %95 = vector.shape_cast %94 : vector<1x84x80xbf16> to vector<84x80xbf16>
    %cst_95 = arith.constant dense<0.000000e+00> : vector<124x80xf32>
    %96 = tpu.matmul %89, %95, %cst_95 {dimension_numbers = #tpu.dot_dimension_numbers<[1], [0], [0], [1], [0, 0, 1, 1], [], []>} : vector<124x84xbf16>, vector<84x80xbf16>, vector<124x80xf32> -> vector<124x80xf32>
    %97 = arith.addf %87, %96 : vector<124x80xf32>
    %c4_96 = arith.constant 4 : index
    %c0_97 = arith.constant 0 : index
    %98 = vector.load %arg16[%c4_96, %c0_97] : memref<128x84xf32, #tpu.memory_space<vmem>>, vector<124x84xf32>
    %99 = arith.truncf %98 : vector<124x84xf32> to vector<124x84xbf16>
    %c4_98 = arith.constant 4 : index
    %c0_99 = arith.constant 0 : index
    %c0_100 = arith.constant 0 : index
    %100 = vector.load %arg5[%c4_98, %c0_99, %c0_100] : memref<5x84x80xbf16, #tpu.memory_space<vmem>>, vector<1x84x80xbf16>
    %101 = vector.shape_cast %100 : vector<1x84x80xbf16> to vector<84x80xbf16>
    %cst_101 = arith.constant dense<0.000000e+00> : vector<124x80xf32>
    %102 = tpu.matmul %99, %101, %cst_101 {dimension_numbers = #tpu.dot_dimension_numbers<[1], [0], [0], [1], [0, 0, 1, 1], [], []>} : vector<124x84xbf16>, vector<84x80xbf16>, vector<124x80xf32> -> vector<124x80xf32>
    %103 = arith.addf %93, %102 : vector<124x80xf32>
    %c4_102 = arith.constant 4 : index
    %c0_103 = arith.constant 0 : index
    %c0_104 = arith.constant 0 : index
    %104 = vector.load %arg6[%c4_102, %c0_103, %c0_104] : memref<5x84x80xbf16, #tpu.memory_space<vmem>>, vector<1x84x80xbf16>
    %105 = vector.shape_cast %104 : vector<1x84x80xbf16> to vector<84x80xbf16>
    %cst_105 = arith.constant dense<0.000000e+00> : vector<124x80xf32>
    %106 = tpu.matmul %99, %105, %cst_105 {dimension_numbers = #tpu.dot_dimension_numbers<[1], [0], [0], [1], [0, 0, 1, 1], [], []>} : vector<124x84xbf16>, vector<84x80xbf16>, vector<124x80xf32> -> vector<124x80xf32>
    %107 = arith.addf %97, %106 : vector<124x80xf32>
    %108 = arith.maximumf %103, %107 : vector<124x80xf32>
    %c0_106 = arith.constant 0 : index
    %c0_107 = arith.constant 0 : index
    %109 = vector.load %arg17[%c0_106, %c0_107] : memref<128x80xf32, #tpu.memory_space<vmem>>, vector<124x80xf32>
    tpu.vector_store %arg17[%c0_106, %c0_107], %108 {strides = array<i32>} : memref<128x80xf32, #tpu.memory_space<vmem>>, vector<124x80xf32>,
    %cst_108 = arith.constant 0.000000e+00 : f32
    %110 = vector.broadcast %cst_108 : f32 to vector<4x80xf32>
    %c124 = arith.constant 124 : index
    %c0_109 = arith.constant 0 : index
    %111 = vector.load %arg17[%c124, %c0_109] : memref<128x80xf32, #tpu.memory_space<vmem>>, vector<4x80xf32>
    tpu.vector_store %arg17[%c124, %c0_109], %110 {strides = array<i32>} : memref<128x80xf32, #tpu.memory_space<vmem>>, vector<4x80xf32>,
    %c0_110 = arith.constant 0 : index
    %c0_111 = arith.constant 0 : index
    %112 = tpu.strided_load %arg17[%c0_110, %c0_111] {strides = array<i32: 2, 1>} : memref<128x80xf32, #tpu.memory_space<vmem>>, vector<64x80xf32>
    %c1_112 = arith.constant 1 : index
    %c0_113 = arith.constant 0 : index
    %113 = tpu.strided_load %arg17[%c1_112, %c0_113] {strides = array<i32: 2, 1>} : memref<128x80xf32, #tpu.memory_space<vmem>>, vector<64x80xf32>
    %114 = arith.maximumf %112, %113 : vector<64x80xf32>
    %c0_114 = arith.constant 0 : index
    %c0_115 = arith.constant 0 : index
    %115 = vector.load %arg7[%c0_114, %c0_115] : memref<1x80xf32, #tpu.memory_space<vmem>>, vector<1x80xf32>
    %116 = vector.broadcast %115 : vector<1x80xf32> to vector<64x80xf32>
    %117 = arith.addf %114, %116 : vector<64x80xf32>
    %118 = math.tanh %117 : vector<64x80xf32>
    %c0_116 = arith.constant 0 : index
    %c0_117 = arith.constant 0 : index
    %119 = vector.load %arg18[%c0_116, %c0_117] : memref<64x80xf32, #tpu.memory_space<vmem>>, vector<64x80xf32>
    tpu.vector_store %arg18[%c0_116, %c0_117], %118 {strides = array<i32>} : memref<64x80xf32, #tpu.memory_space<vmem>>, vector<64x80xf32>,
    %c0_118 = arith.constant 0 : index
    %c0_119 = arith.constant 0 : index
    %120 = tpu.strided_load %arg18[%c0_118, %c0_119] {strides = array<i32: 8, 1>} : memref<64x80xf32, #tpu.memory_space<vmem>>, vector<8x80xf32>
    %121 = arith.truncf %120 : vector<8x80xf32> to vector<8x80xbf16>
    %c0_120 = arith.constant 0 : index
    %c0_121 = arith.constant 0 : index
    %c0_122 = arith.constant 0 : index
    %122 = vector.load %arg8[%c0_120, %c0_121, %c0_122] : memref<5x80x120xbf16, #tpu.memory_space<vmem>>, vector<1x80x120xbf16>
    %123 = vector.shape_cast %122 : vector<1x80x120xbf16> to vector<80x120xbf16>
    %cst_123 = arith.constant dense<0.000000e+00> : vector<8x120xf32>
    %124 = tpu.matmul %121, %123, %cst_123 {dimension_numbers = #tpu.dot_dimension_numbers<[1], [0], [0], [1], [0, 0, 1, 1], [], []>} : vector<8x80xbf16>, vector<80x120xbf16>, vector<8x120xf32> -> vector<8x120xf32>
    %c1_124 = arith.constant 1 : index
    %c0_125 = arith.constant 0 : index
    %125 = tpu.strided_load %arg18[%c1_124, %c0_125] {strides = array<i32: 8, 1>} : memref<64x80xf32, #tpu.memory_space<vmem>>, vector<8x80xf32>
    %126 = arith.truncf %125 : vector<8x80xf32> to vector<8x80xbf16>
    %c1_126 = arith.constant 1 : index
    %c0_127 = arith.constant 0 : index
    %c0_128 = arith.constant 0 : index
    %127 = vector.load %arg8[%c1_126, %c0_127, %c0_128] : memref<5x80x120xbf16, #tpu.memory_space<vmem>>, vector<1x80x120xbf16>
    %128 = vector.shape_cast %127 : vector<1x80x120xbf16> to vector<80x120xbf16>
    %cst_129 = arith.constant dense<0.000000e+00> : vector<8x120xf32>
    %129 = tpu.matmul %126, %128, %cst_129 {dimension_numbers = #tpu.dot_dimension_numbers<[1], [0], [0], [1], [0, 0, 1, 1], [], []>} : vector<8x80xbf16>, vector<80x120xbf16>, vector<8x120xf32> -> vector<8x120xf32>
    %130 = arith.addf %124, %129 : vector<8x120xf32>
    %c2_130 = arith.constant 2 : index
    %c0_131 = arith.constant 0 : index
    %131 = tpu.strided_load %arg18[%c2_130, %c0_131] {strides = array<i32: 8, 1>} : memref<64x80xf32, #tpu.memory_space<vmem>>, vector<8x80xf32>
    %132 = arith.truncf %131 : vector<8x80xf32> to vector<8x80xbf16>
    %c2_132 = arith.constant 2 : index
    %c0_133 = arith.constant 0 : index
    %c0_134 = arith.constant 0 : index
    %133 = vector.load %arg8[%c2_132, %c0_133, %c0_134] : memref<5x80x120xbf16, #tpu.memory_space<vmem>>, vector<1x80x120xbf16>
    %134 = vector.shape_cast %133 : vector<1x80x120xbf16> to vector<80x120xbf16>
    %cst_135 = arith.constant dense<0.000000e+00> : vector<8x120xf32>
    %135 = tpu.matmul %132, %134, %cst_135 {dimension_numbers = #tpu.dot_dimension_numbers<[1], [0], [0], [1], [0, 0, 1, 1], [], []>} : vector<8x80xbf16>, vector<80x120xbf16>, vector<8x120xf32> -> vector<8x120xf32>
    %136 = arith.addf %130, %135 : vector<8x120xf32>
    %c3_136 = arith.constant 3 : index
    %c0_137 = arith.constant 0 : index
    %137 = tpu.strided_load %arg18[%c3_136, %c0_137] {strides = array<i32: 8, 1>} : memref<64x80xf32, #tpu.memory_space<vmem>>, vector<8x80xf32>
    %138 = arith.truncf %137 : vector<8x80xf32> to vector<8x80xbf16>
    %c3_138 = arith.constant 3 : index
    %c0_139 = arith.constant 0 : index
    %c0_140 = arith.constant 0 : index
    %139 = vector.load %arg8[%c3_138, %c0_139, %c0_140] : memref<5x80x120xbf16, #tpu.memory_space<vmem>>, vector<1x80x120xbf16>
    %140 = vector.shape_cast %139 : vector<1x80x120xbf16> to vector<80x120xbf16>
    %cst_141 = arith.constant dense<0.000000e+00> : vector<8x120xf32>
    %141 = tpu.matmul %138, %140, %cst_141 {dimension_numbers = #tpu.dot_dimension_numbers<[1], [0], [0], [1], [0, 0, 1, 1], [], []>} : vector<8x80xbf16>, vector<80x120xbf16>, vector<8x120xf32> -> vector<8x120xf32>
    %142 = arith.addf %136, %141 : vector<8x120xf32>
    %c4_142 = arith.constant 4 : index
    %c0_143 = arith.constant 0 : index
    %143 = tpu.strided_load %arg18[%c4_142, %c0_143] {strides = array<i32: 8, 1>} : memref<64x80xf32, #tpu.memory_space<vmem>>, vector<8x80xf32>
    %144 = arith.truncf %143 : vector<8x80xf32> to vector<8x80xbf16>
    %c4_144 = arith.constant 4 : index
    %c0_145 = arith.constant 0 : index
    %c0_146 = arith.constant 0 : index
    %145 = vector.load %arg8[%c4_144, %c0_145, %c0_146] : memref<5x80x120xbf16, #tpu.memory_space<vmem>>, vector<1x80x120xbf16>
    %146 = vector.shape_cast %145 : vector<1x80x120xbf16> to vector<80x120xbf16>
    %cst_147 = arith.constant dense<0.000000e+00> : vector<8x120xf32>
    %147 = tpu.matmul %144, %146, %cst_147 {dimension_numbers = #tpu.dot_dimension_numbers<[1], [0], [0], [1], [0, 0, 1, 1], [], []>} : vector<8x80xbf16>, vector<80x120xbf16>, vector<8x120xf32> -> vector<8x120xf32>
    %148 = arith.addf %142, %147 : vector<8x120xf32>
    %c0_148 = arith.constant 0 : index
    %c0_149 = arith.constant 0 : index
    %149 = vector.load %arg9[%c0_148, %c0_149] : memref<1x120xf32, #tpu.memory_space<vmem>>, vector<1x120xf32>
    %150 = vector.broadcast %149 : vector<1x120xf32> to vector<8x120xf32>
    %151 = arith.addf %148, %150 : vector<8x120xf32>
    %152 = math.tanh %151 : vector<8x120xf32>
    %153 = arith.truncf %152 : vector<8x120xf32> to vector<8x120xbf16>
    %c0_150 = arith.constant 0 : index
    %c0_151 = arith.constant 0 : index
    %154 = vector.load %arg10[%c0_150, %c0_151] : memref<120x84xbf16, #tpu.memory_space<vmem>>, vector<120x84xbf16>
    %cst_152 = arith.constant dense<0.000000e+00> : vector<8x84xf32>
    %155 = tpu.matmul %153, %154, %cst_152 {dimension_numbers = #tpu.dot_dimension_numbers<[1], [0], [0], [1], [0, 0, 1, 1], [], []>} : vector<8x120xbf16>, vector<120x84xbf16>, vector<8x84xf32> -> vector<8x84xf32>
    %c0_153 = arith.constant 0 : index
    %c0_154 = arith.constant 0 : index
    %156 = vector.load %arg11[%c0_153, %c0_154] : memref<1x84xf32, #tpu.memory_space<vmem>>, vector<1x84xf32>
    %157 = vector.broadcast %156 : vector<1x84xf32> to vector<8x84xf32>
    %158 = arith.addf %155, %157 : vector<8x84xf32>
    %159 = math.tanh %158 : vector<8x84xf32>
    %160 = arith.truncf %159 : vector<8x84xf32> to vector<8x84xbf16>
    %c0_155 = arith.constant 0 : index
    %c0_156 = arith.constant 0 : index
    %161 = vector.load %arg12[%c0_155, %c0_156] : memref<84x128xbf16, #tpu.memory_space<vmem>>, vector<84x128xbf16>
    %cst_157 = arith.constant dense<0.000000e+00> : vector<8x128xf32>
    %162 = tpu.matmul %160, %161, %cst_157 {dimension_numbers = #tpu.dot_dimension_numbers<[1], [0], [0], [1], [0, 0, 1, 1], [], []>} : vector<8x84xbf16>, vector<84x128xbf16>, vector<8x128xf32> -> vector<8x128xf32>
    %c0_158 = arith.constant 0 : index
    %c0_159 = arith.constant 0 : index
    %163 = vector.load %arg13[%c0_158, %c0_159] : memref<1x128xf32, #tpu.memory_space<vmem>>, vector<1x128xf32>
    %164 = vector.broadcast %163 : vector<1x128xf32> to vector<8x128xf32>
    %165 = arith.addf %162, %164 : vector<8x128xf32>
    %c0_160 = arith.constant 0 : index
    %c0_161 = arith.constant 0 : index
    %166 = vector.load %arg14[%c0_160, %c0_161] : memref<8x128xf32, #tpu.memory_space<vmem>>, vector<8x128xf32>
    tpu.vector_store %arg14[%c0_160, %c0_161], %165 {strides = array<i32>} : memref<8x128xf32, #tpu.memory_space<vmem>>, vector<8x128xf32>,
    return
  }
  func.func @transform_0(%arg0: i32) -> (i32, i32) {
    %c0_i32 = arith.constant 0 : i32
    %c0_i32_0 = arith.constant 0 : i32
    return %arg0, %c0_i32 : i32, i32
  }
  func.func @transform_1(%arg0: i32) -> (i32, i32, i32) {
    %c0_i32 = arith.constant 0 : i32
    %c0_i32_0 = arith.constant 0 : i32
    %c0_i32_1 = arith.constant 0 : i32
    %c0_i32_2 = arith.constant 0 : i32
    return %c0_i32, %c0_i32_0, %c0_i32_1 : i32, i32, i32
  }
  func.func @transform_2(%arg0: i32) -> (i32, i32, i32) {
    %c0_i32 = arith.constant 0 : i32
    %c0_i32_0 = arith.constant 0 : i32
    %c0_i32_1 = arith.constant 0 : i32
    %c0_i32_2 = arith.constant 0 : i32
    return %c0_i32, %c0_i32_0, %c0_i32_1 : i32, i32, i32
  }
  func.func @transform_3(%arg0: i32) -> (i32, i32) {
    %c0_i32 = arith.constant 0 : i32
    %c0_i32_0 = arith.constant 0 : i32
    %c0_i32_1 = arith.constant 0 : i32
    return %c0_i32, %c0_i32_0 : i32, i32
  }
  func.func @transform_4(%arg0: i32) -> (i32, i32, i32) {
    %c0_i32 = arith.constant 0 : i32
    %c0_i32_0 = arith.constant 0 : i32
    %c0_i32_1 = arith.constant 0 : i32
    %c0_i32_2 = arith.constant 0 : i32
    return %c0_i32, %c0_i32_0, %c0_i32_1 : i32, i32, i32
  }
  func.func @transform_5(%arg0: i32) -> (i32, i32, i32) {
    %c0_i32 = arith.constant 0 : i32
    %c0_i32_0 = arith.constant 0 : i32
    %c0_i32_1 = arith.constant 0 : i32
    %c0_i32_2 = arith.constant 0 : i32
    return %c0_i32, %c0_i32_0, %c0_i32_1 : i32, i32, i32
  }
  func.func @transform_6(%arg0: i32) -> (i32, i32) {
    %c0_i32 = arith.constant 0 : i32
    %c0_i32_0 = arith.constant 0 : i32
    %c0_i32_1 = arith.constant 0 : i32
    return %c0_i32, %c0_i32_0 : i32, i32
  }
  func.func @transform_7(%arg0: i32) -> (i32, i32, i32) {
    %c0_i32 = arith.constant 0 : i32
    %c0_i32_0 = arith.constant 0 : i32
    %c0_i32_1 = arith.constant 0 : i32
    %c0_i32_2 = arith.constant 0 : i32
    return %c0_i32, %c0_i32_0, %c0_i32_1 : i32, i32, i32
  }
  func.func @transform_8(%arg0: i32) -> (i32, i32) {
    %c0_i32 = arith.constant 0 : i32
    %c0_i32_0 = arith.constant 0 : i32
    %c0_i32_1 = arith.constant 0 : i32
    return %c0_i32, %c0_i32_0 : i32, i32
  }
  func.func @transform_9(%arg0: i32) -> (i32, i32) {
    %c0_i32 = arith.constant 0 : i32
    %c0_i32_0 = arith.constant 0 : i32
    %c0_i32_1 = arith.constant 0 : i32
    return %c0_i32, %c0_i32_0 : i32, i32
  }
  func.func @transform_10(%arg0: i32) -> (i32, i32) {
    %c0_i32 = arith.constant 0 : i32
    %c0_i32_0 = arith.constant 0 : i32
    %c0_i32_1 = arith.constant 0 : i32
    return %c0_i32, %c0_i32_0 : i32, i32
  }
  func.func @transform_11(%arg0: i32) -> (i32, i32) {
    %c0_i32 = arith.constant 0 : i32
    %c0_i32_0 = arith.constant 0 : i32
    %c0_i32_1 = arith.constant 0 : i32
    return %c0_i32, %c0_i32_0 : i32, i32
  }
  func.func @transform_12(%arg0: i32) -> (i32, i32) {
    %c0_i32 = arith.constant 0 : i32
    %c0_i32_0 = arith.constant 0 : i32
    %c0_i32_1 = arith.constant 0 : i32
    return %c0_i32, %c0_i32_0 : i32, i32
  }
  func.func @transform_13(%arg0: i32) -> (i32, i32) {
    %c0_i32 = arith.constant 0 : i32
    %c0_i32_0 = arith.constant 0 : i32
    return %arg0, %c0_i32 : i32, i32
  }
}

</mosaic_0001>

<llo_original>
// kernel: forward.1
$region0: #{forward.1}
  #allocation0 [shape = 'u32[]', space=smem, size = 0x4, offset = 0x4, fixed_abs, tag = 'smem constant byte address 0x4 - core index']
  #allocation1 [shape = 'u32[144,128]{1,0:T(1,128)}', space=vmem, size = 0x12000, scoped, tag = 'internal scratch']
  #allocation2 [shape = 'f32[256,84]{1,0:T(8,128)}', space=vmem, size = 0x20000, scoped, tag = 'scratch operand']
  #allocation3 [shape = 'f32[128,84]{1,0:T(8,128)}', space=vmem, size = 0x10000, scoped, tag = 'scratch operand']
  #allocation4 [shape = 'f32[128,80]{1,0:T(8,128)}', space=vmem, size = 0x10000, scoped, tag = 'scratch operand']
  #allocation5 [shape = 'f32[64,80]{1,0:T(8,128)}', space=vmem, size = 0x8000, scoped, tag = 'scratch operand']
  %s0 = inlined_call_operand.vmem [shape: f32[512,32], index: 0, kind: input, shape index: {}]
  %s1 = inlined_call_operand.vmem [shape: bf16[5,32,84], index: 1, kind: input, shape index: {}]
  %s2 = inlined_call_operand.vmem [shape: bf16[5,32,84], index: 2, kind: input, shape index: {}]
  %s3 = inlined_call_operand.hbm [shape: f32[1,84], index: 3, kind: input, shape index: {}]
  %s4 = inlined_call_operand.vmem [shape: bf16[5,84,80], index: 4, kind: input, shape index: {}]
  %s5 = inlined_call_operand.vmem [shape: bf16[5,84,80], index: 5, kind: input, shape index: {}]
  %s6 = inlined_call_operand.vmem [shape: f32[1,80], index: 6, kind: input, shape index: {}]
  %s7 = inlined_call_operand.vmem [shape: bf16[5,80,120], index: 7, kind: input, shape index: {}]
  %s8 = inlined_call_operand.vmem [shape: f32[1,120], index: 8, kind: input, shape index: {}]
  %s9 = inlined_call_operand.vmem [shape: bf16[120,84], index: 9, kind: input, shape index: {}]
  %s10 = inlined_call_operand.vmem [shape: f32[1,84], index: 10, kind: input, shape index: {}]
  %s11 = inlined_call_operand.vmem [shape: bf16[84,128], index: 11, kind: input, shape index: {}]
  %s12 = inlined_call_operand.vmem [shape: f32[1,128], index: 12, kind: input, shape index: {}]
  %s13 = inlined_call_operand.hbm [shape: f32[16,128], index: 13, kind: output, shape index: {}]
  %s14 = sld [smem:[#allocation0]]
  $region89: #{forward.1} parent=0
    _
  %s16 = ssub.s32 1, %s14
  %s17 = scalar_select 0, %s16, %s14
  $region1: #{forward.1} parent=0
    #allocation6 [shape = 'u8[512]{0}', space=vmem, size = 0x400, scoped, tag = 'input window, operand 3, single buffered']
    #allocation7 [shape = 's32[2]{0}', space=sflag, size = 0x8, scoped, tag = 'scoped memory for forward.1']
    #allocation8 [shape = 's32[2]{0}', space=sflag, size = 0x8, scoped, tag = 'scoped memory for forward.1']
    #allocation9 [shape = 'u8[8192]{0}', space=vmem, size = 0x2000, scoped, tag = 'output window, operand 0']
    %18 = vsyncpa [#allocation7], 0
    %19 = vsyncpa [#allocation8], 0
    %s20 = scalar_lea.sflag [#allocation8], 1
    %21 = vsyncpa %s20, 0
    loop: start=0, step=1, limit=4
    $region2: #{forward.1} parent=1 // loop_pre_header
      _
    $region3: #{forward.1} parent=1 // loop_header
      %s23 = sphi 0, %s27
      %p24 = scmp.ge.s32.totalorder %s23, 4
      %s33 = sphi 0, %s35
      %s36 = sphi 0, %s33
      %s37 = sphi 0, %s36
      %s53 = sphi 0, %s37
      %s57 = sphi 0, %s57
      %s59 = sphi 0, %s57
      %s60 = sphi 0, %s59
      %s74 = sphi 0, %s60
      %s78 = sphi 0, %s78
      %s80 = sphi 0, %s78
      %s81 = sphi 0, %s80
      %s95 = sphi 0, %s81
      %s99 = sphi 0, %s99
      %s101 = sphi 0, %s99
      %s102 = sphi 0, %s101
      %s116 = sphi 0, %s102
      %s120 = sphi 0, %s120
      %s122 = sphi 0, %s120
      %s123 = sphi 0, %s122
      %s137 = sphi 0, %s123
      %s141 = sphi 0, %s141
      %s143 = sphi 0, %s141
      %s144 = sphi 0, %s143
      %s158 = sphi 0, %s144
      %s162 = sphi 0, %s162
      %s164 = sphi 0, %s162
      %s165 = sphi 0, %s164
      %s179 = sphi 0, %s165
      %s183 = sphi 0, %s183
      %s185 = sphi 0, %s183
      %s186 = sphi 0, %s185
      %s200 = sphi 0, %s186
      %s204 = sphi 0, %s204
      %s206 = sphi 0, %s204
      %s207 = sphi 0, %s206
      %s221 = sphi 0, %s207
      %s225 = sphi 0, %s225
      %s227 = sphi 0, %s225
      %s228 = sphi 0, %s227
      %s242 = sphi 0, %s228
      %s246 = sphi 0, %s246
      %s248 = sphi 0, %s246
      %s249 = sphi 0, %s248
      %s263 = sphi 0, %s249
      %s267 = sphi 0, %s267
      %s269 = sphi 0, %s267
      %s270 = sphi 0, %s269
      %s284 = sphi 0, %s270
      %s288 = sphi 0, %s288
      %s290 = sphi 0, %s288
      %s291 = sphi 0, %s290
      %s305 = sphi 0, %s291
      %s311 = sphi 0, %s313
      %s314 = sphi 0, %s311
      %s315 = sphi 0, %s314
      %s331 = sphi 0, %s315
    $region4: #{forward.1} parent=1 // loop_header_branch
      %26 = sbr.rel (%p24) target = $region8
    $region5: #{forward.1} parent=1 // loop_body
      %s28 = ssub.s32 %s23, 1
      %s29 = ssub.s32 %s23, 2
      %s30 = sadd.s32 %s23, 1
      %s31 = ssub.s32 %s23, %s30
      %p32 = scmp.eq.s32.totalorder %s31, 0
      %s34 = sadd.s32 %s33, 1
      %s35 = scalar_select %p32, %s33, %s34
      %p38 = pneg %p32
      %p39 = scmp.eq.s32.totalorder %s23, 1
      %p40 = por %p38, %p39
      %p41 = scmp.ne.s32.totalorder %s33, %s36
      %p42 = scmp.eq.s32.totalorder %s23, 0
      %p43 = por %p41, %p42
      %p44 = scmp.ne.s32.totalorder %s33, %s36
      %p45 = scmp.eq.s32.totalorder %s28, 1
      %p46 = por %p44, %p45
      %p47 = scmp.ne.s32.totalorder %s36, %s37
      %p48 = scmp.eq.s32.totalorder %s28, 0
      %p49 = por %p47, %p48
      %p50 = scmp.ne.s32.totalorder %s36, %s37
      %p51 = scmp.eq.s32.totalorder %s29, 1
      %p52 = por %p50, %p51
      %p54 = scmp.ne.s32.totalorder %s37, %s53
      %p55 = scmp.eq.s32.totalorder %s29, 0
      %p56 = por %p54, %p55
      %s58 = sadd.s32 %s57, 1
      %p61 = scmp.eq.s32.totalorder %s23, 1
      %p62 = scmp.ne.s32.totalorder %s57, %s59
      %p63 = scmp.eq.s32.totalorder %s23, 0
      %p64 = por %p62, %p63
      %p65 = scmp.ne.s32.totalorder %s57, %s59
      %p66 = scmp.eq.s32.totalorder %s28, 1
      %p67 = por %p65, %p66
      %p68 = scmp.ne.s32.totalorder %s59, %s60
      %p69 = scmp.eq.s32.totalorder %s28, 0
      %p70 = por %p68, %p69
      %p71 = scmp.ne.s32.totalorder %s59, %s60
      %p72 = scmp.eq.s32.totalorder %s29, 1
      %p73 = por %p71, %p72
      %p75 = scmp.ne.s32.totalorder %s60, %s74
      %p76 = scmp.eq.s32.totalorder %s29, 0
      %p77 = por %p75, %p76
      %s79 = sadd.s32 %s78, 1
      %p82 = scmp.eq.s32.totalorder %s23, 1
      %p83 = scmp.ne.s32.totalorder %s78, %s80
      %p84 = scmp.eq.s32.totalorder %s23, 0
      %p85 = por %p83, %p84
      %p86 = scmp.ne.s32.totalorder %s78, %s80
      %p87 = scmp.eq.s32.totalorder %s28, 1
      %p88 = por %p86, %p87
      %p89 = scmp.ne.s32.totalorder %s80, %s81
      %p90 = scmp.eq.s32.totalorder %s28, 0
      %p91 = por %p89, %p90
      %p92 = scmp.ne.s32.totalorder %s80, %s81
      %p93 = scmp.eq.s32.totalorder %s29, 1
      %p94 = por %p92, %p93
      %p96 = scmp.ne.s32.totalorder %s81, %s95
      %p97 = scmp.eq.s32.totalorder %s29, 0
      %p98 = por %p96, %p97
      %s100 = sadd.s32 %s99, 1
      %p103 = scmp.eq.s32.totalorder %s23, 1
      %p104 = scmp.ne.s32.totalorder %s99, %s101
      %p105 = scmp.eq.s32.totalorder %s23, 0
      %p106 = por %p104, %p105
      %p107 = scmp.ne.s32.totalorder %s99, %s101
      %p108 = scmp.eq.s32.totalorder %s28, 1
      %p109 = por %p107, %p108
      %p110 = scmp.ne.s32.totalorder %s101, %s102
      %p111 = scmp.eq.s32.totalorder %s28, 0
      %p112 = por %p110, %p111
      %p113 = scmp.ne.s32.totalorder %s101, %s102
      %p114 = scmp.eq.s32.totalorder %s29, 1
      %p115 = por %p113, %p114
      %p117 = scmp.ne.s32.totalorder %s102, %s116
      %p118 = scmp.eq.s32.totalorder %s29, 0
      %p119 = por %p117, %p118
      %s121 = sadd.s32 %s120, 1
      %p124 = scmp.eq.s32.totalorder %s23, 1
      %p125 = scmp.ne.s32.totalorder %s120, %s122
      %p126 = scmp.eq.s32.totalorder %s23, 0
      %p127 = por %p125, %p126
      %p128 = scmp.ne.s32.totalorder %s120, %s122
      %p129 = scmp.eq.s32.totalorder %s28, 1
      %p130 = por %p128, %p129
      %p131 = scmp.ne.s32.totalorder %s122, %s123
      %p132 = scmp.eq.s32.totalorder %s28, 0
      %p133 = por %p131, %p132
      %p134 = scmp.ne.s32.totalorder %s122, %s123
      %p135 = scmp.eq.s32.totalorder %s29, 1
      %p136 = por %p134, %p135
      %p138 = scmp.ne.s32.totalorder %s123, %s137
      %p139 = scmp.eq.s32.totalorder %s29, 0
      %p140 = por %p138, %p139
      %s142 = sadd.s32 %s141, 1
      %p145 = scmp.eq.s32.totalorder %s23, 1
      %p146 = scmp.ne.s32.totalorder %s141, %s143
      %p147 = scmp.eq.s32.totalorder %s23, 0
      %p148 = por %p146, %p147
      %p149 = scmp.ne.s32.totalorder %s141, %s143
      %p150 = scmp.eq.s32.totalorder %s28, 1
      %p151 = por %p149, %p150
      %p152 = scmp.ne.s32.totalorder %s143, %s144
      %p153 = scmp.eq.s32.totalorder %s28, 0
      %p154 = por %p152, %p153
      %p155 = scmp.ne.s32.totalorder %s143, %s144
      %p156 = scmp.eq.s32.totalorder %s29, 1
      %p157 = por %p155, %p156
      %p159 = scmp.ne.s32.totalorder %s144, %s158
      %p160 = scmp.eq.s32.totalorder %s29, 0
      %p161 = por %p159, %p160
      %s163 = sadd.s32 %s162, 1
      %p166 = scmp.eq.s32.totalorder %s23, 1
      %p167 = scmp.ne.s32.totalorder %s162, %s164
      %p168 = scmp.eq.s32.totalorder %s23, 0
      %p169 = por %p167, %p168
      %p170 = scmp.ne.s32.totalorder %s162, %s164
      %p171 = scmp.eq.s32.totalorder %s28, 1
      %p172 = por %p170, %p171
      %p173 = scmp.ne.s32.totalorder %s164, %s165
      %p174 = scmp.eq.s32.totalorder %s28, 0
      %p175 = por %p173, %p174
      %p176 = scmp.ne.s32.totalorder %s164, %s165
      %p177 = scmp.eq.s32.totalorder %s29, 1
      %p178 = por %p176, %p177
      %p180 = scmp.ne.s32.totalorder %s165, %s179
      %p181 = scmp.eq.s32.totalorder %s29, 0
      %p182 = por %p180, %p181
      %s184 = sadd.s32 %s183, 1
      %p187 = scmp.eq.s32.totalorder %s23, 1
      %p188 = scmp.ne.s32.totalorder %s183, %s185
      %p189 = scmp.eq.s32.totalorder %s23, 0
      %p190 = por %p188, %p189
      %p191 = scmp.ne.s32.totalorder %s183, %s185
      %p192 = scmp.eq.s32.totalorder %s28, 1
      %p193 = por %p191, %p192
      %p194 = scmp.ne.s32.totalorder %s185, %s186
      %p195 = scmp.eq.s32.totalorder %s28, 0
      %p196 = por %p194, %p195
      %p197 = scmp.ne.s32.totalorder %s185, %s186
      %p198 = scmp.eq.s32.totalorder %s29, 1
      %p199 = por %p197, %p198
      %p201 = scmp.ne.s32.totalorder %s186, %s200
      %p202 = scmp.eq.s32.totalorder %s29, 0
      %p203 = por %p201, %p202
      %s205 = sadd.s32 %s204, 1
      %p208 = scmp.eq.s32.totalorder %s23, 1
      %p209 = scmp.ne.s32.totalorder %s204, %s206
      %p210 = scmp.eq.s32.totalorder %s23, 0
      %p211 = por %p209, %p210
      %p212 = scmp.ne.s32.totalorder %s204, %s206
      %p213 = scmp.eq.s32.totalorder %s28, 1
      %p214 = por %p212, %p213
      %p215 = scmp.ne.s32.totalorder %s206, %s207
      %p216 = scmp.eq.s32.totalorder %s28, 0
      %p217 = por %p215, %p216
      %p218 = scmp.ne.s32.totalorder %s206, %s207
      %p219 = scmp.eq.s32.totalorder %s29, 1
      %p220 = por %p218, %p219
      %p222 = scmp.ne.s32.totalorder %s207, %s221
      %p223 = scmp.eq.s32.totalorder %s29, 0
      %p224 = por %p222, %p223
      %s226 = sadd.s32 %s225, 1
      %p229 = scmp.eq.s32.totalorder %s23, 1
      %p230 = scmp.ne.s32.totalorder %s225, %s227
      %p231 = scmp.eq.s32.totalorder %s23, 0
      %p232 = por %p230, %p231
      %p233 = scmp.ne.s32.totalorder %s225, %s227
      %p234 = scmp.eq.s32.totalorder %s28, 1
      %p235 = por %p233, %p234
      %p236 = scmp.ne.s32.totalorder %s227, %s228
      %p237 = scmp.eq.s32.totalorder %s28, 0
      %p238 = por %p236, %p237
      %p239 = scmp.ne.s32.totalorder %s227, %s228
      %p240 = scmp.eq.s32.totalorder %s29, 1
      %p241 = por %p239, %p240
      %p243 = scmp.ne.s32.totalorder %s228, %s242
      %p244 = scmp.eq.s32.totalorder %s29, 0
      %p245 = por %p243, %p244
      %s247 = sadd.s32 %s246, 1
      %p250 = scmp.eq.s32.totalorder %s23, 1
      %p251 = scmp.ne.s32.totalorder %s246, %s248
      %p252 = scmp.eq.s32.totalorder %s23, 0
      %p253 = por %p251, %p252
      %p254 = scmp.ne.s32.totalorder %s246, %s248
      %p255 = scmp.eq.s32.totalorder %s28, 1
      %p256 = por %p254, %p255
      %p257 = scmp.ne.s32.totalorder %s248, %s249
      %p258 = scmp.eq.s32.totalorder %s28, 0
      %p259 = por %p257, %p258
      %p260 = scmp.ne.s32.totalorder %s248, %s249
      %p261 = scmp.eq.s32.totalorder %s29, 1
      %p262 = por %p260, %p261
      %p264 = scmp.ne.s32.totalorder %s249, %s263
      %p265 = scmp.eq.s32.totalorder %s29, 0
      %p266 = por %p264, %p265
      %s268 = sadd.s32 %s267, 1
      %p271 = scmp.eq.s32.totalorder %s23, 1
      %p272 = scmp.ne.s32.totalorder %s267, %s269
      %p273 = scmp.eq.s32.totalorder %s23, 0
      %p274 = por %p272, %p273
      %p275 = scmp.ne.s32.totalorder %s267, %s269
      %p276 = scmp.eq.s32.totalorder %s28, 1
      %p277 = por %p275, %p276
      %p278 = scmp.ne.s32.totalorder %s269, %s270
      %p279 = scmp.eq.s32.totalorder %s28, 0
      %p280 = por %p278, %p279
      %p281 = scmp.ne.s32.totalorder %s269, %s270
      %p282 = scmp.eq.s32.totalorder %s29, 1
      %p283 = por %p281, %p282
      %p285 = scmp.ne.s32.totalorder %s270, %s284
      %p286 = scmp.eq.s32.totalorder %s29, 0
      %p287 = por %p285, %p286
      %s289 = sadd.s32 %s288, 1
      %p292 = scmp.eq.s32.totalorder %s23, 1
      %p293 = scmp.ne.s32.totalorder %s288, %s290
      %p294 = scmp.eq.s32.totalorder %s23, 0
      %p295 = por %p293, %p294
      %p296 = scmp.ne.s32.totalorder %s288, %s290
      %p297 = scmp.eq.s32.totalorder %s28, 1
      %p298 = por %p296, %p297
      %p299 = scmp.ne.s32.totalorder %s290, %s291
      %p300 = scmp.eq.s32.totalorder %s28, 0
      %p301 = por %p299, %p300
      %p302 = scmp.ne.s32.totalorder %s290, %s291
      %p303 = scmp.eq.s32.totalorder %s29, 1
      %p304 = por %p302, %p303
      %p306 = scmp.ne.s32.totalorder %s291, %s305
      %p307 = scmp.eq.s32.totalorder %s29, 0
      %p308 = por %p306, %p307
      %s309 = ssub.s32 %s23, %s30
      %p310 = scmp.eq.s32.totalorder %s309, 0
      %s312 = sadd.s32 %s311, 1
      %s313 = scalar_select %p310, %s311, %s312
      %p316 = pneg %p310
      %p317 = scmp.eq.s32.totalorder %s23, 1
      %p318 = por %p316, %p317
      %p319 = scmp.ne.s32.totalorder %s311, %s314
      %p320 = scmp.eq.s32.totalorder %s23, 0
      %p321 = por %p319, %p320
      %p322 = scmp.ne.s32.totalorder %s311, %s314
      %p323 = scmp.eq.s32.totalorder %s28, 1
      %p324 = por %p322, %p323
      %p325 = scmp.ne.s32.totalorder %s314, %s315
      %p326 = scmp.eq.s32.totalorder %s28, 0
      %p327 = por %p325, %p326
      %p328 = scmp.ne.s32.totalorder %s314, %s315
      %p329 = scmp.eq.s32.totalorder %s29, 1
      %p330 = por %p328, %p329
      %p332 = scmp.ne.s32.totalorder %s315, %s331
      %p333 = scmp.eq.s32.totalorder %s29, 0
      %p334 = por %p332, %p333
      %p335 = scmp.le.s32.totalorder 1, %s23
      %p336 = scmp.lt.s32.totalorder %s23, 3
      %p337 = pnand %p335, %p336
      %p338 = pneg %p337
      // Predicated region
      $region9: #{forward.1} parent=5 // pred_check
        _
      $region10: #{forward.1} parent=5 // pred_check_branch
        %340 = sbr.rel (%p337) target = $region12
      $region11: #{forward.1} parent=5 // pred_region
        %s341 = ssub.s32 %s23, 1
        // Predicated region
        $region13: #{forward.1} parent=11 // pred_check
          %p342 = pneg %p70
        $region14: #{forward.1} parent=11 // pred_check_branch
          %344 = sbr.rel (%p342) target = $region16
        $region15: #{forward.1} parent=11 // pred_region
          _
        $region16: #{forward.1} parent=11 // pred_fallthru
          _
        // Predicated region
        $region17: #{forward.1} parent=11 // pred_check
          %p345 = pneg %p91
        $region18: #{forward.1} parent=11 // pred_check_branch
          %347 = sbr.rel (%p345) target = $region20
        $region19: #{forward.1} parent=11 // pred_region
          _
        $region20: #{forward.1} parent=11 // pred_fallthru
          _
        // Predicated region
        $region21: #{forward.1} parent=11 // pred_check
          %p348 = pneg %p112
        $region22: #{forward.1} parent=11 // pred_check_branch
          %350 = sbr.rel (%p348) target = $region24
        $region23: #{forward.1} parent=11 // pred_region
          %s352 = ssub.s32 16, 16
          %353 = vsyncadd [#allocation7], %s352
          %s355 = sshll.u32 [#allocation6], 4
          %s356 = int_to_ptr.vmem [resolvable:$true] %s355
          %358 = dma.hbm_to_vmem [thread:$0]  %s3, 16, %s356, [#allocation7]
        $region24: #{forward.1} parent=11 // pred_fallthru
          _
        // Predicated region
        $region25: #{forward.1} parent=11 // pred_check
          %p359 = pneg %p133
        $region26: #{forward.1} parent=11 // pred_check_branch
          %361 = sbr.rel (%p359) target = $region28
        $region27: #{forward.1} parent=11 // pred_region
          _
        $region28: #{forward.1} parent=11 // pred_fallthru
          _
        // Predicated region
        $region29: #{forward.1} parent=11 // pred_check
          %p362 = pneg %p154
        $region30: #{forward.1} parent=11 // pred_check_branch
          %364 = sbr.rel (%p362) target = $region32
        $region31: #{forward.1} parent=11 // pred_region
          _
        $region32: #{forward.1} parent=11 // pred_fallthru
          _
        // Predicated region
        $region33: #{forward.1} parent=11 // pred_check
          %p365 = pneg %p175
        $region34: #{forward.1} parent=11 // pred_check_branch
          %367 = sbr.rel (%p365) target = $region36
        $region35: #{forward.1} parent=11 // pred_region
          _
        $region36: #{forward.1} parent=11 // pred_fallthru
          _
        // Predicated region
        $region37: #{forward.1} parent=11 // pred_check
          %p368 = pneg %p196
        $region38: #{forward.1} parent=11 // pred_check_branch
          %370 = sbr.rel (%p368) target = $region40
        $region39: #{forward.1} parent=11 // pred_region
          _
        $region40: #{forward.1} parent=11 // pred_fallthru
          _
        // Predicated region
        $region41: #{forward.1} parent=11 // pred_check
          %p371 = pneg %p217
        $region42: #{forward.1} parent=11 // pred_check_branch
          %373 = sbr.rel (%p371) target = $region44
        $region43: #{forward.1} parent=11 // pred_region
          _
        $region44: #{forward.1} parent=11 // pred_fallthru
          _
        // Predicated region
        $region45: #{forward.1} parent=11 // pred_check
          %p374 = pneg %p238
        $region46: #{forward.1} parent=11 // pred_check_branch
          %376 = sbr.rel (%p374) target = $region48
        $region47: #{forward.1} parent=11 // pred_region
          _
        $region48: #{forward.1} parent=11 // pred_fallthru
          _
        // Predicated region
        $region49: #{forward.1} parent=11 // pred_check
          %p377 = pneg %p259
        $region50: #{forward.1} parent=11 // pred_check_branch
          %379 = sbr.rel (%p377) target = $region52
        $region51: #{forward.1} parent=11 // pred_region
          _
        $region52: #{forward.1} parent=11 // pred_fallthru
          _
        // Predicated region
        $region53: #{forward.1} parent=11 // pred_check
          %p380 = pneg %p280
        $region54: #{forward.1} parent=11 // pred_check_branch
          %382 = sbr.rel (%p380) target = $region56
        $region55: #{forward.1} parent=11 // pred_region
          _
        $region56: #{forward.1} parent=11 // pred_fallthru
          _
        // Predicated region
        $region57: #{forward.1} parent=11 // pred_check
          %p383 = pneg %p301
        $region58: #{forward.1} parent=11 // pred_check_branch
          %385 = sbr.rel (%p383) target = $region60
        $region59: #{forward.1} parent=11 // pred_region
          _
        $region60: #{forward.1} parent=11 // pred_fallthru
          _
      $region12: #{forward.1} parent=5 // pred_fallthru
        _
      %p386 = scmp.lt.s32.totalorder %s23, 2
      // Predicated region
      $region61: #{forward.1} parent=5 // pred_check
        %p387 = pneg %p386
      $region62: #{forward.1} parent=5 // pred_check_branch
        %389 = sbr.rel (%p387) target = $region64
      $region63: #{forward.1} parent=5 // pred_region
        // Predicated region
        $region65: #{forward.1} parent=63 // pred_check
          %p390 = pneg %p43
        $region66: #{forward.1} parent=63 // pred_check_branch
          %392 = sbr.rel (%p390) target = $region68
        $region67: #{forward.1} parent=63 // pred_region
          %s393 = smul.u32 32, %s23
          %p394 = scmp.lt.s32.totalorder %s393, 63
          %s395 = scalar_select %p394, %s393, 63
          %s396 = smul.addr %s395, 8
          %s397 = scalar_lea.vmem %s0, %s396
          %s398 = smul.u32 32, %s23
        $region68: #{forward.1} parent=63 // pred_fallthru
          _
      $region64: #{forward.1} parent=5 // pred_fallthru
        _
      %p399 = scmp.le.s32.totalorder 1, %s23
      %p400 = scmp.lt.s32.totalorder %s23, 3
      %p401 = pnand %p399, %p400
      %p402 = pneg %p401
      // Predicated region
      $region69: #{forward.1} parent=5 // pred_check
        _
      $region70: #{forward.1} parent=5 // pred_check_branch
        %404 = sbr.rel (%p401) target = $region72
      $region71: #{forward.1} parent=5 // pred_region
        %s405 = ssub.s32 %s23, 1
        // Predicated region
        $region73: #{forward.1} parent=71 // pred_check
          %p406 = pneg %p112
        $region74: #{forward.1} parent=71 // pred_check_branch
          %408 = sbr.rel (%p406) target = $region76
        $region75: #{forward.1} parent=71 // pred_region
          %409 = dma.done [#allocation7], 16
        $region76: #{forward.1} parent=71 // pred_fallthru
          _
        %s410 = smul.u32 32, %s28
        %p411 = scmp.lt.s32.totalorder %s410, 63
        %s412 = scalar_select %p411, %s410, 63
        %s413 = smul.addr %s412, 8
        %s414 = scalar_lea.vmem %s0, %s413
        %p415 = pneg %p49
        %p416 = pneg %p46
        %p417 = pneg %p70
        %p418 = pneg %p67
        %p419 = pneg %p91
        %p420 = pneg %p88
        %p421 = pneg %p112
        %p422 = pneg %p109
        %p423 = pneg %p133
        %p424 = pneg %p130
        %p425 = pneg %p154
        %p426 = pneg %p151
        %p427 = pneg %p175
        %p428 = pneg %p172
        %p429 = pneg %p196
        %p430 = pneg %p193
        %p431 = pneg %p217
        %p432 = pneg %p214
        %p433 = pneg %p238
        %p434 = pneg %p235
        %p435 = pneg %p259
        %p436 = pneg %p256
        %p437 = pneg %p280
        %p438 = pneg %p277
        %p439 = pneg %p301
        %p440 = pneg %p298
        %p441 = pneg %p327
        %p442 = pneg %p324
        %s443 = sand.u32 %s314, 1
        %s444 = scalar_lea.sflag [#allocation8], %s443
        %s445 = sand.u32 %s314, 1
        %s446 = smul.addr %s445, 8
        %s447 = scalar_lea.vmem [#allocation9], %s446
        %s448 = smul.u32 32, %s28
        %p449 = scmp.lt.s32.totalorder %s448, 63
        %s450 = scalar_select %p449, %s448, 63
        %s451 = smul.addr %s450, 8
        %s452 = scalar_lea.vmem %s0, %s451
        %s453 = smul.u32 32, %s28
        %v455 = vld [vmem:[%s452] sm:$0xff]
        %v456 = vld [vmem:[%s452 + $0x8] sm:$0xff]
        %v457 = vld [vmem:[%s452 + $0x10] sm:$0xff]
        %v458 = vld [vmem:[%s452 + $0x18] sm:$0xff]
        %v459 = vld [vmem:[%s452 + $0x20] sm:$0xff]
        %v460 = vld [vmem:[%s452 + $0x28] sm:$0xff]
        %v461 = vld [vmem:[%s452 + $0x30] sm:$0xff]
        %v462 = vld [vmem:[%s452 + $0x38] sm:$0xff]
        %v463 = vld [vmem:[%s452 + $0x40] sm:$0xff]
        %v464 = vld [vmem:[%s452 + $0x48] sm:$0xff]
        %v465 = vld [vmem:[%s452 + $0x50] sm:$0xff]
        %v466 = vld [vmem:[%s452 + $0x58] sm:$0xff]
        %v467 = vld [vmem:[%s452 + $0x60] sm:$0xff]
        %v468 = vld [vmem:[%s452 + $0x68] sm:$0xff]
        %v469 = vld [vmem:[%s452 + $0x70] sm:$0xff]
        %v470 = vld [vmem:[%s452 + $0x78] sm:$0xff]
        %v471 = vld [vmem:[%s452 + $0x80] sm:$0xff]
        %v472 = vld [vmem:[%s452 + $0x88] sm:$0xff]
        %v473 = vld [vmem:[%s452 + $0x90] sm:$0xff]
        %v474 = vld [vmem:[%s452 + $0x98] sm:$0xff]
        %v475 = vld [vmem:[%s452 + $0xa0] sm:$0xff]
        %v476 = vld [vmem:[%s452 + $0xa8] sm:$0xff]
        %v477 = vld [vmem:[%s452 + $0xb0] sm:$0xff]
        %v478 = vld [vmem:[%s452 + $0xb8] sm:$0xff]
        %v479 = vld [vmem:[%s452 + $0xc0] sm:$0xff]
        %v480 = vld [vmem:[%s452 + $0xc8] sm:$0xff]
        %v481 = vld [vmem:[%s452 + $0xd0] sm:$0xff]
        %v482 = vld [vmem:[%s452 + $0xd8] sm:$0xff]
        %v483 = vld [vmem:[%s452 + $0xe0] sm:$0xff]
        %v484 = vld [vmem:[%s452 + $0xe8] sm:$0xff]
        %v485 = vld [vmem:[%s452 + $0xf0] sm:$0xff]
        %v486 = vld [vmem:[%s452 + $0xf8] sm:$0xf]
        %v487 = vpack.c.bf16 %v456, %v455
        %v488 = vpack.c.bf16 %v458, %v457
        %v489 = vpack.c.bf16 %v460, %v459
        %v490 = vpack.c.bf16 %v462, %v461
        %v491 = vpack.c.bf16 %v464, %v463
        %v492 = vpack.c.bf16 %v466, %v465
        %v493 = vpack.c.bf16 %v468, %v467
        %v494 = vpack.c.bf16 %v470, %v469
        %v495 = vpack.c.bf16 %v472, %v471
        %v496 = vpack.c.bf16 %v474, %v473
        %v497 = vpack.c.bf16 %v476, %v475
        %v498 = vpack.c.bf16 %v478, %v477
        %v499 = vpack.c.bf16 %v480, %v479
        %v500 = vpack.c.bf16 %v482, %v481
        %v501 = vpack.c.bf16 %v484, %v483
        %v502 = vpack.c.bf16 %v486, %v485
        %v503 = vld [vmem:[%s1] sm:$0xf]
        %v504 = vld [vmem:[%s1 + $0x4] sm:$0xf]
        %v505 = vld [vmem:[%s1 + $0x8] sm:$0xf]
        %v506 = vld [vmem:[%s1 + $0xc] sm:$0xf]
        %v507 = vld [vmem:[%s2] sm:$0xf]
        %v508 = vld [vmem:[%s2 + $0x4] sm:$0xf]
        %v509 = vld [vmem:[%s2 + $0x8] sm:$0xf]
        %v510 = vld [vmem:[%s2 + $0xc] sm:$0xf]
        %v511 = vld [vmem:[%s452 + $0x1] sm:$0xff]
        %v512 = vld [vmem:[%s452 + $0x9] sm:$0xff]
        %v513 = vld [vmem:[%s452 + $0x11] sm:$0xff]
        %v514 = vld [vmem:[%s452 + $0x19] sm:$0xff]
        %v515 = vld [vmem:[%s452 + $0x21] sm:$0xff]
        %v516 = vld [vmem:[%s452 + $0x29] sm:$0xff]
        %v517 = vld [vmem:[%s452 + $0x31] sm:$0xff]
        %v518 = vld [vmem:[%s452 + $0x39] sm:$0xff]
        %v519 = vld [vmem:[%s452 + $0x41] sm:$0xff]
        %v520 = vld [vmem:[%s452 + $0x49] sm:$0xff]
        %v521 = vld [vmem:[%s452 + $0x51] sm:$0xff]
        %v522 = vld [vmem:[%s452 + $0x59] sm:$0xff]
        %v523 = vld [vmem:[%s452 + $0x61] sm:$0xff]
        %v524 = vld [vmem:[%s452 + $0x69] sm:$0xff]
        %v525 = vld [vmem:[%s452 + $0x71] sm:$0xff]
        %v526 = vld [vmem:[%s452 + $0x79] sm:$0xff]
        %v527 = vld [vmem:[%s452 + $0x81] sm:$0xff]
        %v528 = vld [vmem:[%s452 + $0x89] sm:$0xff]
        %v529 = vld [vmem:[%s452 + $0x91] sm:$0xff]
        %v530 = vld [vmem:[%s452 + $0x99] sm:$0xff]
        %v531 = vld [vmem:[%s452 + $0xa1] sm:$0xff]
        %v532 = vld [vmem:[%s452 + $0xa9] sm:$0xff]
        %v533 = vld [vmem:[%s452 + $0xb1] sm:$0xff]
        %v534 = vld [vmem:[%s452 + $0xb9] sm:$0xff]
        %v535 = vld [vmem:[%s452 + $0xc1] sm:$0xff]
        %v536 = vld [vmem:[%s452 + $0xc9] sm:$0xff]
        %v537 = vld [vmem:[%s452 + $0xd1] sm:$0xff]
        %v538 = vld [vmem:[%s452 + $0xd9] sm:$0xff]
        %v539 = vld [vmem:[%s452 + $0xe1] sm:$0xff]
        %v540 = vld [vmem:[%s452 + $0xe9] sm:$0xff]
        %v541 = vld [vmem:[%s452 + $0xf1] sm:$0xff]
        %v542 = vld [vmem:[%s452 + $0xf9] sm:$0xf]
        %v543 = vpack.c.bf16 %v512, %v511
        %v544 = vpack.c.bf16 %v514, %v513
        %v545 = vpack.c.bf16 %v516, %v515
        %v546 = vpack.c.bf16 %v518, %v517
        %v547 = vpack.c.bf16 %v520, %v519
        %v548 = vpack.c.bf16 %v522, %v521
        %v549 = vpack.c.bf16 %v524, %v523
        %v550 = vpack.c.bf16 %v526, %v525
        %v551 = vpack.c.bf16 %v528, %v527
        %v552 = vpack.c.bf16 %v530, %v529
        %v553 = vpack.c.bf16 %v532, %v531
        %v554 = vpack.c.bf16 %v534, %v533
        %v555 = vpack.c.bf16 %v536, %v535
        %v556 = vpack.c.bf16 %v538, %v537
        %v557 = vpack.c.bf16 %v540, %v539
        %v558 = vpack.c.bf16 %v542, %v541
        %s559 = scalar_lea.vmem %s1, 16
        %v560 = vld [vmem:[%s559] sm:$0xf]
        %v561 = vld [vmem:[%s559 + $0x4] sm:$0xf]
        %v562 = vld [vmem:[%s559 + $0x8] sm:$0xf]
        %v563 = vld [vmem:[%s559 + $0xc] sm:$0xf]
        %v568 = vunpack.c.l.b16 %v560
        %v569 = vunpack.c.l.b16 %v561
        %v570 = vunpack.c.l.b16 %v562
        %v571 = vunpack.c.l.b16 %v563
        %v572 = vpack.c.b16 %v569, %v568
        %v573 = vpack.c.b16 %v571, %v570
        %vm576 = vcmask 261120
        %v578 = vsel %vm576, %v543, 0
        %v581 = vsel %vm576, %v544, 0
        %v584 = vsel %vm576, %v545, 0
        %v587 = vsel %vm576, %v546, 0
        %v590 = vsel %vm576, %v547, 0
        %v593 = vsel %vm576, %v548, 0
        %v596 = vsel %vm576, %v549, 0
        %v599 = vsel %vm576, %v550, 0
        %v602 = vsel %vm576, %v551, 0
        %v605 = vsel %vm576, %v552, 0
        %v608 = vsel %vm576, %v553, 0
        %v611 = vsel %vm576, %v554, 0
        %v614 = vsel %vm576, %v555, 0
        %v617 = vsel %vm576, %v556, 0
        %v620 = vsel %vm576, %v557, 0
        %v623 = vsel %vm576, %v558, 0
        %625 = vmatprep.subr.bf16.mxu0 0
        %626 = vmatpush1.bf16.msra.mxu0 %v572
        %627 = vmatprep.subr.bf16.mxu0 0
        %628 = vmatpush1.bf16.msra.mxu0 %v573
        %629 = vmatprep.subr.bf16.mxu0 0
        %630 = vmatpush1.bf16.msra.mxu0 0
        %631 = vmatprep.subr.bf16.mxu0 0
        %632 = vmatpush1.bf16.msra.mxu0 0
        %633 = vmatprep.subr.bf16.mxu0 0
        %634 = vmatpush1.bf16.msra.mxu0 0
        %635 = vmatprep.subr.bf16.mxu0 0
        %636 = vmatpush1.bf16.msra.mxu0 0
        %637 = vmatprep.subr.bf16.mxu0 0
        %638 = vmatpush1.bf16.msra.mxu0 0
        %639 = vmatprep.subr.bf16.mxu0 0
        %640 = vmatpush1.bf16.msra.mxu0 0
        %641 = vmatprep.subr.bf16.mxu0 0
        %642 = vmatpush1.bf16.msra.mxu0 0
        %643 = vmatprep.subr.bf16.mxu0 0
        %644 = vmatpush1.bf16.msra.mxu0 0
        %645 = vmatprep.subr.bf16.mxu0 0
        %646 = vmatpush1.bf16.msra.mxu0 0
        %647 = vmatprep.subr.bf16.mxu0 0
        %648 = vmatpush1.bf16.msra.mxu0 0
        %649 = vmatprep.subr.bf16.mxu0 0
        %650 = vmatpush1.bf16.msra.mxu0 0
        %651 = vmatprep.subr.bf16.mxu0 0
        %652 = vmatpush1.bf16.msra.mxu0 0
        %653 = vmatprep.subr.bf16.mxu0 0
        %654 = vmatpush1.bf16.msra.mxu0 0
        %655 = vmatprep.subr.bf16.mxu0 0
        %656 = vmatpush1.bf16.msra.mxu0 0
        %657 = vmatprep.mubr.bf16.mxu0 0
        %658 = vmatmul.mubr.bf16.gmra.mrb[0].mxu0 %v578
        %v659 = vpop.f32.mrb[0].mxu0
        %v660 = vadd.f32 0.0, %v659
        %v661 = vpop.f32.mrb[0].mxu0
        %v662 = vpop.f32.mrb[0].mxu0
        %v663 = vadd.f32 0.0, %v662
        %v664 = vpop.f32.mrb[0].mxu0
        %665 = vmatprep.mubr.bf16.mxu0 0
        %666 = vmatmul.mubr.bf16.gmra.mrb[0].mxu0 %v581
        %v667 = vpop.f32.mrb[0].mxu0
        %v668 = vadd.f32 0.0, %v667
        %v669 = vpop.f32.mrb[0].mxu0
        %v670 = vpop.f32.mrb[0].mxu0
        %v671 = vadd.f32 0.0, %v670
        %v672 = vpop.f32.mrb[0].mxu0
        %673 = vmatprep.mubr.bf16.mxu0 0
        %674 = vmatmul.mubr.bf16.gmra.mrb[0].mxu0 %v584
        %v675 = vpop.f32.mrb[0].mxu0
        %v676 = vadd.f32 0.0, %v675
        %v677 = vpop.f32.mrb[0].mxu0
        %v678 = vpop.f32.mrb[0].mxu0
        %v679 = vadd.f32 0.0, %v678
        %v680 = vpop.f32.mrb[0].mxu0
        %681 = vmatprep.mubr.bf16.mxu0 0
        %682 = vmatmul.mubr.bf16.gmra.mrb[0].mxu0 %v587
        %v683 = vpop.f32.mrb[0].mxu0
        %v684 = vadd.f32 0.0, %v683
        %v685 = vpop.f32.mrb[0].mxu0
        %v686 = vpop.f32.mrb[0].mxu0
        %v687 = vadd.f32 0.0, %v686
        %v688 = vpop.f32.mrb[0].mxu0
        %689 = vmatprep.mubr.bf16.mxu0 0
        %690 = vmatmul.mubr.bf16.gmra.mrb[0].mxu0 %v590
        %v691 = vpop.f32.mrb[0].mxu0
        %v692 = vadd.f32 0.0, %v691
        %v693 = vpop.f32.mrb[0].mxu0
        %v694 = vpop.f32.mrb[0].mxu0
        %v695 = vadd.f32 0.0, %v694
        %v696 = vpop.f32.mrb[0].mxu0
        %697 = vmatprep.mubr.bf16.mxu0 0
        %698 = vmatmul.mubr.bf16.gmra.mrb[0].mxu0 %v593
        %v699 = vpop.f32.mrb[0].mxu0
        %v700 = vadd.f32 0.0, %v699
        %v701 = vpop.f32.mrb[0].mxu0
        %v702 = vpop.f32.mrb[0].mxu0
        %v703 = vadd.f32 0.0, %v702
        %v704 = vpop.f32.mrb[0].mxu0
        %705 = vmatprep.mubr.bf16.mxu0 0
        %706 = vmatmul.mubr.bf16.gmra.mrb[0].mxu0 %v596
        %v707 = vpop.f32.mrb[0].mxu0
        %v708 = vadd.f32 0.0, %v707
        %v709 = vpop.f32.mrb[0].mxu0
        %v710 = vpop.f32.mrb[0].mxu0
        %v711 = vadd.f32 0.0, %v710
        %v712 = vpop.f32.mrb[0].mxu0
        %713 = vmatprep.mubr.bf16.mxu0 0
        %714 = vmatmul.mubr.bf16.gmra.mrb[0].mxu0 %v599
        %v715 = vpop.f32.mrb[0].mxu0
        %v716 = vadd.f32 0.0, %v715
        %v717 = vpop.f32.mrb[0].mxu0
        %v718 = vpop.f32.mrb[0].mxu0
        %v719 = vadd.f32 0.0, %v718
        %v720 = vpop.f32.mrb[0].mxu0
        %721 = vmatprep.mubr.bf16.mxu0 0
        %722 = vmatmul.mubr.bf16.gmra.mrb[0].mxu0 %v602
        %v723 = vpop.f32.mrb[0].mxu0
        %v724 = vadd.f32 0.0, %v723
        %v725 = vpop.f32.mrb[0].mxu0
        %v726 = vpop.f32.mrb[0].mxu0
        %v727 = vadd.f32 0.0, %v726
        %v728 = vpop.f32.mrb[0].mxu0
        %729 = vmatprep.mubr.bf16.mxu0 0
        %730 = vmatmul.mubr.bf16.gmra.mrb[0].mxu0 %v605
        %v731 = vpop.f32.mrb[0].mxu0
        %v732 = vadd.f32 0.0, %v731
        %v733 = vpop.f32.mrb[0].mxu0
        %v734 = vpop.f32.mrb[0].mxu0
        %v735 = vadd.f32 0.0, %v734
        %v736 = vpop.f32.mrb[0].mxu0
        %737 = vmatprep.mubr.bf16.mxu0 0
        %738 = vmatmul.mubr.bf16.gmra.mrb[0].mxu0 %v608
        %v739 = vpop.f32.mrb[0].mxu0
        %v740 = vadd.f32 0.0, %v739
        %v741 = vpop.f32.mrb[0].mxu0
        %v742 = vpop.f32.mrb[0].mxu0
        %v743 = vadd.f32 0.0, %v742
        %v744 = vpop.f32.mrb[0].mxu0
        %745 = vmatprep.mubr.bf16.mxu0 0
        %746 = vmatmul.mubr.bf16.gmra.mrb[0].mxu0 %v611
        %v747 = vpop.f32.mrb[0].mxu0
        %v748 = vadd.f32 0.0, %v747
        %v749 = vpop.f32.mrb[0].mxu0
        %v750 = vpop.f32.mrb[0].mxu0
        %v751 = vadd.f32 0.0, %v750
        %v752 = vpop.f32.mrb[0].mxu0
        %753 = vmatprep.mubr.bf16.mxu0 0
        %754 = vmatmul.mubr.bf16.gmra.mrb[0].mxu0 %v614
        %v755 = vpop.f32.mrb[0].mxu0
        %v756 = vadd.f32 0.0, %v755
        %v757 = vpop.f32.mrb[0].mxu0
        %v758 = vpop.f32.mrb[0].mxu0
        %v759 = vadd.f32 0.0, %v758
        %v760 = vpop.f32.mrb[0].mxu0
        %761 = vmatprep.mubr.bf16.mxu0 0
        %762 = vmatmul.mubr.bf16.gmra.mrb[0].mxu0 %v617
        %v763 = vpop.f32.mrb[0].mxu0
        %v764 = vadd.f32 0.0, %v763
        %v765 = vpop.f32.mrb[0].mxu0
        %v766 = vpop.f32.mrb[0].mxu0
        %v767 = vadd.f32 0.0, %v766
        %v768 = vpop.f32.mrb[0].mxu0
        %769 = vmatprep.mubr.bf16.mxu0 0
        %770 = vmatmul.mubr.bf16.gmra.mrb[0].mxu0 %v620
        %v771 = vpop.f32.mrb[0].mxu0
        %v772 = vadd.f32 0.0, %v771
        %v773 = vpop.f32.mrb[0].mxu0
        %v774 = vpop.f32.mrb[0].mxu0
        %v775 = vadd.f32 0.0, %v774
        %v776 = vpop.f32.mrb[0].mxu0
        %777 = vmatprep.mubr.bf16.mxu0 0
        %778 = vmatmul.mubr.bf16.gmra.mrb[0].mxu0 %v623
        %v779 = vpop.f32.mrb[0].mxu0
        %v780 = vadd.f32 0.0, %v779
        %v781 = vpop.f32.mrb[0].mxu0
        %v782 = vpop.f32.mrb[0].mxu0
        %v783 = vadd.f32 0.0, %v782
        %v784 = vpop.f32.mrb[0].mxu0
        %785 = vdwg.mxu0
        %v790 = vunpack.c.l.b16 %v503
        %v791 = vunpack.c.l.b16 %v504
        %v792 = vunpack.c.l.b16 %v505
        %v793 = vunpack.c.l.b16 %v506
        %v794 = vpack.c.b16 %v791, %v790
        %v795 = vpack.c.b16 %v793, %v792
        %v799 = vsel %vm576, %v487, 0
        %v802 = vsel %vm576, %v488, 0
        %v805 = vsel %vm576, %v489, 0
        %v808 = vsel %vm576, %v490, 0
        %v811 = vsel %vm576, %v491, 0
        %v814 = vsel %vm576, %v492, 0
        %v817 = vsel %vm576, %v493, 0
        %v820 = vsel %vm576, %v494, 0
        %v823 = vsel %vm576, %v495, 0
        %v826 = vsel %vm576, %v496, 0
        %v829 = vsel %vm576, %v497, 0
        %v832 = vsel %vm576, %v498, 0
        %v835 = vsel %vm576, %v499, 0
        %v838 = vsel %vm576, %v500, 0
        %v841 = vsel %vm576, %v501, 0
        %v844 = vsel %vm576, %v502, 0
        %846 = vmatprep.subr.bf16.mxu0 0
        %847 = vmatpush1.bf16.msra.mxu0 %v794
        %848 = vmatprep.subr.bf16.mxu0 0
        %849 = vmatpush1.bf16.msra.mxu0 %v795
        %850 = vmatprep.subr.bf16.mxu0 0
        %851 = vmatpush1.bf16.msra.mxu0 0
        %852 = vmatprep.subr.bf16.mxu0 0
        %853 = vmatpush1.bf16.msra.mxu0 0
        %854 = vmatprep.subr.bf16.mxu0 0
        %855 = vmatpush1.bf16.msra.mxu0 0
        %856 = vmatprep.subr.bf16.mxu0 0
        %857 = vmatpush1.bf16.msra.mxu0 0
        %858 = vmatprep.subr.bf16.mxu0 0
        %859 = vmatpush1.bf16.msra.mxu0 0
        %860 = vmatprep.subr.bf16.mxu0 0
        %861 = vmatpush1.bf16.msra.mxu0 0
        %862 = vmatprep.subr.bf16.mxu0 0
        %863 = vmatpush1.bf16.msra.mxu0 0
        %864 = vmatprep.subr.bf16.mxu0 0
        %865 = vmatpush1.bf16.msra.mxu0 0
        %866 = vmatprep.subr.bf16.mxu0 0
        %867 = vmatpush1.bf16.msra.mxu0 0
        %868 = vmatprep.subr.bf16.mxu0 0
        %869 = vmatpush1.bf16.msra.mxu0 0
        %870 = vmatprep.subr.bf16.mxu0 0
        %871 = vmatpush1.bf16.msra.mxu0 0
        %872 = vmatprep.subr.bf16.mxu0 0
        %873 = vmatpush1.bf16.msra.mxu0 0
        %874 = vmatprep.subr.bf16.mxu0 0
        %875 = vmatpush1.bf16.msra.mxu0 0
        %876 = vmatprep.subr.bf16.mxu0 0
        %877 = vmatpush1.bf16.msra.mxu0 0
        %878 = vmatprep.mubr.bf16.mxu0 0
        %879 = vmatmul.mubr.bf16.gmra.mrb[0].mxu0 %v799
        %v880 = vpop.f32.mrb[0].mxu0
        %v881 = vadd.f32 %v660, %v880
        %v882 = vpop.f32.mrb[0].mxu0
        %v883 = vpop.f32.mrb[0].mxu0
        %v884 = vadd.f32 %v663, %v883
        %v885 = vpop.f32.mrb[0].mxu0
        %886 = vmatprep.mubr.bf16.mxu0 0
        %887 = vmatmul.mubr.bf16.gmra.mrb[0].mxu0 %v802
        %v888 = vpop.f32.mrb[0].mxu0
        %v889 = vadd.f32 %v668, %v888
        %v890 = vpop.f32.mrb[0].mxu0
        %v891 = vpop.f32.mrb[0].mxu0
        %v892 = vadd.f32 %v671, %v891
        %v893 = vpop.f32.mrb[0].mxu0
        %894 = vmatprep.mubr.bf16.mxu0 0
        %895 = vmatmul.mubr.bf16.gmra.mrb[0].mxu0 %v805
        %v896 = vpop.f32.mrb[0].mxu0
        %v897 = vadd.f32 %v676, %v896
        %v898 = vpop.f32.mrb[0].mxu0
        %v899 = vpop.f32.mrb[0].mxu0
        %v900 = vadd.f32 %v679, %v899
        %v901 = vpop.f32.mrb[0].mxu0
        %902 = vmatprep.mubr.bf16.mxu0 0
        %903 = vmatmul.mubr.bf16.gmra.mrb[0].mxu0 %v808
        %v904 = vpop.f32.mrb[0].mxu0
        %v905 = vadd.f32 %v684, %v904
        %v906 = vpop.f32.mrb[0].mxu0
        %v907 = vpop.f32.mrb[0].mxu0
        %v908 = vadd.f32 %v687, %v907
        %v909 = vpop.f32.mrb[0].mxu0
        %910 = vmatprep.mubr.bf16.mxu0 0
        %911 = vmatmul.mubr.bf16.gmra.mrb[0].mxu0 %v811
        %v912 = vpop.f32.mrb[0].mxu0
        %v913 = vadd.f32 %v692, %v912
        %v914 = vpop.f32.mrb[0].mxu0
        %v915 = vpop.f32.mrb[0].mxu0
        %v916 = vadd.f32 %v695, %v915
        %v917 = vpop.f32.mrb[0].mxu0
        %918 = vmatprep.mubr.bf16.mxu0 0
        %919 = vmatmul.mubr.bf16.gmra.mrb[0].mxu0 %v814
        %v920 = vpop.f32.mrb[0].mxu0
        %v921 = vadd.f32 %v700, %v920
        %v922 = vpop.f32.mrb[0].mxu0
        %v923 = vpop.f32.mrb[0].mxu0
        %v924 = vadd.f32 %v703, %v923
        %v925 = vpop.f32.mrb[0].mxu0
        %926 = vmatprep.mubr.bf16.mxu0 0
        %927 = vmatmul.mubr.bf16.gmra.mrb[0].mxu0 %v817
        %v928 = vpop.f32.mrb[0].mxu0
        %v929 = vadd.f32 %v708, %v928
        %v930 = vpop.f32.mrb[0].mxu0
        %v931 = vpop.f32.mrb[0].mxu0
        %v932 = vadd.f32 %v711, %v931
        %v933 = vpop.f32.mrb[0].mxu0
        %934 = vmatprep.mubr.bf16.mxu0 0
        %935 = vmatmul.mubr.bf16.gmra.mrb[0].mxu0 %v820
        %v936 = vpop.f32.mrb[0].mxu0
        %v937 = vadd.f32 %v716, %v936
        %v938 = vpop.f32.mrb[0].mxu0
        %v939 = vpop.f32.mrb[0].mxu0
        %v940 = vadd.f32 %v719, %v939
        %v941 = vpop.f32.mrb[0].mxu0
        %942 = vmatprep.mubr.bf16.mxu0 0
        %943 = vmatmul.mubr.bf16.gmra.mrb[0].mxu0 %v823
        %v944 = vpop.f32.mrb[0].mxu0
        %v945 = vadd.f32 %v724, %v944
        %v946 = vpop.f32.mrb[0].mxu0
        %v947 = vpop.f32.mrb[0].mxu0
        %v948 = vadd.f32 %v727, %v947
        %v949 = vpop.f32.mrb[0].mxu0
        %950 = vmatprep.mubr.bf16.mxu0 0
        %951 = vmatmul.mubr.bf16.gmra.mrb[0].mxu0 %v826
        %v952 = vpop.f32.mrb[0].mxu0
        %v953 = vadd.f32 %v732, %v952
        %v954 = vpop.f32.mrb[0].mxu0
        %v955 = vpop.f32.mrb[0].mxu0
        %v956 = vadd.f32 %v735, %v955
        %v957 = vpop.f32.mrb[0].mxu0
        %958 = vmatprep.mubr.bf16.mxu0 0
        %959 = vmatmul.mubr.bf16.gmra.mrb[0].mxu0 %v829
        %v960 = vpop.f32.mrb[0].mxu0
        %v961 = vadd.f32 %v740, %v960
        %v962 = vpop.f32.mrb[0].mxu0
        %v963 = vpop.f32.mrb[0].mxu0
        %v964 = vadd.f32 %v743, %v963
        %v965 = vpop.f32.mrb[0].mxu0
        %966 = vmatprep.mubr.bf16.mxu0 0
        %967 = vmatmul.mubr.bf16.gmra.mrb[0].mxu0 %v832
        %v968 = vpop.f32.mrb[0].mxu0
        %v969 = vadd.f32 %v748, %v968
        %v970 = vpop.f32.mrb[0].mxu0
        %v971 = vpop.f32.mrb[0].mxu0
        %v972 = vadd.f32 %v751, %v971
        %v973 = vpop.f32.mrb[0].mxu0
        %974 = vmatprep.mubr.bf16.mxu0 0
        %975 = vmatmul.mubr.bf16.gmra.mrb[0].mxu0 %v835
        %v976 = vpop.f32.mrb[0].mxu0
        %v977 = vadd.f32 %v756, %v976
        %v978 = vpop.f32.mrb[0].mxu0
        %v979 = vpop.f32.mrb[0].mxu0
        %v980 = vadd.f32 %v759, %v979
        %v981 = vpop.f32.mrb[0].mxu0
        %982 = vmatprep.mubr.bf16.mxu0 0
        %983 = vmatmul.mubr.bf16.gmra.mrb[0].mxu0 %v838
        %v984 = vpop.f32.mrb[0].mxu0
        %v985 = vadd.f32 %v764, %v984
        %v986 = vpop.f32.mrb[0].mxu0
        %v987 = vpop.f32.mrb[0].mxu0
        %v988 = vadd.f32 %v767, %v987
        %v989 = vpop.f32.mrb[0].mxu0
        %990 = vmatprep.mubr.bf16.mxu0 0
        %991 = vmatmul.mubr.bf16.gmra.mrb[0].mxu0 %v841
        %v992 = vpop.f32.mrb[0].mxu0
        %v993 = vadd.f32 %v772, %v992
        %v994 = vpop.f32.mrb[0].mxu0
        %v995 = vpop.f32.mrb[0].mxu0
        %v996 = vadd.f32 %v775, %v995
        %v997 = vpop.f32.mrb[0].mxu0
        %998 = vmatprep.mubr.bf16.mxu0 0
        %999 = vmatmul.mubr.bf16.gmra.mrb[0].mxu0 %v844
        %v1000 = vpop.f32.mrb[0].mxu0
        %v1001 = vadd.f32 %v780, %v1000
        %v1002 = vpop.f32.mrb[0].mxu0
        %v1003 = vpop.f32.mrb[0].mxu0
        %v1004 = vadd.f32 %v783, %v1003
        %v1005 = vpop.f32.mrb[0].mxu0
        %1006 = vdwg.mxu0
        %s1007 = scalar_lea.vmem %s2, 16
        %v1008 = vld [vmem:[%s1007] sm:$0xf]
        %v1009 = vld [vmem:[%s1007 + $0x4] sm:$0xf]
        %v1010 = vld [vmem:[%s1007 + $0x8] sm:$0xf]
        %v1011 = vld [vmem:[%s1007 + $0xc] sm:$0xf]
        %v1016 = vunpack.c.l.b16 %v1008
        %v1017 = vunpack.c.l.b16 %v1009
        %v1018 = vunpack.c.l.b16 %v1010
        %v1019 = vunpack.c.l.b16 %v1011
        %v1020 = vpack.c.b16 %v1017, %v1016
        %v1021 = vpack.c.b16 %v1019, %v1018
        %1024 = vmatprep.subr.bf16.mxu0 0
        %1025 = vmatpush1.bf16.msra.mxu0 %v1020
        %1026 = vmatprep.subr.bf16.mxu0 0
        %1027 = vmatpush1.bf16.msra.mxu0 %v1021
        %1028 = vmatprep.subr.bf16.mxu0 0
        %1029 = vmatpush1.bf16.msra.mxu0 0
        %1030 = vmatprep.subr.bf16.mxu0 0
        %1031 = vmatpush1.bf16.msra.mxu0 0
        %1032 = vmatprep.subr.bf16.mxu0 0
        %1033 = vmatpush1.bf16.msra.mxu0 0
        %1034 = vmatprep.subr.bf16.mxu0 0
        %1035 = vmatpush1.bf16.msra.mxu0 0
        %1036 = vmatprep.subr.bf16.mxu0 0
        %1037 = vmatpush1.bf16.msra.mxu0 0
        %1038 = vmatprep.subr.bf16.mxu0 0
        %1039 = vmatpush1.bf16.msra.mxu0 0
        %1040 = vmatprep.subr.bf16.mxu0 0
        %1041 = vmatpush1.bf16.msra.mxu0 0
        %1042 = vmatprep.subr.bf16.mxu0 0
        %1043 = vmatpush1.bf16.msra.mxu0 0
        %1044 = vmatprep.subr.bf16.mxu0 0
        %1045 = vmatpush1.bf16.msra.mxu0 0
        %1046 = vmatprep.subr.bf16.mxu0 0
        %1047 = vmatpush1.bf16.msra.mxu0 0
        %1048 = vmatprep.subr.bf16.mxu0 0
        %1049 = vmatpush1.bf16.msra.mxu0 0
        %1050 = vmatprep.subr.bf16.mxu0 0
        %1051 = vmatpush1.bf16.msra.mxu0 0
        %1052 = vmatprep.subr.bf16.mxu0 0
        %1053 = vmatpush1.bf16.msra.mxu0 0
        %1054 = vmatprep.subr.bf16.mxu0 0
        %1055 = vmatpush1.bf16.msra.mxu0 0
        %1056 = vmatprep.mubr.bf16.mxu0 0
        %1057 = vmatmul.mubr.bf16.gmra.mrb[0].mxu0 %v578
        %v1058 = vpop.f32.mrb[0].mxu0
        %v1059 = vadd.f32 0.0, %v1058
        %v1060 = vpop.f32.mrb[0].mxu0
        %v1061 = vpop.f32.mrb[0].mxu0
        %v1062 = vadd.f32 0.0, %v1061
        %v1063 = vpop.f32.mrb[0].mxu0
        %1064 = vmatprep.mubr.bf16.mxu0 0
        %1065 = vmatmul.mubr.bf16.gmra.mrb[0].mxu0 %v581
        %v1066 = vpop.f32.mrb[0].mxu0
        %v1067 = vadd.f32 0.0, %v1066
        %v1068 = vpop.f32.mrb[0].mxu0
        %v1069 = vpop.f32.mrb[0].mxu0
        %v1070 = vadd.f32 0.0, %v1069
        %v1071 = vpop.f32.mrb[0].mxu0
        %1072 = vmatprep.mubr.bf16.mxu0 0
        %1073 = vmatmul.mubr.bf16.gmra.mrb[0].mxu0 %v584
        %v1074 = vpop.f32.mrb[0].mxu0
        %v1075 = vadd.f32 0.0, %v1074
        %v1076 = vpop.f32.mrb[0].mxu0
        %v1077 = vpop.f32.mrb[0].mxu0
        %v1078 = vadd.f32 0.0, %v1077
        %v1079 = vpop.f32.mrb[0].mxu0
        %1080 = vmatprep.mubr.bf16.mxu0 0
        %1081 = vmatmul.mubr.bf16.gmra.mrb[0].mxu0 %v587
        %v1082 = vpop.f32.mrb[0].mxu0
        %v1083 = vadd.f32 0.0, %v1082
        %v1084 = vpop.f32.mrb[0].mxu0
        %v1085 = vpop.f32.mrb[0].mxu0
        %v1086 = vadd.f32 0.0, %v1085
        %v1087 = vpop.f32.mrb[0].mxu0
        %1088 = vmatprep.mubr.bf16.mxu0 0
        %1089 = vmatmul.mubr.bf16.gmra.mrb[0].mxu0 %v590
        %v1090 = vpop.f32.mrb[0].mxu0
        %v1091 = vadd.f32 0.0, %v1090
        %v1092 = vpop.f32.mrb[0].mxu0
        %v1093 = vpop.f32.mrb[0].mxu0
        %v1094 = vadd.f32 0.0, %v1093
        %v1095 = vpop.f32.mrb[0].mxu0
        %1096 = vmatprep.mubr.bf16.mxu0 0
        %1097 = vmatmul.mubr.bf16.gmra.mrb[0].mxu0 %v593
        %v1098 = vpop.f32.mrb[0].mxu0
        %v1099 = vadd.f32 0.0, %v1098
        %v1100 = vpop.f32.mrb[0].mxu0
        %v1101 = vpop.f32.mrb[0].mxu0
        %v1102 = vadd.f32 0.0, %v1101
        %v1103 = vpop.f32.mrb[0].mxu0
        %1104 = vmatprep.mubr.bf16.mxu0 0
        %1105 = vmatmul.mubr.bf16.gmra.mrb[0].mxu0 %v596
        %v1106 = vpop.f32.mrb[0].mxu0
        %v1107 = vadd.f32 0.0, %v1106
        %v1108 = vpop.f32.mrb[0].mxu0
        %v1109 = vpop.f32.mrb[0].mxu0
        %v1110 = vadd.f32 0.0, %v1109
        %v1111 = vpop.f32.mrb[0].mxu0
        %1112 = vmatprep.mubr.bf16.mxu0 0
        %1113 = vmatmul.mubr.bf16.gmra.mrb[0].mxu0 %v599
        %v1114 = vpop.f32.mrb[0].mxu0
        %v1115 = vadd.f32 0.0, %v1114
        %v1116 = vpop.f32.mrb[0].mxu0
        %v1117 = vpop.f32.mrb[0].mxu0
        %v1118 = vadd.f32 0.0, %v1117
        %v1119 = vpop.f32.mrb[0].mxu0
        %1120 = vmatprep.mubr.bf16.mxu0 0
        %1121 = vmatmul.mubr.bf16.gmra.mrb[0].mxu0 %v602
        %v1122 = vpop.f32.mrb[0].mxu0
        %v1123 = vadd.f32 0.0, %v1122
        %v1124 = vpop.f32.mrb[0].mxu0
        %v1125 = vpop.f32.mrb[0].mxu0
        %v1126 = vadd.f32 0.0, %v1125
        %v1127 = vpop.f32.mrb[0].mxu0
        %1128 = vmatprep.mubr.bf16.mxu0 0
        %1129 = vmatmul.mubr.bf16.gmra.mrb[0].mxu0 %v605
        %v1130 = vpop.f32.mrb[0].mxu0
        %v1131 = vadd.f32 0.0, %v1130
        %v1132 = vpop.f32.mrb[0].mxu0
        %v1133 = vpop.f32.mrb[0].mxu0
        %v1134 = vadd.f32 0.0, %v1133
        %v1135 = vpop.f32.mrb[0].mxu0
        %1136 = vmatprep.mubr.bf16.mxu0 0
        %1137 = vmatmul.mubr.bf16.gmra.mrb[0].mxu0 %v608
        %v1138 = vpop.f32.mrb[0].mxu0
        %v1139 = vadd.f32 0.0, %v1138
        %v1140 = vpop.f32.mrb[0].mxu0
        %v1141 = vpop.f32.mrb[0].mxu0
        %v1142 = vadd.f32 0.0, %v1141
        %v1143 = vpop.f32.mrb[0].mxu0
        %1144 = vmatprep.mubr.bf16.mxu0 0
        %1145 = vmatmul.mubr.bf16.gmra.mrb[0].mxu0 %v611
        %v1146 = vpop.f32.mrb[0].mxu0
        %v1147 = vadd.f32 0.0, %v1146
        %v1148 = vpop.f32.mrb[0].mxu0
        %v1149 = vpop.f32.mrb[0].mxu0
        %v1150 = vadd.f32 0.0, %v1149
        %v1151 = vpop.f32.mrb[0].mxu0
        %1152 = vmatprep.mubr.bf16.mxu0 0
        %1153 = vmatmul.mubr.bf16.gmra.mrb[0].mxu0 %v614
        %v1154 = vpop.f32.mrb[0].mxu0
        %v1155 = vadd.f32 0.0, %v1154
        %v1156 = vpop.f32.mrb[0].mxu0
        %v1157 = vpop.f32.mrb[0].mxu0
        %v1158 = vadd.f32 0.0, %v1157
        %v1159 = vpop.f32.mrb[0].mxu0
        %1160 = vmatprep.mubr.bf16.mxu0 0
        %1161 = vmatmul.mubr.bf16.gmra.mrb[0].mxu0 %v617
        %v1162 = vpop.f32.mrb[0].mxu0
        %v1163 = vadd.f32 0.0, %v1162
        %v1164 = vpop.f32.mrb[0].mxu0
        %v1165 = vpop.f32.mrb[0].mxu0
        %v1166 = vadd.f32 0.0, %v1165
        %v1167 = vpop.f32.mrb[0].mxu0
        %1168 = vmatprep.mubr.bf16.mxu0 0
        %1169 = vmatmul.mubr.bf16.gmra.mrb[0].mxu0 %v620
        %v1170 = vpop.f32.mrb[0].mxu0
        %v1171 = vadd.f32 0.0, %v1170
        %v1172 = vpop.f32.mrb[0].mxu0
        %v1173 = vpop.f32.mrb[0].mxu0
        %v1174 = vadd.f32 0.0, %v1173
        %v1175 = vpop.f32.mrb[0].mxu0
        %1176 = vmatprep.mubr.bf16.mxu0 0
        %1177 = vmatmul.mubr.bf16.gmra.mrb[0].mxu0 %v623
        %v1178 = vpop.f32.mrb[0].mxu0
        %v1179 = vadd.f32 0.0, %v1178
        %v1180 = vpop.f32.mrb[0].mxu0
        %v1181 = vpop.f32.mrb[0].mxu0
        %v1182 = vadd.f32 0.0, %v1181
        %v1183 = vpop.f32.mrb[0].mxu0
        %1184 = vdwg.mxu0
        %v1189 = vunpack.c.l.b16 %v507
        %v1190 = vunpack.c.l.b16 %v508
        %v1191 = vunpack.c.l.b16 %v509
        %v1192 = vunpack.c.l.b16 %v510
        %v1193 = vpack.c.b16 %v1190, %v1189
        %v1194 = vpack.c.b16 %v1192, %v1191
        %1197 = vmatprep.subr.bf16.mxu0 0
        %1198 = vmatpush1.bf16.msra.mxu0 %v1193
        %1199 = vmatprep.subr.bf16.mxu0 0
        %1200 = vmatpush1.bf16.msra.mxu0 %v1194
        %1201 = vmatprep.subr.bf16.mxu0 0
        %1202 = vmatpush1.bf16.msra.mxu0 0
        %1203 = vmatprep.subr.bf16.mxu0 0
        %1204 = vmatpush1.bf16.msra.mxu0 0
        %1205 = vmatprep.subr.bf16.mxu0 0
        %1206 = vmatpush1.bf16.msra.mxu0 0
        %1207 = vmatprep.subr.bf16.mxu0 0
        %1208 = vmatpush1.bf16.msra.mxu0 0
        %1209 = vmatprep.subr.bf16.mxu0 0
        %1210 = vmatpush1.bf16.msra.mxu0 0
        %1211 = vmatprep.subr.bf16.mxu0 0
        %1212 = vmatpush1.bf16.msra.mxu0 0
        %1213 = vmatprep.subr.bf16.mxu0 0
        %1214 = vmatpush1.bf16.msra.mxu0 0
        %1215 = vmatprep.subr.bf16.mxu0 0
        %1216 = vmatpush1.bf16.msra.mxu0 0
        %1217 = vmatprep.subr.bf16.mxu0 0
        %1218 = vmatpush1.bf16.msra.mxu0 0
        %1219 = vmatprep.subr.bf16.mxu0 0
        %1220 = vmatpush1.bf16.msra.mxu0 0
        %1221 = vmatprep.subr.bf16.mxu0 0
        %1222 = vmatpush1.bf16.msra.mxu0 0
        %1223 = vmatprep.subr.bf16.mxu0 0
        %1224 = vmatpush1.bf16.msra.mxu0 0
        %1225 = vmatprep.subr.bf16.mxu0 0
        %1226 = vmatpush1.bf16.msra.mxu0 0
        %1227 = vmatprep.subr.bf16.mxu0 0
        %1228 = vmatpush1.bf16.msra.mxu0 0
        %1229 = vmatprep.mubr.bf16.mxu0 0
        %1230 = vmatmul.mubr.bf16.gmra.mrb[0].mxu0 %v799
        %v1231 = vpop.f32.mrb[0].mxu0
        %v1232 = vadd.f32 %v1059, %v1231
        %v1233 = vpop.f32.mrb[0].mxu0
        %v1234 = vpop.f32.mrb[0].mxu0
        %v1235 = vadd.f32 %v1062, %v1234
        %v1236 = vpop.f32.mrb[0].mxu0
        %1237 = vmatprep.mubr.bf16.mxu0 0
        %1238 = vmatmul.mubr.bf16.gmra.mrb[0].mxu0 %v802
        %v1239 = vpop.f32.mrb[0].mxu0
        %v1240 = vadd.f32 %v1067, %v1239
        %v1241 = vpop.f32.mrb[0].mxu0
        %v1242 = vpop.f32.mrb[0].mxu0
        %v1243 = vadd.f32 %v1070, %v1242
        %v1244 = vpop.f32.mrb[0].mxu0
        %1245 = vmatprep.mubr.bf16.mxu0 0
        %1246 = vmatmul.mubr.bf16.gmra.mrb[0].mxu0 %v805
        %v1247 = vpop.f32.mrb[0].mxu0
        %v1248 = vadd.f32 %v1075, %v1247
        %v1249 = vpop.f32.mrb[0].mxu0
        %v1250 = vpop.f32.mrb[0].mxu0
        %v1251 = vadd.f32 %v1078, %v1250
        %v1252 = vpop.f32.mrb[0].mxu0
        %1253 = vmatprep.mubr.bf16.mxu0 0
        %1254 = vmatmul.mubr.bf16.gmra.mrb[0].mxu0 %v808
        %v1255 = vpop.f32.mrb[0].mxu0
        %v1256 = vadd.f32 %v1083, %v1255
        %v1257 = vpop.f32.mrb[0].mxu0
        %v1258 = vpop.f32.mrb[0].mxu0
        %v1259 = vadd.f32 %v1086, %v1258
        %v1260 = vpop.f32.mrb[0].mxu0
        %1261 = vmatprep.mubr.bf16.mxu0 0
        %1262 = vmatmul.mubr.bf16.gmra.mrb[0].mxu0 %v811
        %v1263 = vpop.f32.mrb[0].mxu0
        %v1264 = vadd.f32 %v1091, %v1263
        %v1265 = vpop.f32.mrb[0].mxu0
        %v1266 = vpop.f32.mrb[0].mxu0
        %v1267 = vadd.f32 %v1094, %v1266
        %v1268 = vpop.f32.mrb[0].mxu0
        %1269 = vmatprep.mubr.bf16.mxu0 0
        %1270 = vmatmul.mubr.bf16.gmra.mrb[0].mxu0 %v814
        %v1271 = vpop.f32.mrb[0].mxu0
        %v1272 = vadd.f32 %v1099, %v1271
        %v1273 = vpop.f32.mrb[0].mxu0
        %v1274 = vpop.f32.mrb[0].mxu0
        %v1275 = vadd.f32 %v1102, %v1274
        %v1276 = vpop.f32.mrb[0].mxu0
        %1277 = vmatprep.mubr.bf16.mxu0 0
        %1278 = vmatmul.mubr.bf16.gmra.mrb[0].mxu0 %v817
        %v1279 = vpop.f32.mrb[0].mxu0
        %v1280 = vadd.f32 %v1107, %v1279
        %v1281 = vpop.f32.mrb[0].mxu0
        %v1282 = vpop.f32.mrb[0].mxu0
        %v1283 = vadd.f32 %v1110, %v1282
        %v1284 = vpop.f32.mrb[0].mxu0
        %1285 = vmatprep.mubr.bf16.mxu0 0
        %1286 = vmatmul.mubr.bf16.gmra.mrb[0].mxu0 %v820
        %v1287 = vpop.f32.mrb[0].mxu0
        %v1288 = vadd.f32 %v1115, %v1287
        %v1289 = vpop.f32.mrb[0].mxu0
        %v1290 = vpop.f32.mrb[0].mxu0
        %v1291 = vadd.f32 %v1118, %v1290
        %v1292 = vpop.f32.mrb[0].mxu0
        %1293 = vmatprep.mubr.bf16.mxu0 0
        %1294 = vmatmul.mubr.bf16.gmra.mrb[0].mxu0 %v823
        %v1295 = vpop.f32.mrb[0].mxu0
        %v1296 = vadd.f32 %v1123, %v1295
        %v1297 = vpop.f32.mrb[0].mxu0
        %v1298 = vpop.f32.mrb[0].mxu0
        %v1299 = vadd.f32 %v1126, %v1298
        %v1300 = vpop.f32.mrb[0].mxu0
        %1301 = vmatprep.mubr.bf16.mxu0 0
        %1302 = vmatmul.mubr.bf16.gmra.mrb[0].mxu0 %v826
        %v1303 = vpop.f32.mrb[0].mxu0
        %v1304 = vadd.f32 %v1131, %v1303
        %v1305 = vpop.f32.mrb[0].mxu0
        %v1306 = vpop.f32.mrb[0].mxu0
        %v1307 = vadd.f32 %v1134, %v1306
        %v1308 = vpop.f32.mrb[0].mxu0
        %1309 = vmatprep.mubr.bf16.mxu0 0
        %1310 = vmatmul.mubr.bf16.gmra.mrb[0].mxu0 %v829
        %v1311 = vpop.f32.mrb[0].mxu0
        %v1312 = vadd.f32 %v1139, %v1311
        %v1313 = vpop.f32.mrb[0].mxu0
        %v1314 = vpop.f32.mrb[0].mxu0
        %v1315 = vadd.f32 %v1142, %v1314
        %v1316 = vpop.f32.mrb[0].mxu0
        %1317 = vmatprep.mubr.bf16.mxu0 0
        %1318 = vmatmul.mubr.bf16.gmra.mrb[0].mxu0 %v832
        %v1319 = vpop.f32.mrb[0].mxu0
        %v1320 = vadd.f32 %v1147, %v1319
        %v1321 = vpop.f32.mrb[0].mxu0
        %v1322 = vpop.f32.mrb[0].mxu0
        %v1323 = vadd.f32 %v1150, %v1322
        %v1324 = vpop.f32.mrb[0].mxu0
        %1325 = vmatprep.mubr.bf16.mxu0 0
        %1326 = vmatmul.mubr.bf16.gmra.mrb[0].mxu0 %v835
        %v1327 = vpop.f32.mrb[0].mxu0
        %v1328 = vadd.f32 %v1155, %v1327
        %v1329 = vpop.f32.mrb[0].mxu0
        %v1330 = vpop.f32.mrb[0].mxu0
        %v1331 = vadd.f32 %v1158, %v1330
        %v1332 = vpop.f32.mrb[0].mxu0
        %1333 = vmatprep.mubr.bf16.mxu0 0
        %1334 = vmatmul.mubr.bf16.gmra.mrb[0].mxu0 %v838
        %v1335 = vpop.f32.mrb[0].mxu0
        %v1336 = vadd.f32 %v1163, %v1335
        %v1337 = vpop.f32.mrb[0].mxu0
        %v1338 = vpop.f32.mrb[0].mxu0
        %v1339 = vadd.f32 %v1166, %v1338
        %v1340 = vpop.f32.mrb[0].mxu0
        %1341 = vmatprep.mubr.bf16.mxu0 0
        %1342 = vmatmul.mubr.bf16.gmra.mrb[0].mxu0 %v841
        %v1343 = vpop.f32.mrb[0].mxu0
        %v1344 = vadd.f32 %v1171, %v1343
        %v1345 = vpop.f32.mrb[0].mxu0
        %v1346 = vpop.f32.mrb[0].mxu0
        %v1347 = vadd.f32 %v1174, %v1346
        %v1348 = vpop.f32.mrb[0].mxu0
        %1349 = vmatprep.mubr.bf16.mxu0 0
        %1350 = vmatmul.mubr.bf16.gmra.mrb[0].mxu0 %v844
        %v1351 = vpop.f32.mrb[0].mxu0
        %v1352 = vadd.f32 %v1179, %v1351
        %v1353 = vpop.f32.mrb[0].mxu0
        %v1354 = vpop.f32.mrb[0].mxu0
        %v1355 = vadd.f32 %v1182, %v1354
        %v1356 = vpop.f32.mrb[0].mxu0
        %1357 = vdwg.mxu0
        %v1358 = vld [vmem:[%s452 + $0x2] sm:$0xff]
        %v1359 = vld [vmem:[%s452 + $0xa] sm:$0xff]
        %v1360 = vld [vmem:[%s452 + $0x12] sm:$0xff]
        %v1361 = vld [vmem:[%s452 + $0x1a] sm:$0xff]
        %v1362 = vld [vmem:[%s452 + $0x22] sm:$0xff]
        %v1363 = vld [vmem:[%s452 + $0x2a] sm:$0xff]
        %v1364 = vld [vmem:[%s452 + $0x32] sm:$0xff]
        %v1365 = vld [vmem:[%s452 + $0x3a] sm:$0xff]
        %v1366 = vld [vmem:[%s452 + $0x42] sm:$0xff]
        %v1367 = vld [vmem:[%s452 + $0x4a] sm:$0xff]
        %v1368 = vld [vmem:[%s452 + $0x52] sm:$0xff]
        %v1369 = vld [vmem:[%s452 + $0x5a] sm:$0xff]
        %v1370 = vld [vmem:[%s452 + $0x62] sm:$0xff]
        %v1371 = vld [vmem:[%s452 + $0x6a] sm:$0xff]
        %v1372 = vld [vmem:[%s452 + $0x72] sm:$0xff]
        %v1373 = vld [vmem:[%s452 + $0x7a] sm:$0xff]
        %v1374 = vld [vmem:[%s452 + $0x82] sm:$0xff]
        %v1375 = vld [vmem:[%s452 + $0x8a] sm:$0xff]
        %v1376 = vld [vmem:[%s452 + $0x92] sm:$0xff]
        %v1377 = vld [vmem:[%s452 + $0x9a] sm:$0xff]
        %v1378 = vld [vmem:[%s452 + $0xa2] sm:$0xff]
        %v1379 = vld [vmem:[%s452 + $0xaa] sm:$0xff]
        %v1380 = vld [vmem:[%s452 + $0xb2] sm:$0xff]
        %v1381 = vld [vmem:[%s452 + $0xba] sm:$0xff]
        %v1382 = vld [vmem:[%s452 + $0xc2] sm:$0xff]
        %v1383 = vld [vmem:[%s452 + $0xca] sm:$0xff]
        %v1384 = vld [vmem:[%s452 + $0xd2] sm:$0xff]
        %v1385 = vld [vmem:[%s452 + $0xda] sm:$0xff]
        %v1386 = vld [vmem:[%s452 + $0xe2] sm:$0xff]
        %v1387 = vld [vmem:[%s452 + $0xea] sm:$0xff]
        %v1388 = vld [vmem:[%s452 + $0xf2] sm:$0xff]
        %v1389 = vld [vmem:[%s452 + $0xfa] sm:$0xf]
        %v1390 = vpack.c.bf16 %v1359, %v1358
        %v1391 = vpack.c.bf16 %v1361, %v1360
        %v1392 = vpack.c.bf16 %v1363, %v1362
        %v1393 = vpack.c.bf16 %v1365, %v1364
        %v1394 = vpack.c.bf16 %v1367, %v1366
        %v1395 = vpack.c.bf16 %v1369, %v1368
        %v1396 = vpack.c.bf16 %v1371, %v1370
        %v1397 = vpack.c.bf16 %v1373, %v1372
        %v1398 = vpack.c.bf16 %v1375, %v1374
        %v1399 = vpack.c.bf16 %v1377, %v1376
        %v1400 = vpack.c.bf16 %v1379, %v1378
        %v1401 = vpack.c.bf16 %v1381, %v1380
        %v1402 = vpack.c.bf16 %v1383, %v1382
        %v1403 = vpack.c.bf16 %v1385, %v1384
        %v1404 = vpack.c.bf16 %v1387, %v1386
        %v1405 = vpack.c.bf16 %v1389, %v1388
        %s1406 = scalar_lea.vmem %s1, 32
        %v1407 = vld [vmem:[%s1406] sm:$0xf]
        %v1408 = vld [vmem:[%s1406 + $0x4] sm:$0xf]
        %v1409 = vld [vmem:[%s1406 + $0x8] sm:$0xf]
        %v1410 = vld [vmem:[%s1406 + $0xc] sm:$0xf]
        %v1415 = vunpack.c.l.b16 %v1407
        %v1416 = vunpack.c.l.b16 %v1408
        %v1417 = vunpack.c.l.b16 %v1409
        %v1418 = vunpack.c.l.b16 %v1410
        %v1419 = vpack.c.b16 %v1416, %v1415
        %v1420 = vpack.c.b16 %v1418, %v1417
        %v1424 = vsel %vm576, %v1390, 0
        %v1427 = vsel %vm576, %v1391, 0
        %v1430 = vsel %vm576, %v1392, 0
        %v1433 = vsel %vm576, %v1393, 0
        %v1436 = vsel %vm576, %v1394, 0
        %v1439 = vsel %vm576, %v1395, 0
        %v1442 = vsel %vm576, %v1396, 0
        %v1445 = vsel %vm576, %v1397, 0
        %v1448 = vsel %vm576, %v1398, 0
        %v1451 = vsel %vm576, %v1399, 0
        %v1454 = vsel %vm576, %v1400, 0
        %v1457 = vsel %vm576, %v1401, 0
        %v1460 = vsel %vm576, %v1402, 0
        %v1463 = vsel %vm576, %v1403, 0
        %v1466 = vsel %vm576, %v1404, 0
        %v1469 = vsel %vm576, %v1405, 0
        %1471 = vmatprep.subr.bf16.mxu0 0
        %1472 = vmatpush1.bf16.msra.mxu0 %v1419
        %1473 = vmatprep.subr.bf16.mxu0 0
        %1474 = vmatpush1.bf16.msra.mxu0 %v1420
        %1475 = vmatprep.subr.bf16.mxu0 0
        %1476 = vmatpush1.bf16.msra.mxu0 0
        %1477 = vmatprep.subr.bf16.mxu0 0
        %1478 = vmatpush1.bf16.msra.mxu0 0
        %1479 = vmatprep.subr.bf16.mxu0 0
        %1480 = vmatpush1.bf16.msra.mxu0 0
        %1481 = vmatprep.subr.bf16.mxu0 0
        %1482 = vmatpush1.bf16.msra.mxu0 0
        %1483 = vmatprep.subr.bf16.mxu0 0
        %1484 = vmatpush1.bf16.msra.mxu0 0
        %1485 = vmatprep.subr.bf16.mxu0 0
        %1486 = vmatpush1.bf16.msra.mxu0 0
        %1487 = vmatprep.subr.bf16.mxu0 0
        %1488 = vmatpush1.bf16.msra.mxu0 0
        %1489 = vmatprep.subr.bf16.mxu0 0
        %1490 = vmatpush1.bf16.msra.mxu0 0
        %1491 = vmatprep.subr.bf16.mxu0 0
        %1492 = vmatpush1.bf16.msra.mxu0 0
        %1493 = vmatprep.subr.bf16.mxu0 0
        %1494 = vmatpush1.bf16.msra.mxu0 0
        %1495 = vmatprep.subr.bf16.mxu0 0
        %1496 = vmatpush1.bf16.msra.mxu0 0
        %1497 = vmatprep.subr.bf16.mxu0 0
        %1498 = vmatpush1.bf16.msra.mxu0 0
        %1499 = vmatprep.subr.bf16.mxu0 0
        %1500 = vmatpush1.bf16.msra.mxu0 0
        %1501 = vmatprep.subr.bf16.mxu0 0
        %1502 = vmatpush1.bf16.msra.mxu0 0
        %1503 = vmatprep.mubr.bf16.mxu0 0
        %1504 = vmatmul.mubr.bf16.gmra.mrb[0].mxu0 %v1424
        %v1505 = vpop.f32.mrb[0].mxu0
        %v1506 = vadd.f32 0.0, %v1505
        %v1507 = vpop.f32.mrb[0].mxu0
        %v1508 = vpop.f32.mrb[0].mxu0
        %v1509 = vadd.f32 0.0, %v1508
        %v1510 = vpop.f32.mrb[0].mxu0
        %1511 = vmatprep.mubr.bf16.mxu0 0
        %1512 = vmatmul.mubr.bf16.gmra.mrb[0].mxu0 %v1427
        %v1513 = vpop.f32.mrb[0].mxu0
        %v1514 = vadd.f32 0.0, %v1513
        %v1515 = vpop.f32.mrb[0].mxu0
        %v1516 = vpop.f32.mrb[0].mxu0
        %v1517 = vadd.f32 0.0, %v1516
        %v1518 = vpop.f32.mrb[0].mxu0
        %1519 = vmatprep.mubr.bf16.mxu0 0
        %1520 = vmatmul.mubr.bf16.gmra.mrb[0].mxu0 %v1430
        %v1521 = vpop.f32.mrb[0].mxu0
        %v1522 = vadd.f32 0.0, %v1521
        %v1523 = vpop.f32.mrb[0].mxu0
        %v1524 = vpop.f32.mrb[0].mxu0
        %v1525 = vadd.f32 0.0, %v1524
        %v1526 = vpop.f32.mrb[0].mxu0
        %1527 = vmatprep.mubr.bf16.mxu0 0
        %1528 = vmatmul.mubr.bf16.gmra.mrb[0].mxu0 %v1433
        %v1529 = vpop.f32.mrb[0].mxu0
        %v1530 = vadd.f32 0.0, %v1529
        %v1531 = vpop.f32.mrb[0].mxu0
        %v1532 = vpop.f32.mrb[0].mxu0
        %v1533 = vadd.f32 0.0, %v1532
        %v1534 = vpop.f32.mrb[0].mxu0
        %1535 = vmatprep.mubr.bf16.mxu0 0
        %1536 = vmatmul.mubr.bf16.gmra.mrb[0].mxu0 %v1436
        %v1537 = vpop.f32.mrb[0].mxu0
        %v1538 = vadd.f32 0.0, %v1537
        %v1539 = vpop.f32.mrb[0].mxu0
        %v1540 = vpop.f32.mrb[0].mxu0
        %v1541 = vadd.f32 0.0, %v1540
        %v1542 = vpop.f32.mrb[0].mxu0
        %1543 = vmatprep.mubr.bf16.mxu0 0
        %1544 = vmatmul.mubr.bf16.gmra.mrb[0].mxu0 %v1439
        %v1545 = vpop.f32.mrb[0].mxu0
        %v1546 = vadd.f32 0.0, %v1545
        %v1547 = vpop.f32.mrb[0].mxu0
        %v1548 = vpop.f32.mrb[0].mxu0
        %v1549 = vadd.f32 0.0, %v1548
        %v1550 = vpop.f32.mrb[0].mxu0
        %1551 = vmatprep.mubr.bf16.mxu0 0
        %1552 = vmatmul.mubr.bf16.gmra.mrb[0].mxu0 %v1442
        %v1553 = vpop.f32.mrb[0].mxu0
        %v1554 = vadd.f32 0.0, %v1553
        %v1555 = vpop.f32.mrb[0].mxu0
        %v1556 = vpop.f32.mrb[0].mxu0
        %v1557 = vadd.f32 0.0, %v1556
        %v1558 = vpop.f32.mrb[0].mxu0
        %1559 = vmatprep.mubr.bf16.mxu0 0
        %1560 = vmatmul.mubr.bf16.gmra.mrb[0].mxu0 %v1445
        %v1561 = vpop.f32.mrb[0].mxu0
        %v1562 = vadd.f32 0.0, %v1561
        %v1563 = vpop.f32.mrb[0].mxu0
        %v1564 = vpop.f32.mrb[0].mxu0
        %v1565 = vadd.f32 0.0, %v1564
        %v1566 = vpop.f32.mrb[0].mxu0
        %1567 = vmatprep.mubr.bf16.mxu0 0
        %1568 = vmatmul.mubr.bf16.gmra.mrb[0].mxu0 %v1448
        %v1569 = vpop.f32.mrb[0].mxu0
        %v1570 = vadd.f32 0.0, %v1569
        %v1571 = vpop.f32.mrb[0].mxu0
        %v1572 = vpop.f32.mrb[0].mxu0
        %v1573 = vadd.f32 0.0, %v1572
        %v1574 = vpop.f32.mrb[0].mxu0
        %1575 = vmatprep.mubr.bf16.mxu0 0
        %1576 = vmatmul.mubr.bf16.gmra.mrb[0].mxu0 %v1451
        %v1577 = vpop.f32.mrb[0].mxu0
        %v1578 = vadd.f32 0.0, %v1577
        %v1579 = vpop.f32.mrb[0].mxu0
        %v1580 = vpop.f32.mrb[0].mxu0
        %v1581 = vadd.f32 0.0, %v1580
        %v1582 = vpop.f32.mrb[0].mxu0
        %1583 = vmatprep.mubr.bf16.mxu0 0
        %1584 = vmatmul.mubr.bf16.gmra.mrb[0].mxu0 %v1454
        %v1585 = vpop.f32.mrb[0].mxu0
        %v1586 = vadd.f32 0.0, %v1585
        %v1587 = vpop.f32.mrb[0].mxu0
        %v1588 = vpop.f32.mrb[0].mxu0
        %v1589 = vadd.f32 0.0, %v1588
        %v1590 = vpop.f32.mrb[0].mxu0
        %1591 = vmatprep.mubr.bf16.mxu0 0
        %1592 = vmatmul.mubr.bf16.gmra.mrb[0].mxu0 %v1457
        %v1593 = vpop.f32.mrb[0].mxu0
        %v1594 = vadd.f32 0.0, %v1593
        %v1595 = vpop.f32.mrb[0].mxu0
        %v1596 = vpop.f32.mrb[0].mxu0
        %v1597 = vadd.f32 0.0, %v1596
        %v1598 = vpop.f32.mrb[0].mxu0
        %1599 = vmatprep.mubr.bf16.mxu0 0
        %1600 = vmatmul.mubr.bf16.gmra.mrb[0].mxu0 %v1460
        %v1601 = vpop.f32.mrb[0].mxu0
        %v1602 = vadd.f32 0.0, %v1601
        %v1603 = vpop.f32.mrb[0].mxu0
        %v1604 = vpop.f32.mrb[0].mxu0
        %v1605 = vadd.f32 0.0, %v1604
        %v1606 = vpop.f32.mrb[0].mxu0
        %1607 = vmatprep.mubr.bf16.mxu0 0
        %1608 = vmatmul.mubr.bf16.gmra.mrb[0].mxu0 %v1463
        %v1609 = vpop.f32.mrb[0].mxu0
        %v1610 = vadd.f32 0.0, %v1609
        %v1611 = vpop.f32.mrb[0].mxu0
        %v1612 = vpop.f32.mrb[0].mxu0
        %v1613 = vadd.f32 0.0, %v1612
        %v1614 = vpop.f32.mrb[0].mxu0
        %1615 = vmatprep.mubr.bf16.mxu0 0
        %1616 = vmatmul.mubr.bf16.gmra.mrb[0].mxu0 %v1466
        %v1617 = vpop.f32.mrb[0].mxu0
        %v1618 = vadd.f32 0.0, %v1617
        %v1619 = vpop.f32.mrb[0].mxu0
        %v1620 = vpop.f32.mrb[0].mxu0
        %v1621 = vadd.f32 0.0, %v1620
        %v1622 = vpop.f32.mrb[0].mxu0
        %1623 = vmatprep.mubr.bf16.mxu0 0
        %1624 = vmatmul.mubr.bf16.gmra.mrb[0].mxu0 %v1469
        %v1625 = vpop.f32.mrb[0].mxu0
        %v1626 = vadd.f32 0.0, %v1625
        %v1627 = vpop.f32.mrb[0].mxu0
        %v1628 = vpop.f32.mrb[0].mxu0
        %v1629 = vadd.f32 0.0, %v1628
        %v1630 = vpop.f32.mrb[0].mxu0
        %1631 = vdwg.mxu0
        %v1632 = vadd.f32 %v881, %v1506
        %v1633 = vadd.f32 %v884, %v1509
        %v1634 = vadd.f32 %v889, %v1514
        %v1635 = vadd.f32 %v892, %v1517
        %v1636 = vadd.f32 %v897, %v1522
        %v1637 = vadd.f32 %v900, %v1525
        %v1638 = vadd.f32 %v905, %v1530
        %v1639 = vadd.f32 %v908, %v1533
        %v1640 = vadd.f32 %v913, %v1538
        %v1641 = vadd.f32 %v916, %v1541
        %v1642 = vadd.f32 %v921, %v1546
        %v1643 = vadd.f32 %v924, %v1549
        %v1644 = vadd.f32 %v929, %v1554
        %v1645 = vadd.f32 %v932, %v1557
        %v1646 = vadd.f32 %v937, %v1562
        %v1647 = vadd.f32 %v940, %v1565
        %v1648 = vadd.f32 %v945, %v1570
        %v1649 = vadd.f32 %v948, %v1573
        %v1650 = vadd.f32 %v953, %v1578
        %v1651 = vadd.f32 %v956, %v1581
        %v1652 = vadd.f32 %v961, %v1586
        %v1653 = vadd.f32 %v964, %v1589
        %v1654 = vadd.f32 %v969, %v1594
        %v1655 = vadd.f32 %v972, %v1597
        %v1656 = vadd.f32 %v977, %v1602
        %v1657 = vadd.f32 %v980, %v1605
        %v1658 = vadd.f32 %v985, %v1610
        %v1659 = vadd.f32 %v988, %v1613
        %v1660 = vadd.f32 %v993, %v1618
        %v1661 = vadd.f32 %v996, %v1621
        %v1662 = vadd.f32 %v1001, %v1626
        %v1663 = vadd.f32 %v1004, %v1629
        %s1664 = scalar_lea.vmem %s2, 32
        %v1665 = vld [vmem:[%s1664] sm:$0xf]
        %v1666 = vld [vmem:[%s1664 + $0x4] sm:$0xf]
        %v1667 = vld [vmem:[%s1664 + $0x8] sm:$0xf]
        %v1668 = vld [vmem:[%s1664 + $0xc] sm:$0xf]
        %v1673 = vunpack.c.l.b16 %v1665
        %v1674 = vunpack.c.l.b16 %v1666
        %v1675 = vunpack.c.l.b16 %v1667
        %v1676 = vunpack.c.l.b16 %v1668
        %v1677 = vpack.c.b16 %v1674, %v1673
        %v1678 = vpack.c.b16 %v1676, %v1675
        %1681 = vmatprep.subr.bf16.mxu0 0
        %1682 = vmatpush1.bf16.msra.mxu0 %v1677
        %1683 = vmatprep.subr.bf16.mxu0 0
        %1684 = vmatpush1.bf16.msra.mxu0 %v1678
        %1685 = vmatprep.subr.bf16.mxu0 0
        %1686 = vmatpush1.bf16.msra.mxu0 0
        %1687 = vmatprep.subr.bf16.mxu0 0
        %1688 = vmatpush1.bf16.msra.mxu0 0
        %1689 = vmatprep.subr.bf16.mxu0 0
        %1690 = vmatpush1.bf16.msra.mxu0 0
        %1691 = vmatprep.subr.bf16.mxu0 0
        %1692 = vmatpush1.bf16.msra.mxu0 0
        %1693 = vmatprep.subr.bf16.mxu0 0
        %1694 = vmatpush1.bf16.msra.mxu0 0
        %1695 = vmatprep.subr.bf16.mxu0 0
        %1696 = vmatpush1.bf16.msra.mxu0 0
        %1697 = vmatprep.subr.bf16.mxu0 0
        %1698 = vmatpush1.bf16.msra.mxu0 0
        %1699 = vmatprep.subr.bf16.mxu0 0
        %1700 = vmatpush1.bf16.msra.mxu0 0
        %1701 = vmatprep.subr.bf16.mxu0 0
        %1702 = vmatpush1.bf16.msra.mxu0 0
        %1703 = vmatprep.subr.bf16.mxu0 0
        %1704 = vmatpush1.bf16.msra.mxu0 0
        %1705 = vmatprep.subr.bf16.mxu0 0
        %1706 = vmatpush1.bf16.msra.mxu0 0
        %1707 = vmatprep.subr.bf16.mxu0 0
        %1708 = vmatpush1.bf16.msra.mxu0 0
        %1709 = vmatprep.subr.bf16.mxu0 0
        %1710 = vmatpush1.bf16.msra.mxu0 0
        %1711 = vmatprep.subr.bf16.mxu0 0
        %1712 = vmatpush1.bf16.msra.mxu0 0
        %1713 = vmatprep.mubr.bf16.mxu0 0
        %1714 = vmatmul.mubr.bf16.gmra.mrb[0].mxu0 %v1424
        %v1715 = vpop.f32.mrb[0].mxu0
        %v1716 = vadd.f32 0.0, %v1715
        %v1717 = vpop.f32.mrb[0].mxu0
        %v1718 = vpop.f32.mrb[0].mxu0
        %v1719 = vadd.f32 0.0, %v1718
        %v1720 = vpop.f32.mrb[0].mxu0
        %1721 = vmatprep.mubr.bf16.mxu0 0
        %1722 = vmatmul.mubr.bf16.gmra.mrb[0].mxu0 %v1427
        %v1723 = vpop.f32.mrb[0].mxu0
        %v1724 = vadd.f32 0.0, %v1723
        %v1725 = vpop.f32.mrb[0].mxu0
        %v1726 = vpop.f32.mrb[0].mxu0
        %v1727 = vadd.f32 0.0, %v1726
        %v1728 = vpop.f32.mrb[0].mxu0
        %1729 = vmatprep.mubr.bf16.mxu0 0
        %1730 = vmatmul.mubr.bf16.gmra.mrb[0].mxu0 %v1430
        %v1731 = vpop.f32.mrb[0].mxu0
        %v1732 = vadd.f32 0.0, %v1731
        %v1733 = vpop.f32.mrb[0].mxu0
        %v1734 = vpop.f32.mrb[0].mxu0
        %v1735 = vadd.f32 0.0, %v1734
        %v1736 = vpop.f32.mrb[0].mxu0
        %1737 = vmatprep.mubr.bf16.mxu0 0
        %1738 = vmatmul.mubr.bf16.gmra.mrb[0].mxu0 %v1433
        %v1739 = vpop.f32.mrb[0].mxu0
        %v1740 = vadd.f32 0.0, %v1739
        %v1741 = vpop.f32.mrb[0].mxu0
        %v1742 = vpop.f32.mrb[0].mxu0
        %v1743 = vadd.f32 0.0, %v1742
        %v1744 = vpop.f32.mrb[0].mxu0
        %1745 = vmatprep.mubr.bf16.mxu0 0
        %1746 = vmatmul.mubr.bf16.gmra.mrb[0].mxu0 %v1436
        %v1747 = vpop.f32.mrb[0].mxu0
        %v1748 = vadd.f32 0.0, %v1747
        %v1749 = vpop.f32.mrb[0].mxu0
        %v1750 = vpop.f32.mrb[0].mxu0
        %v1751 = vadd.f32 0.0, %v1750
        %v1752 = vpop.f32.mrb[0].mxu0
        %1753 = vmatprep.mubr.bf16.mxu0 0
        %1754 = vmatmul.mubr.bf16.gmra.mrb[0].mxu0 %v1439
        %v1755 = vpop.f32.mrb[0].mxu0
        %v1756 = vadd.f32 0.0, %v1755
        %v1757 = vpop.f32.mrb[0].mxu0
        %v1758 = vpop.f32.mrb[0].mxu0
        %v1759 = vadd.f32 0.0, %v1758
        %v1760 = vpop.f32.mrb[0].mxu0
        %1761 = vmatprep.mubr.bf16.mxu0 0
        %1762 = vmatmul.mubr.bf16.gmra.mrb[0].mxu0 %v1442
        %v1763 = vpop.f32.mrb[0].mxu0
        %v1764 = vadd.f32 0.0, %v1763
        %v1765 = vpop.f32.mrb[0].mxu0
        %v1766 = vpop.f32.mrb[0].mxu0
        %v1767 = vadd.f32 0.0, %v1766
        %v1768 = vpop.f32.mrb[0].mxu0
        %1769 = vmatprep.mubr.bf16.mxu0 0
        %1770 = vmatmul.mubr.bf16.gmra.mrb[0].mxu0 %v1445
        %v1771 = vpop.f32.mrb[0].mxu0
        %v1772 = vadd.f32 0.0, %v1771
        %v1773 = vpop.f32.mrb[0].mxu0
        %v1774 = vpop.f32.mrb[0].mxu0
        %v1775 = vadd.f32 0.0, %v1774
        %v1776 = vpop.f32.mrb[0].mxu0
        %1777 = vmatprep.mubr.bf16.mxu0 0
        %1778 = vmatmul.mubr.bf16.gmra.mrb[0].mxu0 %v1448
        %v1779 = vpop.f32.mrb[0].mxu0
        %v1780 = vadd.f32 0.0, %v1779
        %v1781 = vpop.f32.mrb[0].mxu0
        %v1782 = vpop.f32.mrb[0].mxu0
        %v1783 = vadd.f32 0.0, %v1782
        %v1784 = vpop.f32.mrb[0].mxu0
        %1785 = vmatprep.mubr.bf16.mxu0 0
        %1786 = vmatmul.mubr.bf16.gmra.mrb[0].mxu0 %v1451
        %v1787 = vpop.f32.mrb[0].mxu0
        %v1788 = vadd.f32 0.0, %v1787
        %v1789 = vpop.f32.mrb[0].mxu0
        %v1790 = vpop.f32.mrb[0].mxu0
        %v1791 = vadd.f32 0.0, %v1790
        %v1792 = vpop.f32.mrb[0].mxu0
        %1793 = vmatprep.mubr.bf16.mxu0 0
        %1794 = vmatmul.mubr.bf16.gmra.mrb[0].mxu0 %v1454
        %v1795 = vpop.f32.mrb[0].mxu0
        %v1796 = vadd.f32 0.0, %v1795
        %v1797 = vpop.f32.mrb[0].mxu0
        %v1798 = vpop.f32.mrb[0].mxu0
        %v1799 = vadd.f32 0.0, %v1798
        %v1800 = vpop.f32.mrb[0].mxu0
        %1801 = vmatprep.mubr.bf16.mxu0 0
        %1802 = vmatmul.mubr.bf16.gmra.mrb[0].mxu0 %v1457
        %v1803 = vpop.f32.mrb[0].mxu0
        %v1804 = vadd.f32 0.0, %v1803
        %v1805 = vpop.f32.mrb[0].mxu0
        %v1806 = vpop.f32.mrb[0].mxu0
        %v1807 = vadd.f32 0.0, %v1806
        %v1808 = vpop.f32.mrb[0].mxu0
        %1809 = vmatprep.mubr.bf16.mxu0 0
        %1810 = vmatmul.mubr.bf16.gmra.mrb[0].mxu0 %v1460
        %v1811 = vpop.f32.mrb[0].mxu0
        %v1812 = vadd.f32 0.0, %v1811
        %v1813 = vpop.f32.mrb[0].mxu0
        %v1814 = vpop.f32.mrb[0].mxu0
        %v1815 = vadd.f32 0.0, %v1814
        %v1816 = vpop.f32.mrb[0].mxu0
        %1817 = vmatprep.mubr.bf16.mxu0 0
        %1818 = vmatmul.mubr.bf16.gmra.mrb[0].mxu0 %v1463
        %v1819 = vpop.f32.mrb[0].mxu0
        %v1820 = vadd.f32 0.0, %v1819
        %v1821 = vpop.f32.mrb[0].mxu0
        %v1822 = vpop.f32.mrb[0].mxu0
        %v1823 = vadd.f32 0.0, %v1822
        %v1824 = vpop.f32.mrb[0].mxu0
        %1825 = vmatprep.mubr.bf16.mxu0 0
        %1826 = vmatmul.mubr.bf16.gmra.mrb[0].mxu0 %v1466
        %v1827 = vpop.f32.mrb[0].mxu0
        %v1828 = vadd.f32 0.0, %v1827
        %v1829 = vpop.f32.mrb[0].mxu0
        %v1830 = vpop.f32.mrb[0].mxu0
        %v1831 = vadd.f32 0.0, %v1830
        %v1832 = vpop.f32.mrb[0].mxu0
        %1833 = vmatprep.mubr.bf16.mxu0 0
        %1834 = vmatmul.mubr.bf16.gmra.mrb[0].mxu0 %v1469
        %v1835 = vpop.f32.mrb[0].mxu0
        %v1836 = vadd.f32 0.0, %v1835
        %v1837 = vpop.f32.mrb[0].mxu0
        %v1838 = vpop.f32.mrb[0].mxu0
        %v1839 = vadd.f32 0.0, %v1838
        %v1840 = vpop.f32.mrb[0].mxu0
        %1841 = vdwg.mxu0
        %v1842 = vadd.f32 %v1232, %v1716
        %v1843 = vadd.f32 %v1235, %v1719
        %v1844 = vadd.f32 %v1240, %v1724
        %v1845 = vadd.f32 %v1243, %v1727
        %v1846 = vadd.f32 %v1248, %v1732
        %v1847 = vadd.f32 %v1251, %v1735
        %v1848 = vadd.f32 %v1256, %v1740
        %v1849 = vadd.f32 %v1259, %v1743
        %v1850 = vadd.f32 %v1264, %v1748
        %v1851 = vadd.f32 %v1267, %v1751
        %v1852 = vadd.f32 %v1272, %v1756
        %v1853 = vadd.f32 %v1275, %v1759
        %v1854 = vadd.f32 %v1280, %v1764
        %v1855 = vadd.f32 %v1283, %v1767
        %v1856 = vadd.f32 %v1288, %v1772
        %v1857 = vadd.f32 %v1291, %v1775
        %v1858 = vadd.f32 %v1296, %v1780
        %v1859 = vadd.f32 %v1299, %v1783
        %v1860 = vadd.f32 %v1304, %v1788
        %v1861 = vadd.f32 %v1307, %v1791
        %v1862 = vadd.f32 %v1312, %v1796
        %v1863 = vadd.f32 %v1315, %v1799
        %v1864 = vadd.f32 %v1320, %v1804
        %v1865 = vadd.f32 %v1323, %v1807
        %v1866 = vadd.f32 %v1328, %v1812
        %v1867 = vadd.f32 %v1331, %v1815
        %v1868 = vadd.f32 %v1336, %v1820
        %v1869 = vadd.f32 %v1339, %v1823
        %v1870 = vadd.f32 %v1344, %v1828
        %v1871 = vadd.f32 %v1347, %v1831
        %v1872 = vadd.f32 %v1352, %v1836
        %v1873 = vadd.f32 %v1355, %v1839
        %v1874 = vld [vmem:[%s452 + $0x3] sm:$0xff]
        %v1875 = vld [vmem:[%s452 + $0xb] sm:$0xff]
        %v1876 = vld [vmem:[%s452 + $0x13] sm:$0xff]
        %v1877 = vld [vmem:[%s452 + $0x1b] sm:$0xff]
        %v1878 = vld [vmem:[%s452 + $0x23] sm:$0xff]
        %v1879 = vld [vmem:[%s452 + $0x2b] sm:$0xff]
        %v1880 = vld [vmem:[%s452 + $0x33] sm:$0xff]
        %v1881 = vld [vmem:[%s452 + $0x3b] sm:$0xff]
        %v1882 = vld [vmem:[%s452 + $0x43] sm:$0xff]
        %v1883 = vld [vmem:[%s452 + $0x4b] sm:$0xff]
        %v1884 = vld [vmem:[%s452 + $0x53] sm:$0xff]
        %v1885 = vld [vmem:[%s452 + $0x5b] sm:$0xff]
        %v1886 = vld [vmem:[%s452 + $0x63] sm:$0xff]
        %v1887 = vld [vmem:[%s452 + $0x6b] sm:$0xff]
        %v1888 = vld [vmem:[%s452 + $0x73] sm:$0xff]
        %v1889 = vld [vmem:[%s452 + $0x7b] sm:$0xff]
        %v1890 = vld [vmem:[%s452 + $0x83] sm:$0xff]
        %v1891 = vld [vmem:[%s452 + $0x8b] sm:$0xff]
        %v1892 = vld [vmem:[%s452 + $0x93] sm:$0xff]
        %v1893 = vld [vmem:[%s452 + $0x9b] sm:$0xff]
        %v1894 = vld [vmem:[%s452 + $0xa3] sm:$0xff]
        %v1895 = vld [vmem:[%s452 + $0xab] sm:$0xff]
        %v1896 = vld [vmem:[%s452 + $0xb3] sm:$0xff]
        %v1897 = vld [vmem:[%s452 + $0xbb] sm:$0xff]
        %v1898 = vld [vmem:[%s452 + $0xc3] sm:$0xff]
        %v1899 = vld [vmem:[%s452 + $0xcb] sm:$0xff]
        %v1900 = vld [vmem:[%s452 + $0xd3] sm:$0xff]
        %v1901 = vld [vmem:[%s452 + $0xdb] sm:$0xff]
        %v1902 = vld [vmem:[%s452 + $0xe3] sm:$0xff]
        %v1903 = vld [vmem:[%s452 + $0xeb] sm:$0xff]
        %v1904 = vld [vmem:[%s452 + $0xf3] sm:$0xff]
        %v1905 = vld [vmem:[%s452 + $0xfb] sm:$0xf]
        %v1906 = vpack.c.bf16 %v1875, %v1874
        %v1907 = vpack.c.bf16 %v1877, %v1876
        %v1908 = vpack.c.bf16 %v1879, %v1878
        %v1909 = vpack.c.bf16 %v1881, %v1880
        %v1910 = vpack.c.bf16 %v1883, %v1882
        %v1911 = vpack.c.bf16 %v1885, %v1884
        %v1912 = vpack.c.bf16 %v1887, %v1886
        %v1913 = vpack.c.bf16 %v1889, %v1888
        %v1914 = vpack.c.bf16 %v1891, %v1890
        %v1915 = vpack.c.bf16 %v1893, %v1892
        %v1916 = vpack.c.bf16 %v1895, %v1894
        %v1917 = vpack.c.bf16 %v1897, %v1896
        %v1918 = vpack.c.bf16 %v1899, %v1898
        %v1919 = vpack.c.bf16 %v1901, %v1900
        %v1920 = vpack.c.bf16 %v1903, %v1902
        %v1921 = vpack.c.bf16 %v1905, %v1904
        %s1922 = scalar_lea.vmem %s1, 48
        %v1923 = vld [vmem:[%s1922] sm:$0xf]
        %v1924 = vld [vmem:[%s1922 + $0x4] sm:$0xf]
        %v1925 = vld [vmem:[%s1922 + $0x8] sm:$0xf]
        %v1926 = vld [vmem:[%s1922 + $0xc] sm:$0xf]
        %v1931 = vunpack.c.l.b16 %v1923
        %v1932 = vunpack.c.l.b16 %v1924
        %v1933 = vunpack.c.l.b16 %v1925
        %v1934 = vunpack.c.l.b16 %v1926
        %v1935 = vpack.c.b16 %v1932, %v1931
        %v1936 = vpack.c.b16 %v1934, %v1933
        %v1940 = vsel %vm576, %v1906, 0
        %v1943 = vsel %vm576, %v1907, 0
        %v1946 = vsel %vm576, %v1908, 0
        %v1949 = vsel %vm576, %v1909, 0
        %v1952 = vsel %vm576, %v1910, 0
        %v1955 = vsel %vm576, %v1911, 0
        %v1958 = vsel %vm576, %v1912, 0
        %v1961 = vsel %vm576, %v1913, 0
        %v1964 = vsel %vm576, %v1914, 0
        %v1967 = vsel %vm576, %v1915, 0
        %v1970 = vsel %vm576, %v1916, 0
        %v1973 = vsel %vm576, %v1917, 0
        %v1976 = vsel %vm576, %v1918, 0
        %v1979 = vsel %vm576, %v1919, 0
        %v1982 = vsel %vm576, %v1920, 0
        %v1985 = vsel %vm576, %v1921, 0
        %1987 = vmatprep.subr.bf16.mxu0 0
        %1988 = vmatpush1.bf16.msra.mxu0 %v1935
        %1989 = vmatprep.subr.bf16.mxu0 0
        %1990 = vmatpush1.bf16.msra.mxu0 %v1936
        %1991 = vmatprep.subr.bf16.mxu0 0
        %1992 = vmatpush1.bf16.msra.mxu0 0
        %1993 = vmatprep.subr.bf16.mxu0 0
        %1994 = vmatpush1.bf16.msra.mxu0 0
        %1995 = vmatprep.subr.bf16.mxu0 0
        %1996 = vmatpush1.bf16.msra.mxu0 0
        %1997 = vmatprep.subr.bf16.mxu0 0
        %1998 = vmatpush1.bf16.msra.mxu0 0
        %1999 = vmatprep.subr.bf16.mxu0 0
        %2000 = vmatpush1.bf16.msra.mxu0 0
        %2001 = vmatprep.subr.bf16.mxu0 0
        %2002 = vmatpush1.bf16.msra.mxu0 0
        %2003 = vmatprep.subr.bf16.mxu0 0
        %2004 = vmatpush1.bf16.msra.mxu0 0
        %2005 = vmatprep.subr.bf16.mxu0 0
        %2006 = vmatpush1.bf16.msra.mxu0 0
        %2007 = vmatprep.subr.bf16.mxu0 0
        %2008 = vmatpush1.bf16.msra.mxu0 0
        %2009 = vmatprep.subr.bf16.mxu0 0
        %2010 = vmatpush1.bf16.msra.mxu0 0
        %2011 = vmatprep.subr.bf16.mxu0 0
        %2012 = vmatpush1.bf16.msra.mxu0 0
        %2013 = vmatprep.subr.bf16.mxu0 0
        %2014 = vmatpush1.bf16.msra.mxu0 0
        %2015 = vmatprep.subr.bf16.mxu0 0
        %2016 = vmatpush1.bf16.msra.mxu0 0
        %2017 = vmatprep.subr.bf16.mxu0 0
        %2018 = vmatpush1.bf16.msra.mxu0 0
        %2019 = vmatprep.mubr.bf16.mxu0 0
        %2020 = vmatmul.mubr.bf16.gmra.mrb[0].mxu0 %v1940
        %v2021 = vpop.f32.mrb[0].mxu0
        %v2022 = vadd.f32 0.0, %v2021
        %v2023 = vpop.f32.mrb[0].mxu0
        %v2024 = vpop.f32.mrb[0].mxu0
        %v2025 = vadd.f32 0.0, %v2024
        %v2026 = vpop.f32.mrb[0].mxu0
        %2027 = vmatprep.mubr.bf16.mxu0 0
        %2028 = vmatmul.mubr.bf16.gmra.mrb[0].mxu0 %v1943
        %v2029 = vpop.f32.mrb[0].mxu0
        %v2030 = vadd.f32 0.0, %v2029
        %v2031 = vpop.f32.mrb[0].mxu0
        %v2032 = vpop.f32.mrb[0].mxu0
        %v2033 = vadd.f32 0.0, %v2032
        %v2034 = vpop.f32.mrb[0].mxu0
        %2035 = vmatprep.mubr.bf16.mxu0 0
        %2036 = vmatmul.mubr.bf16.gmra.mrb[0].mxu0 %v1946
        %v2037 = vpop.f32.mrb[0].mxu0
        %v2038 = vadd.f32 0.0, %v2037
        %v2039 = vpop.f32.mrb[0].mxu0
        %v2040 = vpop.f32.mrb[0].mxu0
        %v2041 = vadd.f32 0.0, %v2040
        %v2042 = vpop.f32.mrb[0].mxu0
        %2043 = vmatprep.mubr.bf16.mxu0 0
        %2044 = vmatmul.mubr.bf16.gmra.mrb[0].mxu0 %v1949
        %v2045 = vpop.f32.mrb[0].mxu0
        %v2046 = vadd.f32 0.0, %v2045
        %v2047 = vpop.f32.mrb[0].mxu0
        %v2048 = vpop.f32.mrb[0].mxu0
        %v2049 = vadd.f32 0.0, %v2048
        %v2050 = vpop.f32.mrb[0].mxu0
        %2051 = vmatprep.mubr.bf16.mxu0 0
        %2052 = vmatmul.mubr.bf16.gmra.mrb[0].mxu0 %v1952
        %v2053 = vpop.f32.mrb[0].mxu0
        %v2054 = vadd.f32 0.0, %v2053
        %v2055 = vpop.f32.mrb[0].mxu0
        %v2056 = vpop.f32.mrb[0].mxu0
        %v2057 = vadd.f32 0.0, %v2056
        %v2058 = vpop.f32.mrb[0].mxu0
        %2059 = vmatprep.mubr.bf16.mxu0 0
        %2060 = vmatmul.mubr.bf16.gmra.mrb[0].mxu0 %v1955
        %v2061 = vpop.f32.mrb[0].mxu0
        %v2062 = vadd.f32 0.0, %v2061
        %v2063 = vpop.f32.mrb[0].mxu0
        %v2064 = vpop.f32.mrb[0].mxu0
        %v2065 = vadd.f32 0.0, %v2064
        %v2066 = vpop.f32.mrb[0].mxu0
        %2067 = vmatprep.mubr.bf16.mxu0 0
        %2068 = vmatmul.mubr.bf16.gmra.mrb[0].mxu0 %v1958
        %v2069 = vpop.f32.mrb[0].mxu0
        %v2070 = vadd.f32 0.0, %v2069
        %v2071 = vpop.f32.mrb[0].mxu0
        %v2072 = vpop.f32.mrb[0].mxu0
        %v2073 = vadd.f32 0.0, %v2072
        %v2074 = vpop.f32.mrb[0].mxu0
        %2075 = vmatprep.mubr.bf16.mxu0 0
        %2076 = vmatmul.mubr.bf16.gmra.mrb[0].mxu0 %v1961
        %v2077 = vpop.f32.mrb[0].mxu0
        %v2078 = vadd.f32 0.0, %v2077
        %v2079 = vpop.f32.mrb[0].mxu0
        %v2080 = vpop.f32.mrb[0].mxu0
        %v2081 = vadd.f32 0.0, %v2080
        %v2082 = vpop.f32.mrb[0].mxu0
        %2083 = vmatprep.mubr.bf16.mxu0 0
        %2084 = vmatmul.mubr.bf16.gmra.mrb[0].mxu0 %v1964
        %v2085 = vpop.f32.mrb[0].mxu0
        %v2086 = vadd.f32 0.0, %v2085
        %v2087 = vpop.f32.mrb[0].mxu0
        %v2088 = vpop.f32.mrb[0].mxu0
        %v2089 = vadd.f32 0.0, %v2088
        %v2090 = vpop.f32.mrb[0].mxu0
        %2091 = vmatprep.mubr.bf16.mxu0 0
        %2092 = vmatmul.mubr.bf16.gmra.mrb[0].mxu0 %v1967
        %v2093 = vpop.f32.mrb[0].mxu0
        %v2094 = vadd.f32 0.0, %v2093
        %v2095 = vpop.f32.mrb[0].mxu0
        %v2096 = vpop.f32.mrb[0].mxu0
        %v2097 = vadd.f32 0.0, %v2096
        %v2098 = vpop.f32.mrb[0].mxu0
        %2099 = vmatprep.mubr.bf16.mxu0 0
        %2100 = vmatmul.mubr.bf16.gmra.mrb[0].mxu0 %v1970
        %v2101 = vpop.f32.mrb[0].mxu0
        %v2102 = vadd.f32 0.0, %v2101
        %v2103 = vpop.f32.mrb[0].mxu0
        %v2104 = vpop.f32.mrb[0].mxu0
        %v2105 = vadd.f32 0.0, %v2104
        %v2106 = vpop.f32.mrb[0].mxu0
        %2107 = vmatprep.mubr.bf16.mxu0 0
        %2108 = vmatmul.mubr.bf16.gmra.mrb[0].mxu0 %v1973
        %v2109 = vpop.f32.mrb[0].mxu0
        %v2110 = vadd.f32 0.0, %v2109
        %v2111 = vpop.f32.mrb[0].mxu0
        %v2112 = vpop.f32.mrb[0].mxu0
        %v2113 = vadd.f32 0.0, %v2112
        %v2114 = vpop.f32.mrb[0].mxu0
        %2115 = vmatprep.mubr.bf16.mxu0 0
        %2116 = vmatmul.mubr.bf16.gmra.mrb[0].mxu0 %v1976
        %v2117 = vpop.f32.mrb[0].mxu0
        %v2118 = vadd.f32 0.0, %v2117
        %v2119 = vpop.f32.mrb[0].mxu0
        %v2120 = vpop.f32.mrb[0].mxu0
        %v2121 = vadd.f32 0.0, %v2120
        %v2122 = vpop.f32.mrb[0].mxu0
        %2123 = vmatprep.mubr.bf16.mxu0 0
        %2124 = vmatmul.mubr.bf16.gmra.mrb[0].mxu0 %v1979
        %v2125 = vpop.f32.mrb[0].mxu0
        %v2126 = vadd.f32 0.0, %v2125
        %v2127 = vpop.f32.mrb[0].mxu0
        %v2128 = vpop.f32.mrb[0].mxu0
        %v2129 = vadd.f32 0.0, %v2128
        %v2130 = vpop.f32.mrb[0].mxu0
        %2131 = vmatprep.mubr.bf16.mxu0 0
        %2132 = vmatmul.mubr.bf16.gmra.mrb[0].mxu0 %v1982
        %v2133 = vpop.f32.mrb[0].mxu0
        %v2134 = vadd.f32 0.0, %v2133
        %v2135 = vpop.f32.mrb[0].mxu0
        %v2136 = vpop.f32.mrb[0].mxu0
        %v2137 = vadd.f32 0.0, %v2136
        %v2138 = vpop.f32.mrb[0].mxu0
        %2139 = vmatprep.mubr.bf16.mxu0 0
        %2140 = vmatmul.mubr.bf16.gmra.mrb[0].mxu0 %v1985
        %v2141 = vpop.f32.mrb[0].mxu0
        %v2142 = vadd.f32 0.0, %v2141
        %v2143 = vpop.f32.mrb[0].mxu0
        %v2144 = vpop.f32.mrb[0].mxu0
        %v2145 = vadd.f32 0.0, %v2144
        %v2146 = vpop.f32.mrb[0].mxu0
        %2147 = vdwg.mxu0
        %v2148 = vadd.f32 %v1632, %v2022
        %v2149 = vadd.f32 %v1633, %v2025
        %v2150 = vadd.f32 %v1634, %v2030
        %v2151 = vadd.f32 %v1635, %v2033
        %v2152 = vadd.f32 %v1636, %v2038
        %v2153 = vadd.f32 %v1637, %v2041
        %v2154 = vadd.f32 %v1638, %v2046
        %v2155 = vadd.f32 %v1639, %v2049
        %v2156 = vadd.f32 %v1640, %v2054
        %v2157 = vadd.f32 %v1641, %v2057
        %v2158 = vadd.f32 %v1642, %v2062
        %v2159 = vadd.f32 %v1643, %v2065
        %v2160 = vadd.f32 %v1644, %v2070
        %v2161 = vadd.f32 %v1645, %v2073
        %v2162 = vadd.f32 %v1646, %v2078
        %v2163 = vadd.f32 %v1647, %v2081
        %v2164 = vadd.f32 %v1648, %v2086
        %v2165 = vadd.f32 %v1649, %v2089
        %v2166 = vadd.f32 %v1650, %v2094
        %v2167 = vadd.f32 %v1651, %v2097
        %v2168 = vadd.f32 %v1652, %v2102
        %v2169 = vadd.f32 %v1653, %v2105
        %v2170 = vadd.f32 %v1654, %v2110
        %v2171 = vadd.f32 %v1655, %v2113
        %v2172 = vadd.f32 %v1656, %v2118
        %v2173 = vadd.f32 %v1657, %v2121
        %v2174 = vadd.f32 %v1658, %v2126
        %v2175 = vadd.f32 %v1659, %v2129
        %v2176 = vadd.f32 %v1660, %v2134
        %v2177 = vadd.f32 %v1661, %v2137
        %v2178 = vadd.f32 %v1662, %v2142
        %v2179 = vadd.f32 %v1663, %v2145
        %s2180 = scalar_lea.vmem %s2, 48
        %v2181 = vld [vmem:[%s2180] sm:$0xf]
        %v2182 = vld [vmem:[%s2180 + $0x4] sm:$0xf]
        %v2183 = vld [vmem:[%s2180 + $0x8] sm:$0xf]
        %v2184 = vld [vmem:[%s2180 + $0xc] sm:$0xf]
        %v2189 = vunpack.c.l.b16 %v2181
        %v2190 = vunpack.c.l.b16 %v2182
        %v2191 = vunpack.c.l.b16 %v2183
        %v2192 = vunpack.c.l.b16 %v2184
        %v2193 = vpack.c.b16 %v2190, %v2189
        %v2194 = vpack.c.b16 %v2192, %v2191
        %2197 = vmatprep.subr.bf16.mxu0 0
        %2198 = vmatpush1.bf16.msra.mxu0 %v2193
        %2199 = vmatprep.subr.bf16.mxu0 0
        %2200 = vmatpush1.bf16.msra.mxu0 %v2194
        %2201 = vmatprep.subr.bf16.mxu0 0
        %2202 = vmatpush1.bf16.msra.mxu0 0
        %2203 = vmatprep.subr.bf16.mxu0 0
        %2204 = vmatpush1.bf16.msra.mxu0 0
        %2205 = vmatprep.subr.bf16.mxu0 0
        %2206 = vmatpush1.bf16.msra.mxu0 0
        %2207 = vmatprep.subr.bf16.mxu0 0
        %2208 = vmatpush1.bf16.msra.mxu0 0
        %2209 = vmatprep.subr.bf16.mxu0 0
        %2210 = vmatpush1.bf16.msra.mxu0 0
        %2211 = vmatprep.subr.bf16.mxu0 0
        %2212 = vmatpush1.bf16.msra.mxu0 0
        %2213 = vmatprep.subr.bf16.mxu0 0
        %2214 = vmatpush1.bf16.msra.mxu0 0
        %2215 = vmatprep.subr.bf16.mxu0 0
        %2216 = vmatpush1.bf16.msra.mxu0 0
        %2217 = vmatprep.subr.bf16.mxu0 0
        %2218 = vmatpush1.bf16.msra.mxu0 0
        %2219 = vmatprep.subr.bf16.mxu0 0
        %2220 = vmatpush1.bf16.msra.mxu0 0
        %2221 = vmatprep.subr.bf16.mxu0 0
        %2222 = vmatpush1.bf16.msra.mxu0 0
        %2223 = vmatprep.subr.bf16.mxu0 0
        %2224 = vmatpush1.bf16.msra.mxu0 0
        %2225 = vmatprep.subr.bf16.mxu0 0
        %2226 = vmatpush1.bf16.msra.mxu0 0
        %2227 = vmatprep.subr.bf16.mxu0 0
        %2228 = vmatpush1.bf16.msra.mxu0 0
        %2229 = vmatprep.mubr.bf16.mxu0 0
        %2230 = vmatmul.mubr.bf16.gmra.mrb[0].mxu0 %v1940
        %v2231 = vpop.f32.mrb[0].mxu0
        %v2232 = vadd.f32 0.0, %v2231
        %v2233 = vpop.f32.mrb[0].mxu0
        %v2234 = vpop.f32.mrb[0].mxu0
        %v2235 = vadd.f32 0.0, %v2234
        %v2236 = vpop.f32.mrb[0].mxu0
        %2237 = vmatprep.mubr.bf16.mxu0 0
        %2238 = vmatmul.mubr.bf16.gmra.mrb[0].mxu0 %v1943
        %v2239 = vpop.f32.mrb[0].mxu0
        %v2240 = vadd.f32 0.0, %v2239
        %v2241 = vpop.f32.mrb[0].mxu0
        %v2242 = vpop.f32.mrb[0].mxu0
        %v2243 = vadd.f32 0.0, %v2242
        %v2244 = vpop.f32.mrb[0].mxu0
        %2245 = vmatprep.mubr.bf16.mxu0 0
        %2246 = vmatmul.mubr.bf16.gmra.mrb[0].mxu0 %v1946
        %v2247 = vpop.f32.mrb[0].mxu0
        %v2248 = vadd.f32 0.0, %v2247
        %v2249 = vpop.f32.mrb[0].mxu0
        %v2250 = vpop.f32.mrb[0].mxu0
        %v2251 = vadd.f32 0.0, %v2250
        %v2252 = vpop.f32.mrb[0].mxu0
        %2253 = vmatprep.mubr.bf16.mxu0 0
        %2254 = vmatmul.mubr.bf16.gmra.mrb[0].mxu0 %v1949
        %v2255 = vpop.f32.mrb[0].mxu0
        %v2256 = vadd.f32 0.0, %v2255
        %v2257 = vpop.f32.mrb[0].mxu0
        %v2258 = vpop.f32.mrb[0].mxu0
        %v2259 = vadd.f32 0.0, %v2258
        %v2260 = vpop.f32.mrb[0].mxu0
        %2261 = vmatprep.mubr.bf16.mxu0 0
        %2262 = vmatmul.mubr.bf16.gmra.mrb[0].mxu0 %v1952
        %v2263 = vpop.f32.mrb[0].mxu0
        %v2264 = vadd.f32 0.0, %v2263
        %v2265 = vpop.f32.mrb[0].mxu0
        %v2266 = vpop.f32.mrb[0].mxu0
        %v2267 = vadd.f32 0.0, %v2266
        %v2268 = vpop.f32.mrb[0].mxu0
        %2269 = vmatprep.mubr.bf16.mxu0 0
        %2270 = vmatmul.mubr.bf16.gmra.mrb[0].mxu0 %v1955
        %v2271 = vpop.f32.mrb[0].mxu0
        %v2272 = vadd.f32 0.0, %v2271
        %v2273 = vpop.f32.mrb[0].mxu0
        %v2274 = vpop.f32.mrb[0].mxu0
        %v2275 = vadd.f32 0.0, %v2274
        %v2276 = vpop.f32.mrb[0].mxu0
        %2277 = vmatprep.mubr.bf16.mxu0 0
        %2278 = vmatmul.mubr.bf16.gmra.mrb[0].mxu0 %v1958
        %v2279 = vpop.f32.mrb[0].mxu0
        %v2280 = vadd.f32 0.0, %v2279
        %v2281 = vpop.f32.mrb[0].mxu0
        %v2282 = vpop.f32.mrb[0].mxu0
        %v2283 = vadd.f32 0.0, %v2282
        %v2284 = vpop.f32.mrb[0].mxu0
        %2285 = vmatprep.mubr.bf16.mxu0 0
        %2286 = vmatmul.mubr.bf16.gmra.mrb[0].mxu0 %v1961
        %v2287 = vpop.f32.mrb[0].mxu0
        %v2288 = vadd.f32 0.0, %v2287
        %v2289 = vpop.f32.mrb[0].mxu0
        %v2290 = vpop.f32.mrb[0].mxu0
        %v2291 = vadd.f32 0.0, %v2290
        %v2292 = vpop.f32.mrb[0].mxu0
        %2293 = vmatprep.mubr.bf16.mxu0 0
        %2294 = vmatmul.mubr.bf16.gmra.mrb[0].mxu0 %v1964
        %v2295 = vpop.f32.mrb[0].mxu0
        %v2296 = vadd.f32 0.0, %v2295
        %v2297 = vpop.f32.mrb[0].mxu0
        %v2298 = vpop.f32.mrb[0].mxu0
        %v2299 = vadd.f32 0.0, %v2298
        %v2300 = vpop.f32.mrb[0].mxu0
        %2301 = vmatprep.mubr.bf16.mxu0 0
        %2302 = vmatmul.mubr.bf16.gmra.mrb[0].mxu0 %v1967
        %v2303 = vpop.f32.mrb[0].mxu0
        %v2304 = vadd.f32 0.0, %v2303
        %v2305 = vpop.f32.mrb[0].mxu0
        %v2306 = vpop.f32.mrb[0].mxu0
        %v2307 = vadd.f32 0.0, %v2306
        %v2308 = vpop.f32.mrb[0].mxu0
        %2309 = vmatprep.mubr.bf16.mxu0 0
        %2310 = vmatmul.mubr.bf16.gmra.mrb[0].mxu0 %v1970
        %v2311 = vpop.f32.mrb[0].mxu0
        %v2312 = vadd.f32 0.0, %v2311
        %v2313 = vpop.f32.mrb[0].mxu0
        %v2314 = vpop.f32.mrb[0].mxu0
        %v2315 = vadd.f32 0.0, %v2314
        %v2316 = vpop.f32.mrb[0].mxu0
        %2317 = vmatprep.mubr.bf16.mxu0 0
        %2318 = vmatmul.mubr.bf16.gmra.mrb[0].mxu0 %v1973
        %v2319 = vpop.f32.mrb[0].mxu0
        %v2320 = vadd.f32 0.0, %v2319
        %v2321 = vpop.f32.mrb[0].mxu0
        %v2322 = vpop.f32.mrb[0].mxu0
        %v2323 = vadd.f32 0.0, %v2322
        %v2324 = vpop.f32.mrb[0].mxu0
        %2325 = vmatprep.mubr.bf16.mxu0 0
        %2326 = vmatmul.mubr.bf16.gmra.mrb[0].mxu0 %v1976
        %v2327 = vpop.f32.mrb[0].mxu0
        %v2328 = vadd.f32 0.0, %v2327
        %v2329 = vpop.f32.mrb[0].mxu0
        %v2330 = vpop.f32.mrb[0].mxu0
        %v2331 = vadd.f32 0.0, %v2330
        %v2332 = vpop.f32.mrb[0].mxu0
        %2333 = vmatprep.mubr.bf16.mxu0 0
        %2334 = vmatmul.mubr.bf16.gmra.mrb[0].mxu0 %v1979
        %v2335 = vpop.f32.mrb[0].mxu0
        %v2336 = vadd.f32 0.0, %v2335
        %v2337 = vpop.f32.mrb[0].mxu0
        %v2338 = vpop.f32.mrb[0].mxu0
        %v2339 = vadd.f32 0.0, %v2338
        %v2340 = vpop.f32.mrb[0].mxu0
        %2341 = vmatprep.mubr.bf16.mxu0 0
        %2342 = vmatmul.mubr.bf16.gmra.mrb[0].mxu0 %v1982
        %v2343 = vpop.f32.mrb[0].mxu0
        %v2344 = vadd.f32 0.0, %v2343
        %v2345 = vpop.f32.mrb[0].mxu0
        %v2346 = vpop.f32.mrb[0].mxu0
        %v2347 = vadd.f32 0.0, %v2346
        %v2348 = vpop.f32.mrb[0].mxu0
        %2349 = vmatprep.mubr.bf16.mxu0 0
        %2350 = vmatmul.mubr.bf16.gmra.mrb[0].mxu0 %v1985
        %v2351 = vpop.f32.mrb[0].mxu0
        %v2352 = vadd.f32 0.0, %v2351
        %v2353 = vpop.f32.mrb[0].mxu0
        %v2354 = vpop.f32.mrb[0].mxu0
        %v2355 = vadd.f32 0.0, %v2354
        %v2356 = vpop.f32.mrb[0].mxu0
        %2357 = vdwg.mxu0
        %v2358 = vadd.f32 %v1842, %v2232
        %v2359 = vadd.f32 %v1843, %v2235
        %v2360 = vadd.f32 %v1844, %v2240
        %v2361 = vadd.f32 %v1845, %v2243
        %v2362 = vadd.f32 %v1846, %v2248
        %v2363 = vadd.f32 %v1847, %v2251
        %v2364 = vadd.f32 %v1848, %v2256
        %v2365 = vadd.f32 %v1849, %v2259
        %v2366 = vadd.f32 %v1850, %v2264
        %v2367 = vadd.f32 %v1851, %v2267
        %v2368 = vadd.f32 %v1852, %v2272
        %v2369 = vadd.f32 %v1853, %v2275
        %v2370 = vadd.f32 %v1854, %v2280
        %v2371 = vadd.f32 %v1855, %v2283
        %v2372 = vadd.f32 %v1856, %v2288
        %v2373 = vadd.f32 %v1857, %v2291
        %v2374 = vadd.f32 %v1858, %v2296
        %v2375 = vadd.f32 %v1859, %v2299
        %v2376 = vadd.f32 %v1860, %v2304
        %v2377 = vadd.f32 %v1861, %v2307
        %v2378 = vadd.f32 %v1862, %v2312
        %v2379 = vadd.f32 %v1863, %v2315
        %v2380 = vadd.f32 %v1864, %v2320
        %v2381 = vadd.f32 %v1865, %v2323
        %v2382 = vadd.f32 %v1866, %v2328
        %v2383 = vadd.f32 %v1867, %v2331
        %v2384 = vadd.f32 %v1868, %v2336
        %v2385 = vadd.f32 %v1869, %v2339
        %v2386 = vadd.f32 %v1870, %v2344
        %v2387 = vadd.f32 %v1871, %v2347
        %v2388 = vadd.f32 %v1872, %v2352
        %v2389 = vadd.f32 %v1873, %v2355
        %v2390 = vld [vmem:[%s452 + $0x4] sm:$0xff]
        %v2391 = vld [vmem:[%s452 + $0xc] sm:$0xff]
        %v2392 = vld [vmem:[%s452 + $0x14] sm:$0xff]
        %v2393 = vld [vmem:[%s452 + $0x1c] sm:$0xff]
        %v2394 = vld [vmem:[%s452 + $0x24] sm:$0xff]
        %v2395 = vld [vmem:[%s452 + $0x2c] sm:$0xff]
        %v2396 = vld [vmem:[%s452 + $0x34] sm:$0xff]
        %v2397 = vld [vmem:[%s452 + $0x3c] sm:$0xff]
        %v2398 = vld [vmem:[%s452 + $0x44] sm:$0xff]
        %v2399 = vld [vmem:[%s452 + $0x4c] sm:$0xff]
        %v2400 = vld [vmem:[%s452 + $0x54] sm:$0xff]
        %v2401 = vld [vmem:[%s452 + $0x5c] sm:$0xff]
        %v2402 = vld [vmem:[%s452 + $0x64] sm:$0xff]
        %v2403 = vld [vmem:[%s452 + $0x6c] sm:$0xff]
        %v2404 = vld [vmem:[%s452 + $0x74] sm:$0xff]
        %v2405 = vld [vmem:[%s452 + $0x7c] sm:$0xff]
        %v2406 = vld [vmem:[%s452 + $0x84] sm:$0xff]
        %v2407 = vld [vmem:[%s452 + $0x8c] sm:$0xff]
        %v2408 = vld [vmem:[%s452 + $0x94] sm:$0xff]
        %v2409 = vld [vmem:[%s452 + $0x9c] sm:$0xff]
        %v2410 = vld [vmem:[%s452 + $0xa4] sm:$0xff]
        %v2411 = vld [vmem:[%s452 + $0xac] sm:$0xff]
        %v2412 = vld [vmem:[%s452 + $0xb4] sm:$0xff]
        %v2413 = vld [vmem:[%s452 + $0xbc] sm:$0xff]
        %v2414 = vld [vmem:[%s452 + $0xc4] sm:$0xff]
        %v2415 = vld [vmem:[%s452 + $0xcc] sm:$0xff]
        %v2416 = vld [vmem:[%s452 + $0xd4] sm:$0xff]
        %v2417 = vld [vmem:[%s452 + $0xdc] sm:$0xff]
        %v2418 = vld [vmem:[%s452 + $0xe4] sm:$0xff]
        %v2419 = vld [vmem:[%s452 + $0xec] sm:$0xff]
        %v2420 = vld [vmem:[%s452 + $0xf4] sm:$0xff]
        %v2421 = vld [vmem:[%s452 + $0xfc] sm:$0xf]
        %v2422 = vpack.c.bf16 %v2391, %v2390
        %v2423 = vpack.c.bf16 %v2393, %v2392
        %v2424 = vpack.c.bf16 %v2395, %v2394
        %v2425 = vpack.c.bf16 %v2397, %v2396
        %v2426 = vpack.c.bf16 %v2399, %v2398
        %v2427 = vpack.c.bf16 %v2401, %v2400
        %v2428 = vpack.c.bf16 %v2403, %v2402
        %v2429 = vpack.c.bf16 %v2405, %v2404
        %v2430 = vpack.c.bf16 %v2407, %v2406
        %v2431 = vpack.c.bf16 %v2409, %v2408
        %v2432 = vpack.c.bf16 %v2411, %v2410
        %v2433 = vpack.c.bf16 %v2413, %v2412
        %v2434 = vpack.c.bf16 %v2415, %v2414
        %v2435 = vpack.c.bf16 %v2417, %v2416
        %v2436 = vpack.c.bf16 %v2419, %v2418
        %v2437 = vpack.c.bf16 %v2421, %v2420
        %s2438 = scalar_lea.vmem %s1, 64
        %v2439 = vld [vmem:[%s2438] sm:$0xf]
        %v2440 = vld [vmem:[%s2438 + $0x4] sm:$0xf]
        %v2441 = vld [vmem:[%s2438 + $0x8] sm:$0xf]
        %v2442 = vld [vmem:[%s2438 + $0xc] sm:$0xf]
        %v2447 = vunpack.c.l.b16 %v2439
        %v2448 = vunpack.c.l.b16 %v2440
        %v2449 = vunpack.c.l.b16 %v2441
        %v2450 = vunpack.c.l.b16 %v2442
        %v2451 = vpack.c.b16 %v2448, %v2447
        %v2452 = vpack.c.b16 %v2450, %v2449
        %v2456 = vsel %vm576, %v2422, 0
        %v2459 = vsel %vm576, %v2423, 0
        %v2462 = vsel %vm576, %v2424, 0
        %v2465 = vsel %vm576, %v2425, 0
        %v2468 = vsel %vm576, %v2426, 0
        %v2471 = vsel %vm576, %v2427, 0
        %v2474 = vsel %vm576, %v2428, 0
        %v2477 = vsel %vm576, %v2429, 0
        %v2480 = vsel %vm576, %v2430, 0
        %v2483 = vsel %vm576, %v2431, 0
        %v2486 = vsel %vm576, %v2432, 0
        %v2489 = vsel %vm576, %v2433, 0
        %v2492 = vsel %vm576, %v2434, 0
        %v2495 = vsel %vm576, %v2435, 0
        %v2498 = vsel %vm576, %v2436, 0
        %v2501 = vsel %vm576, %v2437, 0
        %2503 = vmatprep.subr.bf16.mxu0 0
        %2504 = vmatpush1.bf16.msra.mxu0 %v2451
        %2505 = vmatprep.subr.bf16.mxu0 0
        %2506 = vmatpush1.bf16.msra.mxu0 %v2452
        %2507 = vmatprep.subr.bf16.mxu0 0
        %2508 = vmatpush1.bf16.msra.mxu0 0
        %2509 = vmatprep.subr.bf16.mxu0 0
        %2510 = vmatpush1.bf16.msra.mxu0 0
        %2511 = vmatprep.subr.bf16.mxu0 0
        %2512 = vmatpush1.bf16.msra.mxu0 0
        %2513 = vmatprep.subr.bf16.mxu0 0
        %2514 = vmatpush1.bf16.msra.mxu0 0
        %2515 = vmatprep.subr.bf16.mxu0 0
        %2516 = vmatpush1.bf16.msra.mxu0 0
        %2517 = vmatprep.subr.bf16.mxu0 0
        %2518 = vmatpush1.bf16.msra.mxu0 0
        %2519 = vmatprep.subr.bf16.mxu0 0
        %2520 = vmatpush1.bf16.msra.mxu0 0
        %2521 = vmatprep.subr.bf16.mxu0 0
        %2522 = vmatpush1.bf16.msra.mxu0 0
        %2523 = vmatprep.subr.bf16.mxu0 0
        %2524 = vmatpush1.bf16.msra.mxu0 0
        %2525 = vmatprep.subr.bf16.mxu0 0
        %2526 = vmatpush1.bf16.msra.mxu0 0
        %2527 = vmatprep.subr.bf16.mxu0 0
        %2528 = vmatpush1.bf16.msra.mxu0 0
        %2529 = vmatprep.subr.bf16.mxu0 0
        %2530 = vmatpush1.bf16.msra.mxu0 0
        %2531 = vmatprep.subr.bf16.mxu0 0
        %2532 = vmatpush1.bf16.msra.mxu0 0
        %2533 = vmatprep.subr.bf16.mxu0 0
        %2534 = vmatpush1.bf16.msra.mxu0 0
        %2535 = vmatprep.mubr.bf16.mxu0 0
        %2536 = vmatmul.mubr.bf16.gmra.mrb[0].mxu0 %v2456
        %v2537 = vpop.f32.mrb[0].mxu0
        %v2538 = vadd.f32 0.0, %v2537
        %v2539 = vpop.f32.mrb[0].mxu0
        %v2540 = vpop.f32.mrb[0].mxu0
        %v2541 = vadd.f32 0.0, %v2540
        %v2542 = vpop.f32.mrb[0].mxu0
        %2543 = vmatprep.mubr.bf16.mxu0 0
        %2544 = vmatmul.mubr.bf16.gmra.mrb[0].mxu0 %v2459
        %v2545 = vpop.f32.mrb[0].mxu0
        %v2546 = vadd.f32 0.0, %v2545
        %v2547 = vpop.f32.mrb[0].mxu0
        %v2548 = vpop.f32.mrb[0].mxu0
        %v2549 = vadd.f32 0.0, %v2548
        %v2550 = vpop.f32.mrb[0].mxu0
        %2551 = vmatprep.mubr.bf16.mxu0 0
        %2552 = vmatmul.mubr.bf16.gmra.mrb[0].mxu0 %v2462
        %v2553 = vpop.f32.mrb[0].mxu0
        %v2554 = vadd.f32 0.0, %v2553
        %v2555 = vpop.f32.mrb[0].mxu0
        %v2556 = vpop.f32.mrb[0].mxu0
        %v2557 = vadd.f32 0.0, %v2556
        %v2558 = vpop.f32.mrb[0].mxu0
        %2559 = vmatprep.mubr.bf16.mxu0 0
        %2560 = vmatmul.mubr.bf16.gmra.mrb[0].mxu0 %v2465
        %v2561 = vpop.f32.mrb[0].mxu0
        %v2562 = vadd.f32 0.0, %v2561
        %v2563 = vpop.f32.mrb[0].mxu0
        %v2564 = vpop.f32.mrb[0].mxu0
        %v2565 = vadd.f32 0.0, %v2564
        %v2566 = vpop.f32.mrb[0].mxu0
        %2567 = vmatprep.mubr.bf16.mxu0 0
        %2568 = vmatmul.mubr.bf16.gmra.mrb[0].mxu0 %v2468
        %v2569 = vpop.f32.mrb[0].mxu0
        %v2570 = vadd.f32 0.0, %v2569
        %v2571 = vpop.f32.mrb[0].mxu0
        %v2572 = vpop.f32.mrb[0].mxu0
        %v2573 = vadd.f32 0.0, %v2572
        %v2574 = vpop.f32.mrb[0].mxu0
        %2575 = vmatprep.mubr.bf16.mxu0 0
        %2576 = vmatmul.mubr.bf16.gmra.mrb[0].mxu0 %v2471
        %v2577 = vpop.f32.mrb[0].mxu0
        %v2578 = vadd.f32 0.0, %v2577
        %v2579 = vpop.f32.mrb[0].mxu0
        %v2580 = vpop.f32.mrb[0].mxu0
        %v2581 = vadd.f32 0.0, %v2580
        %v2582 = vpop.f32.mrb[0].mxu0
        %2583 = vmatprep.mubr.bf16.mxu0 0
        %2584 = vmatmul.mubr.bf16.gmra.mrb[0].mxu0 %v2474
        %v2585 = vpop.f32.mrb[0].mxu0
        %v2586 = vadd.f32 0.0, %v2585
        %v2587 = vpop.f32.mrb[0].mxu0
        %v2588 = vpop.f32.mrb[0].mxu0
        %v2589 = vadd.f32 0.0, %v2588
        %v2590 = vpop.f32.mrb[0].mxu0
        %2591 = vmatprep.mubr.bf16.mxu0 0
        %2592 = vmatmul.mubr.bf16.gmra.mrb[0].mxu0 %v2477
        %v2593 = vpop.f32.mrb[0].mxu0
        %v2594 = vadd.f32 0.0, %v2593
        %v2595 = vpop.f32.mrb[0].mxu0
        %v2596 = vpop.f32.mrb[0].mxu0
        %v2597 = vadd.f32 0.0, %v2596
        %v2598 = vpop.f32.mrb[0].mxu0
        %2599 = vmatprep.mubr.bf16.mxu0 0
        %2600 = vmatmul.mubr.bf16.gmra.mrb[0].mxu0 %v2480
        %v2601 = vpop.f32.mrb[0].mxu0
        %v2602 = vadd.f32 0.0, %v2601
        %v2603 = vpop.f32.mrb[0].mxu0
        %v2604 = vpop.f32.mrb[0].mxu0
        %v2605 = vadd.f32 0.0, %v2604
        %v2606 = vpop.f32.mrb[0].mxu0
        %2607 = vmatprep.mubr.bf16.mxu0 0
        %2608 = vmatmul.mubr.bf16.gmra.mrb[0].mxu0 %v2483
        %v2609 = vpop.f32.mrb[0].mxu0
        %v2610 = vadd.f32 0.0, %v2609
        %v2611 = vpop.f32.mrb[0].mxu0
        %v2612 = vpop.f32.mrb[0].mxu0
        %v2613 = vadd.f32 0.0, %v2612
        %v2614 = vpop.f32.mrb[0].mxu0
        %2615 = vmatprep.mubr.bf16.mxu0 0
        %2616 = vmatmul.mubr.bf16.gmra.mrb[0].mxu0 %v2486
        %v2617 = vpop.f32.mrb[0].mxu0
        %v2618 = vadd.f32 0.0, %v2617
        %v2619 = vpop.f32.mrb[0].mxu0
        %v2620 = vpop.f32.mrb[0].mxu0
        %v2621 = vadd.f32 0.0, %v2620
        %v2622 = vpop.f32.mrb[0].mxu0
        %2623 = vmatprep.mubr.bf16.mxu0 0
        %2624 = vmatmul.mubr.bf16.gmra.mrb[0].mxu0 %v2489
        %v2625 = vpop.f32.mrb[0].mxu0
        %v2626 = vadd.f32 0.0, %v2625
        %v2627 = vpop.f32.mrb[0].mxu0
        %v2628 = vpop.f32.mrb[0].mxu0
        %v2629 = vadd.f32 0.0, %v2628
        %v2630 = vpop.f32.mrb[0].mxu0
        %2631 = vmatprep.mubr.bf16.mxu0 0
        %2632 = vmatmul.mubr.bf16.gmra.mrb[0].mxu0 %v2492
        %v2633 = vpop.f32.mrb[0].mxu0
        %v2634 = vadd.f32 0.0, %v2633
        %v2635 = vpop.f32.mrb[0].mxu0
        %v2636 = vpop.f32.mrb[0].mxu0
        %v2637 = vadd.f32 0.0, %v2636
        %v2638 = vpop.f32.mrb[0].mxu0
        %2639 = vmatprep.mubr.bf16.mxu0 0
        %2640 = vmatmul.mubr.bf16.gmra.mrb[0].mxu0 %v2495
        %v2641 = vpop.f32.mrb[0].mxu0
        %v2642 = vadd.f32 0.0, %v2641
        %v2643 = vpop.f32.mrb[0].mxu0
        %v2644 = vpop.f32.mrb[0].mxu0
        %v2645 = vadd.f32 0.0, %v2644
        %v2646 = vpop.f32.mrb[0].mxu0
        %2647 = vmatprep.mubr.bf16.mxu0 0
        %2648 = vmatmul.mubr.bf16.gmra.mrb[0].mxu0 %v2498
        %v2649 = vpop.f32.mrb[0].mxu0
        %v2650 = vadd.f32 0.0, %v2649
        %v2651 = vpop.f32.mrb[0].mxu0
        %v2652 = vpop.f32.mrb[0].mxu0
        %v2653 = vadd.f32 0.0, %v2652
        %v2654 = vpop.f32.mrb[0].mxu0
        %2655 = vmatprep.mubr.bf16.mxu0 0
        %2656 = vmatmul.mubr.bf16.gmra.mrb[0].mxu0 %v2501
        %v2657 = vpop.f32.mrb[0].mxu0
        %v2658 = vadd.f32 0.0, %v2657
        %v2659 = vpop.f32.mrb[0].mxu0
        %v2660 = vpop.f32.mrb[0].mxu0
        %v2661 = vadd.f32 0.0, %v2660
        %v2662 = vpop.f32.mrb[0].mxu0
        %2663 = vdwg.mxu0
        %v2664 = vadd.f32 %v2148, %v2538
        %v2665 = vadd.f32 %v2149, %v2541
        %v2666 = vadd.f32 %v2150, %v2546
        %v2667 = vadd.f32 %v2151, %v2549
        %v2668 = vadd.f32 %v2152, %v2554
        %v2669 = vadd.f32 %v2153, %v2557
        %v2670 = vadd.f32 %v2154, %v2562
        %v2671 = vadd.f32 %v2155, %v2565
        %v2672 = vadd.f32 %v2156, %v2570
        %v2673 = vadd.f32 %v2157, %v2573
        %v2674 = vadd.f32 %v2158, %v2578
        %v2675 = vadd.f32 %v2159, %v2581
        %v2676 = vadd.f32 %v2160, %v2586
        %v2677 = vadd.f32 %v2161, %v2589
        %v2678 = vadd.f32 %v2162, %v2594
        %v2679 = vadd.f32 %v2163, %v2597
        %v2680 = vadd.f32 %v2164, %v2602
        %v2681 = vadd.f32 %v2165, %v2605
        %v2682 = vadd.f32 %v2166, %v2610
        %v2683 = vadd.f32 %v2167, %v2613
        %v2684 = vadd.f32 %v2168, %v2618
        %v2685 = vadd.f32 %v2169, %v2621
        %v2686 = vadd.f32 %v2170, %v2626
        %v2687 = vadd.f32 %v2171, %v2629
        %v2688 = vadd.f32 %v2172, %v2634
        %v2689 = vadd.f32 %v2173, %v2637
        %v2690 = vadd.f32 %v2174, %v2642
        %v2691 = vadd.f32 %v2175, %v2645
        %v2692 = vadd.f32 %v2176, %v2650
        %v2693 = vadd.f32 %v2177, %v2653
        %v2694 = vadd.f32 %v2178, %v2658
        %v2695 = vadd.f32 %v2179, %v2661
        %s2696 = scalar_lea.vmem %s2, 64
        %v2697 = vld [vmem:[%s2696] sm:$0xf]
        %v2698 = vld [vmem:[%s2696 + $0x4] sm:$0xf]
        %v2699 = vld [vmem:[%s2696 + $0x8] sm:$0xf]
        %v2700 = vld [vmem:[%s2696 + $0xc] sm:$0xf]
        %v2705 = vunpack.c.l.b16 %v2697
        %v2706 = vunpack.c.l.b16 %v2698
        %v2707 = vunpack.c.l.b16 %v2699
        %v2708 = vunpack.c.l.b16 %v2700
        %v2709 = vpack.c.b16 %v2706, %v2705
        %v2710 = vpack.c.b16 %v2708, %v2707
        %2713 = vmatprep.subr.bf16.mxu0 0
        %2714 = vmatpush1.bf16.msra.mxu0 %v2709
        %2715 = vmatprep.subr.bf16.mxu0 0
        %2716 = vmatpush1.bf16.msra.mxu0 %v2710
        %2717 = vmatprep.subr.bf16.mxu0 0
        %2718 = vmatpush1.bf16.msra.mxu0 0
        %2719 = vmatprep.subr.bf16.mxu0 0
        %2720 = vmatpush1.bf16.msra.mxu0 0
        %2721 = vmatprep.subr.bf16.mxu0 0
        %2722 = vmatpush1.bf16.msra.mxu0 0
        %2723 = vmatprep.subr.bf16.mxu0 0
        %2724 = vmatpush1.bf16.msra.mxu0 0
        %2725 = vmatprep.subr.bf16.mxu0 0
        %2726 = vmatpush1.bf16.msra.mxu0 0
        %2727 = vmatprep.subr.bf16.mxu0 0
        %2728 = vmatpush1.bf16.msra.mxu0 0
        %2729 = vmatprep.subr.bf16.mxu0 0
        %2730 = vmatpush1.bf16.msra.mxu0 0
        %2731 = vmatprep.subr.bf16.mxu0 0
        %2732 = vmatpush1.bf16.msra.mxu0 0
        %2733 = vmatprep.subr.bf16.mxu0 0
        %2734 = vmatpush1.bf16.msra.mxu0 0
        %2735 = vmatprep.subr.bf16.mxu0 0
        %2736 = vmatpush1.bf16.msra.mxu0 0
        %2737 = vmatprep.subr.bf16.mxu0 0
        %2738 = vmatpush1.bf16.msra.mxu0 0
        %2739 = vmatprep.subr.bf16.mxu0 0
        %2740 = vmatpush1.bf16.msra.mxu0 0
        %2741 = vmatprep.subr.bf16.mxu0 0
        %2742 = vmatpush1.bf16.msra.mxu0 0
        %2743 = vmatprep.subr.bf16.mxu0 0
        %2744 = vmatpush1.bf16.msra.mxu0 0
        %2745 = vmatprep.mubr.bf16.mxu0 0
        %2746 = vmatmul.mubr.bf16.gmra.mrb[0].mxu0 %v2456
        %v2747 = vpop.f32.mrb[0].mxu0
        %v2748 = vadd.f32 0.0, %v2747
        %v2749 = vpop.f32.mrb[0].mxu0
        %v2750 = vpop.f32.mrb[0].mxu0
        %v2751 = vadd.f32 0.0, %v2750
        %v2752 = vpop.f32.mrb[0].mxu0
        %2753 = vmatprep.mubr.bf16.mxu0 0
        %2754 = vmatmul.mubr.bf16.gmra.mrb[0].mxu0 %v2459
        %v2755 = vpop.f32.mrb[0].mxu0
        %v2756 = vadd.f32 0.0, %v2755
        %v2757 = vpop.f32.mrb[0].mxu0
        %v2758 = vpop.f32.mrb[0].mxu0
        %v2759 = vadd.f32 0.0, %v2758
        %v2760 = vpop.f32.mrb[0].mxu0
        %2761 = vmatprep.mubr.bf16.mxu0 0
        %2762 = vmatmul.mubr.bf16.gmra.mrb[0].mxu0 %v2462
        %v2763 = vpop.f32.mrb[0].mxu0
        %v2764 = vadd.f32 0.0, %v2763
        %v2765 = vpop.f32.mrb[0].mxu0
        %v2766 = vpop.f32.mrb[0].mxu0
        %v2767 = vadd.f32 0.0, %v2766
        %v2768 = vpop.f32.mrb[0].mxu0
        %2769 = vmatprep.mubr.bf16.mxu0 0
        %2770 = vmatmul.mubr.bf16.gmra.mrb[0].mxu0 %v2465
        %v2771 = vpop.f32.mrb[0].mxu0
        %v2772 = vadd.f32 0.0, %v2771
        %v2773 = vpop.f32.mrb[0].mxu0
        %v2774 = vpop.f32.mrb[0].mxu0
        %v2775 = vadd.f32 0.0, %v2774
        %v2776 = vpop.f32.mrb[0].mxu0
        %2777 = vmatprep.mubr.bf16.mxu0 0
        %2778 = vmatmul.mubr.bf16.gmra.mrb[0].mxu0 %v2468
        %v2779 = vpop.f32.mrb[0].mxu0
        %v2780 = vadd.f32 0.0, %v2779
        %v2781 = vpop.f32.mrb[0].mxu0
        %v2782 = vpop.f32.mrb[0].mxu0
        %v2783 = vadd.f32 0.0, %v2782
        %v2784 = vpop.f32.mrb[0].mxu0
        %2785 = vmatprep.mubr.bf16.mxu0 0
        %2786 = vmatmul.mubr.bf16.gmra.mrb[0].mxu0 %v2471
        %v2787 = vpop.f32.mrb[0].mxu0
        %v2788 = vadd.f32 0.0, %v2787
        %v2789 = vpop.f32.mrb[0].mxu0
        %v2790 = vpop.f32.mrb[0].mxu0
        %v2791 = vadd.f32 0.0, %v2790
        %v2792 = vpop.f32.mrb[0].mxu0
        %2793 = vmatprep.mubr.bf16.mxu0 0
        %2794 = vmatmul.mubr.bf16.gmra.mrb[0].mxu0 %v2474
        %v2795 = vpop.f32.mrb[0].mxu0
        %v2796 = vadd.f32 0.0, %v2795
        %v2797 = vpop.f32.mrb[0].mxu0
        %v2798 = vpop.f32.mrb[0].mxu0
        %v2799 = vadd.f32 0.0, %v2798
        %v2800 = vpop.f32.mrb[0].mxu0
        %2801 = vmatprep.mubr.bf16.mxu0 0
        %2802 = vmatmul.mubr.bf16.gmra.mrb[0].mxu0 %v2477
        %v2803 = vpop.f32.mrb[0].mxu0
        %v2804 = vadd.f32 0.0, %v2803
        %v2805 = vpop.f32.mrb[0].mxu0
        %v2806 = vpop.f32.mrb[0].mxu0
        %v2807 = vadd.f32 0.0, %v2806
        %v2808 = vpop.f32.mrb[0].mxu0
        %2809 = vmatprep.mubr.bf16.mxu0 0
        %2810 = vmatmul.mubr.bf16.gmra.mrb[0].mxu0 %v2480
        %v2811 = vpop.f32.mrb[0].mxu0
        %v2812 = vadd.f32 0.0, %v2811
        %v2813 = vpop.f32.mrb[0].mxu0
        %v2814 = vpop.f32.mrb[0].mxu0
        %v2815 = vadd.f32 0.0, %v2814
        %v2816 = vpop.f32.mrb[0].mxu0
        %2817 = vmatprep.mubr.bf16.mxu0 0
        %2818 = vmatmul.mubr.bf16.gmra.mrb[0].mxu0 %v2483
        %v2819 = vpop.f32.mrb[0].mxu0
        %v2820 = vadd.f32 0.0, %v2819
        %v2821 = vpop.f32.mrb[0].mxu0
        %v2822 = vpop.f32.mrb[0].mxu0
        %v2823 = vadd.f32 0.0, %v2822
        %v2824 = vpop.f32.mrb[0].mxu0
        %2825 = vmatprep.mubr.bf16.mxu0 0
        %2826 = vmatmul.mubr.bf16.gmra.mrb[0].mxu0 %v2486
        %v2827 = vpop.f32.mrb[0].mxu0
        %v2828 = vadd.f32 0.0, %v2827
        %v2829 = vpop.f32.mrb[0].mxu0
        %v2830 = vpop.f32.mrb[0].mxu0
        %v2831 = vadd.f32 0.0, %v2830
        %v2832 = vpop.f32.mrb[0].mxu0
        %2833 = vmatprep.mubr.bf16.mxu0 0
        %2834 = vmatmul.mubr.bf16.gmra.mrb[0].mxu0 %v2489
        %v2835 = vpop.f32.mrb[0].mxu0
        %v2836 = vadd.f32 0.0, %v2835
        %v2837 = vpop.f32.mrb[0].mxu0
        %v2838 = vpop.f32.mrb[0].mxu0
        %v2839 = vadd.f32 0.0, %v2838
        %v2840 = vpop.f32.mrb[0].mxu0
        %2841 = vmatprep.mubr.bf16.mxu0 0
        %2842 = vmatmul.mubr.bf16.gmra.mrb[0].mxu0 %v2492
        %v2843 = vpop.f32.mrb[0].mxu0
        %v2844 = vadd.f32 0.0, %v2843
        %v2845 = vpop.f32.mrb[0].mxu0
        %v2846 = vpop.f32.mrb[0].mxu0
        %v2847 = vadd.f32 0.0, %v2846
        %v2848 = vpop.f32.mrb[0].mxu0
        %2849 = vmatprep.mubr.bf16.mxu0 0
        %2850 = vmatmul.mubr.bf16.gmra.mrb[0].mxu0 %v2495
        %v2851 = vpop.f32.mrb[0].mxu0
        %v2852 = vadd.f32 0.0, %v2851
        %v2853 = vpop.f32.mrb[0].mxu0
        %v2854 = vpop.f32.mrb[0].mxu0
        %v2855 = vadd.f32 0.0, %v2854
        %v2856 = vpop.f32.mrb[0].mxu0
        %2857 = vmatprep.mubr.bf16.mxu0 0
        %2858 = vmatmul.mubr.bf16.gmra.mrb[0].mxu0 %v2498
        %v2859 = vpop.f32.mrb[0].mxu0
        %v2860 = vadd.f32 0.0, %v2859
        %v2861 = vpop.f32.mrb[0].mxu0
        %v2862 = vpop.f32.mrb[0].mxu0
        %v2863 = vadd.f32 0.0, %v2862
        %v2864 = vpop.f32.mrb[0].mxu0
        %2865 = vmatprep.mubr.bf16.mxu0 0
        %2866 = vmatmul.mubr.bf16.gmra.mrb[0].mxu0 %v2501
        %v2867 = vpop.f32.mrb[0].mxu0
        %v2868 = vadd.f32 0.0, %v2867
        %v2869 = vpop.f32.mrb[0].mxu0
        %v2870 = vpop.f32.mrb[0].mxu0
        %v2871 = vadd.f32 0.0, %v2870
        %v2872 = vpop.f32.mrb[0].mxu0
        %2873 = vdwg.mxu0
        %v2874 = vadd.f32 %v2358, %v2748
        %v2875 = vadd.f32 %v2359, %v2751
        %v2876 = vadd.f32 %v2360, %v2756
        %v2877 = vadd.f32 %v2361, %v2759
        %v2878 = vadd.f32 %v2362, %v2764
        %v2879 = vadd.f32 %v2363, %v2767
        %v2880 = vadd.f32 %v2364, %v2772
        %v2881 = vadd.f32 %v2365, %v2775
        %v2882 = vadd.f32 %v2366, %v2780
        %v2883 = vadd.f32 %v2367, %v2783
        %v2884 = vadd.f32 %v2368, %v2788
        %v2885 = vadd.f32 %v2369, %v2791
        %v2886 = vadd.f32 %v2370, %v2796
        %v2887 = vadd.f32 %v2371, %v2799
        %v2888 = vadd.f32 %v2372, %v2804
        %v2889 = vadd.f32 %v2373, %v2807
        %v2890 = vadd.f32 %v2374, %v2812
        %v2891 = vadd.f32 %v2375, %v2815
        %v2892 = vadd.f32 %v2376, %v2820
        %v2893 = vadd.f32 %v2377, %v2823
        %v2894 = vadd.f32 %v2378, %v2828
        %v2895 = vadd.f32 %v2379, %v2831
        %v2896 = vadd.f32 %v2380, %v2836
        %v2897 = vadd.f32 %v2381, %v2839
        %v2898 = vadd.f32 %v2382, %v2844
        %v2899 = vadd.f32 %v2383, %v2847
        %v2900 = vadd.f32 %v2384, %v2852
        %v2901 = vadd.f32 %v2385, %v2855
        %v2902 = vadd.f32 %v2386, %v2860
        %v2903 = vadd.f32 %v2387, %v2863
        %v2904 = vadd.f32 %v2388, %v2868
        %v2905 = vadd.f32 %v2389, %v2871
        %v2906 = vmax.f32 %v2664, %v2874
        %v2907 = vmax.f32 %v2665, %v2875
        %v2908 = vmax.f32 %v2666, %v2876
        %v2909 = vmax.f32 %v2667, %v2877
        %v2910 = vmax.f32 %v2668, %v2878
        %v2911 = vmax.f32 %v2669, %v2879
        %v2912 = vmax.f32 %v2670, %v2880
        %v2913 = vmax.f32 %v2671, %v2881
        %v2914 = vmax.f32 %v2672, %v2882
        %v2915 = vmax.f32 %v2673, %v2883
        %v2916 = vmax.f32 %v2674, %v2884
        %v2917 = vmax.f32 %v2675, %v2885
        %v2918 = vmax.f32 %v2676, %v2886
        %v2919 = vmax.f32 %v2677, %v2887
        %v2920 = vmax.f32 %v2678, %v2888
        %v2921 = vmax.f32 %v2679, %v2889
        %v2922 = vmax.f32 %v2680, %v2890
        %v2923 = vmax.f32 %v2681, %v2891
        %v2924 = vmax.f32 %v2682, %v2892
        %v2925 = vmax.f32 %v2683, %v2893
        %v2926 = vmax.f32 %v2684, %v2894
        %v2927 = vmax.f32 %v2685, %v2895
        %v2928 = vmax.f32 %v2686, %v2896
        %v2929 = vmax.f32 %v2687, %v2897
        %v2930 = vmax.f32 %v2688, %v2898
        %v2931 = vmax.f32 %v2689, %v2899
        %v2932 = vmax.f32 %v2690, %v2900
        %v2933 = vmax.f32 %v2691, %v2901
        %v2934 = vmax.f32 %v2692, %v2902
        %v2935 = vmax.f32 %v2693, %v2903
        %v2936 = vmax.f32 %v2694, %v2904
        %v2937 = vmax.f32 %v2695, %v2905
        %vm2938 = vcmask 687104
        %2939 = vst.msk [vmem:[#allocation2] sm:$0xff] %vm2938, %v2906
        %2940 = vst.msk [vmem:[#allocation2 + $0x8] sm:$0xff] %vm2938, %v2907
        %2941 = vst.msk [vmem:[#allocation2 + $0x10] sm:$0xff] %vm2938, %v2908
        %2942 = vst.msk [vmem:[#allocation2 + $0x18] sm:$0xff] %vm2938, %v2909
        %2943 = vst.msk [vmem:[#allocation2 + $0x20] sm:$0xff] %vm2938, %v2910
        %2944 = vst.msk [vmem:[#allocation2 + $0x28] sm:$0xff] %vm2938, %v2911
        %2945 = vst.msk [vmem:[#allocation2 + $0x30] sm:$0xff] %vm2938, %v2912
        %2946 = vst.msk [vmem:[#allocation2 + $0x38] sm:$0xff] %vm2938, %v2913
        %2947 = vst.msk [vmem:[#allocation2 + $0x40] sm:$0xff] %vm2938, %v2914
        %2948 = vst.msk [vmem:[#allocation2 + $0x48] sm:$0xff] %vm2938, %v2915
        %2949 = vst.msk [vmem:[#allocation2 + $0x50] sm:$0xff] %vm2938, %v2916
        %2950 = vst.msk [vmem:[#allocation2 + $0x58] sm:$0xff] %vm2938, %v2917
        %2951 = vst.msk [vmem:[#allocation2 + $0x60] sm:$0xff] %vm2938, %v2918
        %2952 = vst.msk [vmem:[#allocation2 + $0x68] sm:$0xff] %vm2938, %v2919
        %2953 = vst.msk [vmem:[#allocation2 + $0x70] sm:$0xff] %vm2938, %v2920
        %2954 = vst.msk [vmem:[#allocation2 + $0x78] sm:$0xff] %vm2938, %v2921
        %2955 = vst.msk [vmem:[#allocation2 + $0x80] sm:$0xff] %vm2938, %v2922
        %2956 = vst.msk [vmem:[#allocation2 + $0x88] sm:$0xff] %vm2938, %v2923
        %2957 = vst.msk [vmem:[#allocation2 + $0x90] sm:$0xff] %vm2938, %v2924
        %2958 = vst.msk [vmem:[#allocation2 + $0x98] sm:$0xff] %vm2938, %v2925
        %2959 = vst.msk [vmem:[#allocation2 + $0xa0] sm:$0xff] %vm2938, %v2926
        %2960 = vst.msk [vmem:[#allocation2 + $0xa8] sm:$0xff] %vm2938, %v2927
        %2961 = vst.msk [vmem:[#allocation2 + $0xb0] sm:$0xff] %vm2938, %v2928
        %2962 = vst.msk [vmem:[#allocation2 + $0xb8] sm:$0xff] %vm2938, %v2929
        %2963 = vst.msk [vmem:[#allocation2 + $0xc0] sm:$0xff] %vm2938, %v2930
        %2964 = vst.msk [vmem:[#allocation2 + $0xc8] sm:$0xff] %vm2938, %v2931
        %2965 = vst.msk [vmem:[#allocation2 + $0xd0] sm:$0xff] %vm2938, %v2932
        %2966 = vst.msk [vmem:[#allocation2 + $0xd8] sm:$0xff] %vm2938, %v2933
        %2967 = vst.msk [vmem:[#allocation2 + $0xe0] sm:$0xff] %vm2938, %v2934
        %2968 = vst.msk [vmem:[#allocation2 + $0xe8] sm:$0xff] %vm2938, %v2935
        %2969 = vst.msk [vmem:[#allocation2 + $0xf0] sm:$0xff] %vm2938, %v2936
        %vm2970 = vcmask 683008
        %2971 = vst.msk [vmem:[#allocation2 + $0xf8] sm:$0xf] %vm2970, %v2937
        %2972 = vst.msk [vmem:[#allocation2 + $0xfc] sm:$0xf] %vm2970, 0.0
        %v2973 = vld [vmem:[#allocation2] ss:$2 sm:$0xff]
        %s2974 = scalar_lea.vmem [#allocation2], 16
        %v2975 = vld [vmem:[%s2974] ss:$2 sm:$0xff]
        %s2976 = scalar_lea.vmem [#allocation2], 32
        %v2977 = vld [vmem:[%s2976] ss:$2 sm:$0xff]
        %s2978 = scalar_lea.vmem [#allocation2], 48
        %v2979 = vld [vmem:[%s2978] ss:$2 sm:$0xff]
        %s2980 = scalar_lea.vmem [#allocation2], 64
        %v2981 = vld [vmem:[%s2980] ss:$2 sm:$0xff]
        %s2982 = scalar_lea.vmem [#allocation2], 80
        %v2983 = vld [vmem:[%s2982] ss:$2 sm:$0xff]
        %s2984 = scalar_lea.vmem [#allocation2], 96
        %v2985 = vld [vmem:[%s2984] ss:$2 sm:$0xff]
        %s2986 = scalar_lea.vmem [#allocation2], 112
        %v2987 = vld [vmem:[%s2986] ss:$2 sm:$0xff]
        %s2988 = scalar_lea.vmem [#allocation2], 128
        %v2989 = vld [vmem:[%s2988] ss:$2 sm:$0xff]
        %s2990 = scalar_lea.vmem [#allocation2], 144
        %v2991 = vld [vmem:[%s2990] ss:$2 sm:$0xff]
        %s2992 = scalar_lea.vmem [#allocation2], 160
        %v2993 = vld [vmem:[%s2992] ss:$2 sm:$0xff]
        %s2994 = scalar_lea.vmem [#allocation2], 176
        %v2995 = vld [vmem:[%s2994] ss:$2 sm:$0xff]
        %s2996 = scalar_lea.vmem [#allocation2], 192
        %v2997 = vld [vmem:[%s2996] ss:$2 sm:$0xff]
        %s2998 = scalar_lea.vmem [#allocation2], 208
        %v2999 = vld [vmem:[%s2998] ss:$2 sm:$0xff]
        %s3000 = scalar_lea.vmem [#allocation2], 224
        %v3001 = vld [vmem:[%s3000] ss:$2 sm:$0xff]
        %s3002 = scalar_lea.vmem [#allocation2], 240
        %v3003 = vld [vmem:[%s3002] ss:$2 sm:$0xff]
        %s3004 = scalar_lea.vmem [#allocation2], 1
        %v3005 = vld [vmem:[%s3004] ss:$2 sm:$0xff]
        %s3006 = scalar_lea.vmem [#allocation2], 17
        %v3007 = vld [vmem:[%s3006] ss:$2 sm:$0xff]
        %s3008 = scalar_lea.vmem [#allocation2], 33
        %v3009 = vld [vmem:[%s3008] ss:$2 sm:$0xff]
        %s3010 = scalar_lea.vmem [#allocation2], 49
        %v3011 = vld [vmem:[%s3010] ss:$2 sm:$0xff]
        %s3012 = scalar_lea.vmem [#allocation2], 65
        %v3013 = vld [vmem:[%s3012] ss:$2 sm:$0xff]
        %s3014 = scalar_lea.vmem [#allocation2], 81
        %v3015 = vld [vmem:[%s3014] ss:$2 sm:$0xff]
        %s3016 = scalar_lea.vmem [#allocation2], 97
        %v3017 = vld [vmem:[%s3016] ss:$2 sm:$0xff]
        %s3018 = scalar_lea.vmem [#allocation2], 113
        %v3019 = vld [vmem:[%s3018] ss:$2 sm:$0xff]
        %s3020 = scalar_lea.vmem [#allocation2], 129
        %v3021 = vld [vmem:[%s3020] ss:$2 sm:$0xff]
        %s3022 = scalar_lea.vmem [#allocation2], 145
        %v3023 = vld [vmem:[%s3022] ss:$2 sm:$0xff]
        %s3024 = scalar_lea.vmem [#allocation2], 161
        %v3025 = vld [vmem:[%s3024] ss:$2 sm:$0xff]
        %s3026 = scalar_lea.vmem [#allocation2], 177
        %v3027 = vld [vmem:[%s3026] ss:$2 sm:$0xff]
        %s3028 = scalar_lea.vmem [#allocation2], 193
        %v3029 = vld [vmem:[%s3028] ss:$2 sm:$0xff]
        %s3030 = scalar_lea.vmem [#allocation2], 209
        %v3031 = vld [vmem:[%s3030] ss:$2 sm:$0xff]
        %s3032 = scalar_lea.vmem [#allocation2], 225
        %v3033 = vld [vmem:[%s3032] ss:$2 sm:$0xff]
        %s3034 = scalar_lea.vmem [#allocation2], 241
        %v3035 = vld [vmem:[%s3034] ss:$2 sm:$0xff]
        %v3036 = vmax.f32 %v2973, %v3005
        %v3037 = vmax.f32 %v2975, %v3007
        %v3038 = vmax.f32 %v2977, %v3009
        %v3039 = vmax.f32 %v2979, %v3011
        %v3040 = vmax.f32 %v2981, %v3013
        %v3041 = vmax.f32 %v2983, %v3015
        %v3042 = vmax.f32 %v2985, %v3017
        %v3043 = vmax.f32 %v2987, %v3019
        %v3044 = vmax.f32 %v2989, %v3021
        %v3045 = vmax.f32 %v2991, %v3023
        %v3046 = vmax.f32 %v2993, %v3025
        %v3047 = vmax.f32 %v2995, %v3027
        %v3048 = vmax.f32 %v2997, %v3029
        %v3049 = vmax.f32 %v2999, %v3031
        %v3050 = vmax.f32 %v3001, %v3033
        %v3051 = vmax.f32 %v3003, %v3035
        %v3052 = vld [vmem:[#allocation6] sm:$0x1]
        %v3054 = vlaneseq
        %v3055 = vshrl.u32 %v3054, 7
        %v3056 = vsub.s32 0, %v3055
        %v3057 = vrot.slane %v3052, %v3056
        %v3059 = vadd.f32 %v3036, %v3057
        %v3060 = vadd.f32 %v3037, %v3057
        %v3061 = vadd.f32 %v3038, %v3057
        %v3062 = vadd.f32 %v3039, %v3057
        %v3063 = vadd.f32 %v3040, %v3057
        %v3064 = vadd.f32 %v3041, %v3057
        %v3065 = vadd.f32 %v3042, %v3057
        %v3066 = vadd.f32 %v3043, %v3057
        %v3067 = vadd.f32 %v3044, %v3057
        %v3068 = vadd.f32 %v3045, %v3057
        %v3069 = vadd.f32 %v3046, %v3057
        %v3070 = vadd.f32 %v3047, %v3057
        %v3071 = vadd.f32 %v3048, %v3057
        %v3072 = vadd.f32 %v3049, %v3057
        %v3073 = vadd.f32 %v3050, %v3057
        %v3074 = vadd.f32 %v3051, %v3057
        %v3075 = vtanh.pop %v3059
        %v3076 = vtanh.pop %v3060
        %v3077 = vtanh.pop %v3061
        %v3078 = vtanh.pop %v3062
        %v3079 = vtanh.pop %v3063
        %v3080 = vtanh.pop %v3064
        %v3081 = vtanh.pop %v3065
        %v3082 = vtanh.pop %v3066
        %v3083 = vtanh.pop %v3067
        %v3084 = vtanh.pop %v3068
        %v3085 = vtanh.pop %v3069
        %v3086 = vtanh.pop %v3070
        %v3087 = vtanh.pop %v3071
        %v3088 = vtanh.pop %v3072
        %v3089 = vtanh.pop %v3073
        %v3090 = vtanh.pop %v3074
        %3091 = vst.msk [vmem:[#allocation3] sm:$0xff] %vm2938, %v3075
        %3092 = vst.msk [vmem:[#allocation3 + $0x8] sm:$0xff] %vm2938, %v3076
        %3093 = vst.msk [vmem:[#allocation3 + $0x10] sm:$0xff] %vm2938, %v3077
        %3094 = vst.msk [vmem:[#allocation3 + $0x18] sm:$0xff] %vm2938, %v3078
        %3095 = vst.msk [vmem:[#allocation3 + $0x20] sm:$0xff] %vm2938, %v3079
        %3096 = vst.msk [vmem:[#allocation3 + $0x28] sm:$0xff] %vm2938, %v3080
        %3097 = vst.msk [vmem:[#allocation3 + $0x30] sm:$0xff] %vm2938, %v3081
        %3098 = vst.msk [vmem:[#allocation3 + $0x38] sm:$0xff] %vm2938, %v3082
        %3099 = vst.msk [vmem:[#allocation3 + $0x40] sm:$0xff] %vm2938, %v3083
        %3100 = vst.msk [vmem:[#allocation3 + $0x48] sm:$0xff] %vm2938, %v3084
        %3101 = vst.msk [vmem:[#allocation3 + $0x50] sm:$0xff] %vm2938, %v3085
        %3102 = vst.msk [vmem:[#allocation3 + $0x58] sm:$0xff] %vm2938, %v3086
        %3103 = vst.msk [vmem:[#allocation3 + $0x60] sm:$0xff] %vm2938, %v3087
        %3104 = vst.msk [vmem:[#allocation3 + $0x68] sm:$0xff] %vm2938, %v3088
        %3105 = vst.msk [vmem:[#allocation3 + $0x70] sm:$0xff] %vm2938, %v3089
        %3106 = vst.msk [vmem:[#allocation3 + $0x78] sm:$0xff] %vm2938, %v3090
        %v3107 = vld [vmem:[#allocation3] sm:$0xff]
        %v3108 = vld [vmem:[#allocation3 + $0x8] sm:$0xff]
        %v3109 = vld [vmem:[#allocation3 + $0x10] sm:$0xff]
        %v3110 = vld [vmem:[#allocation3 + $0x18] sm:$0xff]
        %v3111 = vld [vmem:[#allocation3 + $0x20] sm:$0xff]
        %v3112 = vld [vmem:[#allocation3 + $0x28] sm:$0xff]
        %v3113 = vld [vmem:[#allocation3 + $0x30] sm:$0xff]
        %v3114 = vld [vmem:[#allocation3 + $0x38] sm:$0xff]
        %v3115 = vld [vmem:[#allocation3 + $0x40] sm:$0xff]
        %v3116 = vld [vmem:[#allocation3 + $0x48] sm:$0xff]
        %v3117 = vld [vmem:[#allocation3 + $0x50] sm:$0xff]
        %v3118 = vld [vmem:[#allocation3 + $0x58] sm:$0xff]
        %v3119 = vld [vmem:[#allocation3 + $0x60] sm:$0xff]
        %v3120 = vld [vmem:[#allocation3 + $0x68] sm:$0xff]
        %v3121 = vld [vmem:[#allocation3 + $0x70] sm:$0xff]
        %v3122 = vld [vmem:[#allocation3 + $0x78] sm:$0xf]
        %v3123 = vpack.c.bf16 %v3108, %v3107
        %v3124 = vpack.c.bf16 %v3110, %v3109
        %v3125 = vpack.c.bf16 %v3112, %v3111
        %v3126 = vpack.c.bf16 %v3114, %v3113
        %v3127 = vpack.c.bf16 %v3116, %v3115
        %v3128 = vpack.c.bf16 %v3118, %v3117
        %v3129 = vpack.c.bf16 %v3120, %v3119
        %v3130 = vpack.c.bf16 %v3122, %v3121
        %v3131 = vld [vmem:[%s4] sm:$0xf]
        %v3132 = vld [vmem:[%s4 + $0x4] sm:$0xf]
        %v3133 = vld [vmem:[%s4 + $0x8] sm:$0xf]
        %v3134 = vld [vmem:[%s4 + $0xc] sm:$0xf]
        %v3135 = vld [vmem:[%s4 + $0x10] sm:$0xf]
        %v3136 = vld [vmem:[%s4 + $0x14] sm:$0xf]
        %v3137 = vld [vmem:[%s4 + $0x18] sm:$0xf]
        %v3138 = vld [vmem:[%s4 + $0x1c] sm:$0xf]
        %v3139 = vld [vmem:[%s4 + $0x20] sm:$0xf]
        %v3140 = vld [vmem:[%s4 + $0x24] sm:$0xf]
        %v3141 = vld [vmem:[%s4 + $0x28] sm:$0x3]
        %v3142 = vld [vmem:[%s5] sm:$0xf]
        %v3143 = vld [vmem:[%s5 + $0x4] sm:$0xf]
        %v3144 = vld [vmem:[%s5 + $0x8] sm:$0xf]
        %v3145 = vld [vmem:[%s5 + $0xc] sm:$0xf]
        %v3146 = vld [vmem:[%s5 + $0x10] sm:$0xf]
        %v3147 = vld [vmem:[%s5 + $0x14] sm:$0xf]
        %v3148 = vld [vmem:[%s5 + $0x18] sm:$0xf]
        %v3149 = vld [vmem:[%s5 + $0x1c] sm:$0xf]
        %v3150 = vld [vmem:[%s5 + $0x20] sm:$0xf]
        %v3151 = vld [vmem:[%s5 + $0x24] sm:$0xf]
        %v3152 = vld [vmem:[%s5 + $0x28] sm:$0x3]
        %v3153 = vld [vmem:[#allocation3 + $0x1] sm:$0xff]
        %v3154 = vld [vmem:[#allocation3 + $0x9] sm:$0xff]
        %v3155 = vld [vmem:[#allocation3 + $0x11] sm:$0xff]
        %v3156 = vld [vmem:[#allocation3 + $0x19] sm:$0xff]
        %v3157 = vld [vmem:[#allocation3 + $0x21] sm:$0xff]
        %v3158 = vld [vmem:[#allocation3 + $0x29] sm:$0xff]
        %v3159 = vld [vmem:[#allocation3 + $0x31] sm:$0xff]
        %v3160 = vld [vmem:[#allocation3 + $0x39] sm:$0xff]
        %v3161 = vld [vmem:[#allocation3 + $0x41] sm:$0xff]
        %v3162 = vld [vmem:[#allocation3 + $0x49] sm:$0xff]
        %v3163 = vld [vmem:[#allocation3 + $0x51] sm:$0xff]
        %v3164 = vld [vmem:[#allocation3 + $0x59] sm:$0xff]
        %v3165 = vld [vmem:[#allocation3 + $0x61] sm:$0xff]
        %v3166 = vld [vmem:[#allocation3 + $0x69] sm:$0xff]
        %v3167 = vld [vmem:[#allocation3 + $0x71] sm:$0xff]
        %v3168 = vld [vmem:[#allocation3 + $0x79] sm:$0xf]
        %v3169 = vpack.c.bf16 %v3154, %v3153
        %v3170 = vpack.c.bf16 %v3156, %v3155
        %v3171 = vpack.c.bf16 %v3158, %v3157
        %v3172 = vpack.c.bf16 %v3160, %v3159
        %v3173 = vpack.c.bf16 %v3162, %v3161
        %v3174 = vpack.c.bf16 %v3164, %v3163
        %v3175 = vpack.c.bf16 %v3166, %v3165
        %v3176 = vpack.c.bf16 %v3168, %v3167
        %s3177 = scalar_lea.vmem %s4, 44
        %v3178 = vld [vmem:[%s3177] sm:$0xf]
        %v3179 = vld [vmem:[%s3177 + $0x4] sm:$0xf]
        %v3180 = vld [vmem:[%s3177 + $0x8] sm:$0xf]
        %v3181 = vld [vmem:[%s3177 + $0xc] sm:$0xf]
        %v3182 = vld [vmem:[%s3177 + $0x10] sm:$0xf]
        %v3183 = vld [vmem:[%s3177 + $0x14] sm:$0xf]
        %v3184 = vld [vmem:[%s3177 + $0x18] sm:$0xf]
        %v3185 = vld [vmem:[%s3177 + $0x1c] sm:$0xf]
        %v3186 = vld [vmem:[%s3177 + $0x20] sm:$0xf]
        %v3187 = vld [vmem:[%s3177 + $0x24] sm:$0xf]
        %v3188 = vld [vmem:[%s3177 + $0x28] sm:$0x3]
        %v3200 = vunpack.c.l.b16 %v3178
        %v3201 = vunpack.c.l.b16 %v3179
        %v3202 = vunpack.c.l.b16 %v3180
        %v3203 = vunpack.c.l.b16 %v3181
        %v3204 = vunpack.c.l.b16 %v3182
        %v3205 = vunpack.c.l.b16 %v3183
        %v3206 = vunpack.c.l.b16 %v3184
        %v3207 = vunpack.c.l.b16 %v3185
        %v3208 = vunpack.c.l.b16 %v3186
        %v3209 = vunpack.c.l.b16 %v3187
        %v3210 = vunpack.c.l.b16 %v3188
        %v3211 = vpack.c.b16 %v3201, %v3200
        %v3212 = vpack.c.b16 %v3203, %v3202
        %v3213 = vpack.c.b16 %v3205, %v3204
        %v3214 = vpack.c.b16 %v3207, %v3206
        %v3215 = vpack.c.b16 %v3209, %v3208
        %v3216 = vpack.c.b16 %v3210, %v3210
        %v3223 = vsel %vm2938, %v3169, 0
        %v3226 = vsel %vm2938, %v3170, 0
        %v3229 = vsel %vm2938, %v3171, 0
        %v3232 = vsel %vm2938, %v3172, 0
        %v3235 = vsel %vm2938, %v3173, 0
        %v3238 = vsel %vm2938, %v3174, 0
        %v3241 = vsel %vm2938, %v3175, 0
        %v3244 = vsel %vm2938, %v3176, 0
        %vm3246 = vcmask 1041408
        %v3248 = vsel %vm3246, %v3216, 0
        %3250 = vmatprep.subr.bf16.mxu0 0
        %3251 = vmatpush1.bf16.msra.mxu0 %v3211
        %3252 = vmatprep.subr.bf16.mxu0 0
        %3253 = vmatpush1.bf16.msra.mxu0 %v3212
        %3254 = vmatprep.subr.bf16.mxu0 0
        %3255 = vmatpush1.bf16.msra.mxu0 %v3213
        %3256 = vmatprep.subr.bf16.mxu0 0
        %3257 = vmatpush1.bf16.msra.mxu0 %v3214
        %3258 = vmatprep.subr.bf16.mxu0 0
        %3259 = vmatpush1.bf16.msra.mxu0 %v3215
        %3260 = vmatprep.subr.bf16.mxu0 0
        %3261 = vmatpush1.bf16.msra.mxu0 %v3248
        %3262 = vmatprep.subr.bf16.mxu0 0
        %3263 = vmatpush1.bf16.msra.mxu0 0
        %3264 = vmatprep.subr.bf16.mxu0 0
        %3265 = vmatpush1.bf16.msra.mxu0 0
        %3266 = vmatprep.subr.bf16.mxu0 0
        %3267 = vmatpush1.bf16.msra.mxu0 0
        %3268 = vmatprep.subr.bf16.mxu0 0
        %3269 = vmatpush1.bf16.msra.mxu0 0
        %3270 = vmatprep.subr.bf16.mxu0 0
        %3271 = vmatpush1.bf16.msra.mxu0 0
        %3272 = vmatprep.subr.bf16.mxu0 0
        %3273 = vmatpush1.bf16.msra.mxu0 0
        %3274 = vmatprep.subr.bf16.mxu0 0
        %3275 = vmatpush1.bf16.msra.mxu0 0
        %3276 = vmatprep.subr.bf16.mxu0 0
        %3277 = vmatpush1.bf16.msra.mxu0 0
        %3278 = vmatprep.subr.bf16.mxu0 0
        %3279 = vmatpush1.bf16.msra.mxu0 0
        %3280 = vmatprep.subr.bf16.mxu0 0
        %3281 = vmatpush1.bf16.msra.mxu0 0
        %3282 = vmatprep.mubr.bf16.mxu0 0
        %3283 = vmatmul.mubr.bf16.gmra.mrb[0].mxu0 %v3223
        %v3284 = vpop.f32.mrb[0].mxu0
        %v3285 = vadd.f32 0.0, %v3284
        %v3286 = vpop.f32.mrb[0].mxu0
        %v3287 = vpop.f32.mrb[0].mxu0
        %v3288 = vadd.f32 0.0, %v3287
        %v3289 = vpop.f32.mrb[0].mxu0
        %3290 = vmatprep.mubr.bf16.mxu0 0
        %3291 = vmatmul.mubr.bf16.gmra.mrb[0].mxu0 %v3226
        %v3292 = vpop.f32.mrb[0].mxu0
        %v3293 = vadd.f32 0.0, %v3292
        %v3294 = vpop.f32.mrb[0].mxu0
        %v3295 = vpop.f32.mrb[0].mxu0
        %v3296 = vadd.f32 0.0, %v3295
        %v3297 = vpop.f32.mrb[0].mxu0
        %3298 = vmatprep.mubr.bf16.mxu0 0
        %3299 = vmatmul.mubr.bf16.gmra.mrb[0].mxu0 %v3229
        %v3300 = vpop.f32.mrb[0].mxu0
        %v3301 = vadd.f32 0.0, %v3300
        %v3302 = vpop.f32.mrb[0].mxu0
        %v3303 = vpop.f32.mrb[0].mxu0
        %v3304 = vadd.f32 0.0, %v3303
        %v3305 = vpop.f32.mrb[0].mxu0
        %3306 = vmatprep.mubr.bf16.mxu0 0
        %3307 = vmatmul.mubr.bf16.gmra.mrb[0].mxu0 %v3232
        %v3308 = vpop.f32.mrb[0].mxu0
        %v3309 = vadd.f32 0.0, %v3308
        %v3310 = vpop.f32.mrb[0].mxu0
        %v3311 = vpop.f32.mrb[0].mxu0
        %v3312 = vadd.f32 0.0, %v3311
        %v3313 = vpop.f32.mrb[0].mxu0
        %3314 = vmatprep.mubr.bf16.mxu0 0
        %3315 = vmatmul.mubr.bf16.gmra.mrb[0].mxu0 %v3235
        %v3316 = vpop.f32.mrb[0].mxu0
        %v3317 = vadd.f32 0.0, %v3316
        %v3318 = vpop.f32.mrb[0].mxu0
        %v3319 = vpop.f32.mrb[0].mxu0
        %v3320 = vadd.f32 0.0, %v3319
        %v3321 = vpop.f32.mrb[0].mxu0
        %3322 = vmatprep.mubr.bf16.mxu0 0
        %3323 = vmatmul.mubr.bf16.gmra.mrb[0].mxu0 %v3238
        %v3324 = vpop.f32.mrb[0].mxu0
        %v3325 = vadd.f32 0.0, %v3324
        %v3326 = vpop.f32.mrb[0].mxu0
        %v3327 = vpop.f32.mrb[0].mxu0
        %v3328 = vadd.f32 0.0, %v3327
        %v3329 = vpop.f32.mrb[0].mxu0
        %3330 = vmatprep.mubr.bf16.mxu0 0
        %3331 = vmatmul.mubr.bf16.gmra.mrb[0].mxu0 %v3241
        %v3332 = vpop.f32.mrb[0].mxu0
        %v3333 = vadd.f32 0.0, %v3332
        %v3334 = vpop.f32.mrb[0].mxu0
        %v3335 = vpop.f32.mrb[0].mxu0
        %v3336 = vadd.f32 0.0, %v3335
        %v3337 = vpop.f32.mrb[0].mxu0
        %3338 = vmatprep.mubr.bf16.mxu0 0
        %3339 = vmatmul.mubr.bf16.gmra.mrb[0].mxu0 %v3244
        %v3340 = vpop.f32.mrb[0].mxu0
        %v3341 = vadd.f32 0.0, %v3340
        %v3342 = vpop.f32.mrb[0].mxu0
        %v3343 = vpop.f32.mrb[0].mxu0
        %v3344 = vadd.f32 0.0, %v3343
        %v3345 = vpop.f32.mrb[0].mxu0
        %3346 = vdwg.mxu0
        %v3358 = vunpack.c.l.b16 %v3131
        %v3359 = vunpack.c.l.b16 %v3132
        %v3360 = vunpack.c.l.b16 %v3133
        %v3361 = vunpack.c.l.b16 %v3134
        %v3362 = vunpack.c.l.b16 %v3135
        %v3363 = vunpack.c.l.b16 %v3136
        %v3364 = vunpack.c.l.b16 %v3137
        %v3365 = vunpack.c.l.b16 %v3138
        %v3366 = vunpack.c.l.b16 %v3139
        %v3367 = vunpack.c.l.b16 %v3140
        %v3368 = vunpack.c.l.b16 %v3141
        %v3369 = vpack.c.b16 %v3359, %v3358
        %v3370 = vpack.c.b16 %v3361, %v3360
        %v3371 = vpack.c.b16 %v3363, %v3362
        %v3372 = vpack.c.b16 %v3365, %v3364
        %v3373 = vpack.c.b16 %v3367, %v3366
        %v3374 = vpack.c.b16 %v3368, %v3368
        %v3381 = vsel %vm2938, %v3123, 0
        %v3384 = vsel %vm2938, %v3124, 0
        %v3387 = vsel %vm2938, %v3125, 0
        %v3390 = vsel %vm2938, %v3126, 0
        %v3393 = vsel %vm2938, %v3127, 0
        %v3396 = vsel %vm2938, %v3128, 0
        %v3399 = vsel %vm2938, %v3129, 0
        %v3402 = vsel %vm2938, %v3130, 0
        %v3405 = vsel %vm3246, %v3374, 0
        %3407 = vmatprep.subr.bf16.mxu0 0
        %3408 = vmatpush1.bf16.msra.mxu0 %v3369
        %3409 = vmatprep.subr.bf16.mxu0 0
        %3410 = vmatpush1.bf16.msra.mxu0 %v3370
        %3411 = vmatprep.subr.bf16.mxu0 0
        %3412 = vmatpush1.bf16.msra.mxu0 %v3371
        %3413 = vmatprep.subr.bf16.mxu0 0
        %3414 = vmatpush1.bf16.msra.mxu0 %v3372
        %3415 = vmatprep.subr.bf16.mxu0 0
        %3416 = vmatpush1.bf16.msra.mxu0 %v3373
        %3417 = vmatprep.subr.bf16.mxu0 0
        %3418 = vmatpush1.bf16.msra.mxu0 %v3405
        %3419 = vmatprep.subr.bf16.mxu0 0
        %3420 = vmatpush1.bf16.msra.mxu0 0
        %3421 = vmatprep.subr.bf16.mxu0 0
        %3422 = vmatpush1.bf16.msra.mxu0 0
        %3423 = vmatprep.subr.bf16.mxu0 0
        %3424 = vmatpush1.bf16.msra.mxu0 0
        %3425 = vmatprep.subr.bf16.mxu0 0
        %3426 = vmatpush1.bf16.msra.mxu0 0
        %3427 = vmatprep.subr.bf16.mxu0 0
        %3428 = vmatpush1.bf16.msra.mxu0 0
        %3429 = vmatprep.subr.bf16.mxu0 0
        %3430 = vmatpush1.bf16.msra.mxu0 0
        %3431 = vmatprep.subr.bf16.mxu0 0
        %3432 = vmatpush1.bf16.msra.mxu0 0
        %3433 = vmatprep.subr.bf16.mxu0 0
        %3434 = vmatpush1.bf16.msra.mxu0 0
        %3435 = vmatprep.subr.bf16.mxu0 0
        %3436 = vmatpush1.bf16.msra.mxu0 0
        %3437 = vmatprep.subr.bf16.mxu0 0
        %3438 = vmatpush1.bf16.msra.mxu0 0
        %3439 = vmatprep.mubr.bf16.mxu0 0
        %3440 = vmatmul.mubr.bf16.gmra.mrb[0].mxu0 %v3381
        %v3441 = vpop.f32.mrb[0].mxu0
        %v3442 = vadd.f32 %v3285, %v3441
        %v3443 = vpop.f32.mrb[0].mxu0
        %v3444 = vpop.f32.mrb[0].mxu0
        %v3445 = vadd.f32 %v3288, %v3444
        %v3446 = vpop.f32.mrb[0].mxu0
        %3447 = vmatprep.mubr.bf16.mxu0 0
        %3448 = vmatmul.mubr.bf16.gmra.mrb[0].mxu0 %v3384
        %v3449 = vpop.f32.mrb[0].mxu0
        %v3450 = vadd.f32 %v3293, %v3449
        %v3451 = vpop.f32.mrb[0].mxu0
        %v3452 = vpop.f32.mrb[0].mxu0
        %v3453 = vadd.f32 %v3296, %v3452
        %v3454 = vpop.f32.mrb[0].mxu0
        %3455 = vmatprep.mubr.bf16.mxu0 0
        %3456 = vmatmul.mubr.bf16.gmra.mrb[0].mxu0 %v3387
        %v3457 = vpop.f32.mrb[0].mxu0
        %v3458 = vadd.f32 %v3301, %v3457
        %v3459 = vpop.f32.mrb[0].mxu0
        %v3460 = vpop.f32.mrb[0].mxu0
        %v3461 = vadd.f32 %v3304, %v3460
        %v3462 = vpop.f32.mrb[0].mxu0
        %3463 = vmatprep.mubr.bf16.mxu0 0
        %3464 = vmatmul.mubr.bf16.gmra.mrb[0].mxu0 %v3390
        %v3465 = vpop.f32.mrb[0].mxu0
        %v3466 = vadd.f32 %v3309, %v3465
        %v3467 = vpop.f32.mrb[0].mxu0
        %v3468 = vpop.f32.mrb[0].mxu0
        %v3469 = vadd.f32 %v3312, %v3468
        %v3470 = vpop.f32.mrb[0].mxu0
        %3471 = vmatprep.mubr.bf16.mxu0 0
        %3472 = vmatmul.mubr.bf16.gmra.mrb[0].mxu0 %v3393
        %v3473 = vpop.f32.mrb[0].mxu0
        %v3474 = vadd.f32 %v3317, %v3473
        %v3475 = vpop.f32.mrb[0].mxu0
        %v3476 = vpop.f32.mrb[0].mxu0
        %v3477 = vadd.f32 %v3320, %v3476
        %v3478 = vpop.f32.mrb[0].mxu0
        %3479 = vmatprep.mubr.bf16.mxu0 0
        %3480 = vmatmul.mubr.bf16.gmra.mrb[0].mxu0 %v3396
        %v3481 = vpop.f32.mrb[0].mxu0
        %v3482 = vadd.f32 %v3325, %v3481
        %v3483 = vpop.f32.mrb[0].mxu0
        %v3484 = vpop.f32.mrb[0].mxu0
        %v3485 = vadd.f32 %v3328, %v3484
        %v3486 = vpop.f32.mrb[0].mxu0
        %3487 = vmatprep.mubr.bf16.mxu0 0
        %3488 = vmatmul.mubr.bf16.gmra.mrb[0].mxu0 %v3399
        %v3489 = vpop.f32.mrb[0].mxu0
        %v3490 = vadd.f32 %v3333, %v3489
        %v3491 = vpop.f32.mrb[0].mxu0
        %v3492 = vpop.f32.mrb[0].mxu0
        %v3493 = vadd.f32 %v3336, %v3492
        %v3494 = vpop.f32.mrb[0].mxu0
        %3495 = vmatprep.mubr.bf16.mxu0 0
        %3496 = vmatmul.mubr.bf16.gmra.mrb[0].mxu0 %v3402
        %v3497 = vpop.f32.mrb[0].mxu0
        %v3498 = vadd.f32 %v3341, %v3497
        %v3499 = vpop.f32.mrb[0].mxu0
        %v3500 = vpop.f32.mrb[0].mxu0
        %v3501 = vadd.f32 %v3344, %v3500
        %v3502 = vpop.f32.mrb[0].mxu0
        %3503 = vdwg.mxu0
        %s3504 = scalar_lea.vmem %s5, 44
        %v3505 = vld [vmem:[%s3504] sm:$0xf]
        %v3506 = vld [vmem:[%s3504 + $0x4] sm:$0xf]
        %v3507 = vld [vmem:[%s3504 + $0x8] sm:$0xf]
        %v3508 = vld [vmem:[%s3504 + $0xc] sm:$0xf]
        %v3509 = vld [vmem:[%s3504 + $0x10] sm:$0xf]
        %v3510 = vld [vmem:[%s3504 + $0x14] sm:$0xf]
        %v3511 = vld [vmem:[%s3504 + $0x18] sm:$0xf]
        %v3512 = vld [vmem:[%s3504 + $0x1c] sm:$0xf]
        %v3513 = vld [vmem:[%s3504 + $0x20] sm:$0xf]
        %v3514 = vld [vmem:[%s3504 + $0x24] sm:$0xf]
        %v3515 = vld [vmem:[%s3504 + $0x28] sm:$0x3]
        %v3527 = vunpack.c.l.b16 %v3505
        %v3528 = vunpack.c.l.b16 %v3506
        %v3529 = vunpack.c.l.b16 %v3507
        %v3530 = vunpack.c.l.b16 %v3508
        %v3531 = vunpack.c.l.b16 %v3509
        %v3532 = vunpack.c.l.b16 %v3510
        %v3533 = vunpack.c.l.b16 %v3511
        %v3534 = vunpack.c.l.b16 %v3512
        %v3535 = vunpack.c.l.b16 %v3513
        %v3536 = vunpack.c.l.b16 %v3514
        %v3537 = vunpack.c.l.b16 %v3515
        %v3538 = vpack.c.b16 %v3528, %v3527
        %v3539 = vpack.c.b16 %v3530, %v3529
        %v3540 = vpack.c.b16 %v3532, %v3531
        %v3541 = vpack.c.b16 %v3534, %v3533
        %v3542 = vpack.c.b16 %v3536, %v3535
        %v3543 = vpack.c.b16 %v3537, %v3537
        %v3550 = vsel %vm3246, %v3543, 0
        %3552 = vmatprep.subr.bf16.mxu0 0
        %3553 = vmatpush1.bf16.msra.mxu0 %v3538
        %3554 = vmatprep.subr.bf16.mxu0 0
        %3555 = vmatpush1.bf16.msra.mxu0 %v3539
        %3556 = vmatprep.subr.bf16.mxu0 0
        %3557 = vmatpush1.bf16.msra.mxu0 %v3540
        %3558 = vmatprep.subr.bf16.mxu0 0
        %3559 = vmatpush1.bf16.msra.mxu0 %v3541
        %3560 = vmatprep.subr.bf16.mxu0 0
        %3561 = vmatpush1.bf16.msra.mxu0 %v3542
        %3562 = vmatprep.subr.bf16.mxu0 0
        %3563 = vmatpush1.bf16.msra.mxu0 %v3550
        %3564 = vmatprep.subr.bf16.mxu0 0
        %3565 = vmatpush1.bf16.msra.mxu0 0
        %3566 = vmatprep.subr.bf16.mxu0 0
        %3567 = vmatpush1.bf16.msra.mxu0 0
        %3568 = vmatprep.subr.bf16.mxu0 0
        %3569 = vmatpush1.bf16.msra.mxu0 0
        %3570 = vmatprep.subr.bf16.mxu0 0
        %3571 = vmatpush1.bf16.msra.mxu0 0
        %3572 = vmatprep.subr.bf16.mxu0 0
        %3573 = vmatpush1.bf16.msra.mxu0 0
        %3574 = vmatprep.subr.bf16.mxu0 0
        %3575 = vmatpush1.bf16.msra.mxu0 0
        %3576 = vmatprep.subr.bf16.mxu0 0
        %3577 = vmatpush1.bf16.msra.mxu0 0
        %3578 = vmatprep.subr.bf16.mxu0 0
        %3579 = vmatpush1.bf16.msra.mxu0 0
        %3580 = vmatprep.subr.bf16.mxu0 0
        %3581 = vmatpush1.bf16.msra.mxu0 0
        %3582 = vmatprep.subr.bf16.mxu0 0
        %3583 = vmatpush1.bf16.msra.mxu0 0
        %3584 = vmatprep.mubr.bf16.mxu0 0
        %3585 = vmatmul.mubr.bf16.gmra.mrb[0].mxu0 %v3223
        %v3586 = vpop.f32.mrb[0].mxu0
        %v3587 = vadd.f32 0.0, %v3586
        %v3588 = vpop.f32.mrb[0].mxu0
        %v3589 = vpop.f32.mrb[0].mxu0
        %v3590 = vadd.f32 0.0, %v3589
        %v3591 = vpop.f32.mrb[0].mxu0
        %3592 = vmatprep.mubr.bf16.mxu0 0
        %3593 = vmatmul.mubr.bf16.gmra.mrb[0].mxu0 %v3226
        %v3594 = vpop.f32.mrb[0].mxu0
        %v3595 = vadd.f32 0.0, %v3594
        %v3596 = vpop.f32.mrb[0].mxu0
        %v3597 = vpop.f32.mrb[0].mxu0
        %v3598 = vadd.f32 0.0, %v3597
        %v3599 = vpop.f32.mrb[0].mxu0
        %3600 = vmatprep.mubr.bf16.mxu0 0
        %3601 = vmatmul.mubr.bf16.gmra.mrb[0].mxu0 %v3229
        %v3602 = vpop.f32.mrb[0].mxu0
        %v3603 = vadd.f32 0.0, %v3602
        %v3604 = vpop.f32.mrb[0].mxu0
        %v3605 = vpop.f32.mrb[0].mxu0
        %v3606 = vadd.f32 0.0, %v3605
        %v3607 = vpop.f32.mrb[0].mxu0
        %3608 = vmatprep.mubr.bf16.mxu0 0
        %3609 = vmatmul.mubr.bf16.gmra.mrb[0].mxu0 %v3232
        %v3610 = vpop.f32.mrb[0].mxu0
        %v3611 = vadd.f32 0.0, %v3610
        %v3612 = vpop.f32.mrb[0].mxu0
        %v3613 = vpop.f32.mrb[0].mxu0
        %v3614 = vadd.f32 0.0, %v3613
        %v3615 = vpop.f32.mrb[0].mxu0
        %3616 = vmatprep.mubr.bf16.mxu0 0
        %3617 = vmatmul.mubr.bf16.gmra.mrb[0].mxu0 %v3235
        %v3618 = vpop.f32.mrb[0].mxu0
        %v3619 = vadd.f32 0.0, %v3618
        %v3620 = vpop.f32.mrb[0].mxu0
        %v3621 = vpop.f32.mrb[0].mxu0
        %v3622 = vadd.f32 0.0, %v3621
        %v3623 = vpop.f32.mrb[0].mxu0
        %3624 = vmatprep.mubr.bf16.mxu0 0
        %3625 = vmatmul.mubr.bf16.gmra.mrb[0].mxu0 %v3238
        %v3626 = vpop.f32.mrb[0].mxu0
        %v3627 = vadd.f32 0.0, %v3626
        %v3628 = vpop.f32.mrb[0].mxu0
        %v3629 = vpop.f32.mrb[0].mxu0
        %v3630 = vadd.f32 0.0, %v3629
        %v3631 = vpop.f32.mrb[0].mxu0
        %3632 = vmatprep.mubr.bf16.mxu0 0
        %3633 = vmatmul.mubr.bf16.gmra.mrb[0].mxu0 %v3241
        %v3634 = vpop.f32.mrb[0].mxu0
        %v3635 = vadd.f32 0.0, %v3634
        %v3636 = vpop.f32.mrb[0].mxu0
        %v3637 = vpop.f32.mrb[0].mxu0
        %v3638 = vadd.f32 0.0, %v3637
        %v3639 = vpop.f32.mrb[0].mxu0
        %3640 = vmatprep.mubr.bf16.mxu0 0
        %3641 = vmatmul.mubr.bf16.gmra.mrb[0].mxu0 %v3244
        %v3642 = vpop.f32.mrb[0].mxu0
        %v3643 = vadd.f32 0.0, %v3642
        %v3644 = vpop.f32.mrb[0].mxu0
        %v3645 = vpop.f32.mrb[0].mxu0
        %v3646 = vadd.f32 0.0, %v3645
        %v3647 = vpop.f32.mrb[0].mxu0
        %3648 = vdwg.mxu0
        %v3660 = vunpack.c.l.b16 %v3142
        %v3661 = vunpack.c.l.b16 %v3143
        %v3662 = vunpack.c.l.b16 %v3144
        %v3663 = vunpack.c.l.b16 %v3145
        %v3664 = vunpack.c.l.b16 %v3146
        %v3665 = vunpack.c.l.b16 %v3147
        %v3666 = vunpack.c.l.b16 %v3148
        %v3667 = vunpack.c.l.b16 %v3149
        %v3668 = vunpack.c.l.b16 %v3150
        %v3669 = vunpack.c.l.b16 %v3151
        %v3670 = vunpack.c.l.b16 %v3152
        %v3671 = vpack.c.b16 %v3661, %v3660
        %v3672 = vpack.c.b16 %v3663, %v3662
        %v3673 = vpack.c.b16 %v3665, %v3664
        %v3674 = vpack.c.b16 %v3667, %v3666
        %v3675 = vpack.c.b16 %v3669, %v3668
        %v3676 = vpack.c.b16 %v3670, %v3670
        %v3683 = vsel %vm3246, %v3676, 0
        %3685 = vmatprep.subr.bf16.mxu0 0
        %3686 = vmatpush1.bf16.msra.mxu0 %v3671
        %3687 = vmatprep.subr.bf16.mxu0 0
        %3688 = vmatpush1.bf16.msra.mxu0 %v3672
        %3689 = vmatprep.subr.bf16.mxu0 0
        %3690 = vmatpush1.bf16.msra.mxu0 %v3673
        %3691 = vmatprep.subr.bf16.mxu0 0
        %3692 = vmatpush1.bf16.msra.mxu0 %v3674
        %3693 = vmatprep.subr.bf16.mxu0 0
        %3694 = vmatpush1.bf16.msra.mxu0 %v3675
        %3695 = vmatprep.subr.bf16.mxu0 0
        %3696 = vmatpush1.bf16.msra.mxu0 %v3683
        %3697 = vmatprep.subr.bf16.mxu0 0
        %3698 = vmatpush1.bf16.msra.mxu0 0
        %3699 = vmatprep.subr.bf16.mxu0 0
        %3700 = vmatpush1.bf16.msra.mxu0 0
        %3701 = vmatprep.subr.bf16.mxu0 0
        %3702 = vmatpush1.bf16.msra.mxu0 0
        %3703 = vmatprep.subr.bf16.mxu0 0
        %3704 = vmatpush1.bf16.msra.mxu0 0
        %3705 = vmatprep.subr.bf16.mxu0 0
        %3706 = vmatpush1.bf16.msra.mxu0 0
        %3707 = vmatprep.subr.bf16.mxu0 0
        %3708 = vmatpush1.bf16.msra.mxu0 0
        %3709 = vmatprep.subr.bf16.mxu0 0
        %3710 = vmatpush1.bf16.msra.mxu0 0
        %3711 = vmatprep.subr.bf16.mxu0 0
        %3712 = vmatpush1.bf16.msra.mxu0 0
        %3713 = vmatprep.subr.bf16.mxu0 0
        %3714 = vmatpush1.bf16.msra.mxu0 0
        %3715 = vmatprep.subr.bf16.mxu0 0
        %3716 = vmatpush1.bf16.msra.mxu0 0
        %3717 = vmatprep.mubr.bf16.mxu0 0
        %3718 = vmatmul.mubr.bf16.gmra.mrb[0].mxu0 %v3381
        %v3719 = vpop.f32.mrb[0].mxu0
        %v3720 = vadd.f32 %v3587, %v3719
        %v3721 = vpop.f32.mrb[0].mxu0
        %v3722 = vpop.f32.mrb[0].mxu0
        %v3723 = vadd.f32 %v3590, %v3722
        %v3724 = vpop.f32.mrb[0].mxu0
        %3725 = vmatprep.mubr.bf16.mxu0 0
        %3726 = vmatmul.mubr.bf16.gmra.mrb[0].mxu0 %v3384
        %v3727 = vpop.f32.mrb[0].mxu0
        %v3728 = vadd.f32 %v3595, %v3727
        %v3729 = vpop.f32.mrb[0].mxu0
        %v3730 = vpop.f32.mrb[0].mxu0
        %v3731 = vadd.f32 %v3598, %v3730
        %v3732 = vpop.f32.mrb[0].mxu0
        %3733 = vmatprep.mubr.bf16.mxu0 0
        %3734 = vmatmul.mubr.bf16.gmra.mrb[0].mxu0 %v3387
        %v3735 = vpop.f32.mrb[0].mxu0
        %v3736 = vadd.f32 %v3603, %v3735
        %v3737 = vpop.f32.mrb[0].mxu0
        %v3738 = vpop.f32.mrb[0].mxu0
        %v3739 = vadd.f32 %v3606, %v3738
        %v3740 = vpop.f32.mrb[0].mxu0
        %3741 = vmatprep.mubr.bf16.mxu0 0
        %3742 = vmatmul.mubr.bf16.gmra.mrb[0].mxu0 %v3390
        %v3743 = vpop.f32.mrb[0].mxu0
        %v3744 = vadd.f32 %v3611, %v3743
        %v3745 = vpop.f32.mrb[0].mxu0
        %v3746 = vpop.f32.mrb[0].mxu0
        %v3747 = vadd.f32 %v3614, %v3746
        %v3748 = vpop.f32.mrb[0].mxu0
        %3749 = vmatprep.mubr.bf16.mxu0 0
        %3750 = vmatmul.mubr.bf16.gmra.mrb[0].mxu0 %v3393
        %v3751 = vpop.f32.mrb[0].mxu0
        %v3752 = vadd.f32 %v3619, %v3751
        %v3753 = vpop.f32.mrb[0].mxu0
        %v3754 = vpop.f32.mrb[0].mxu0
        %v3755 = vadd.f32 %v3622, %v3754
        %v3756 = vpop.f32.mrb[0].mxu0
        %3757 = vmatprep.mubr.bf16.mxu0 0
        %3758 = vmatmul.mubr.bf16.gmra.mrb[0].mxu0 %v3396
        %v3759 = vpop.f32.mrb[0].mxu0
        %v3760 = vadd.f32 %v3627, %v3759
        %v3761 = vpop.f32.mrb[0].mxu0
        %v3762 = vpop.f32.mrb[0].mxu0
        %v3763 = vadd.f32 %v3630, %v3762
        %v3764 = vpop.f32.mrb[0].mxu0
        %3765 = vmatprep.mubr.bf16.mxu0 0
        %3766 = vmatmul.mubr.bf16.gmra.mrb[0].mxu0 %v3399
        %v3767 = vpop.f32.mrb[0].mxu0
        %v3768 = vadd.f32 %v3635, %v3767
        %v3769 = vpop.f32.mrb[0].mxu0
        %v3770 = vpop.f32.mrb[0].mxu0
        %v3771 = vadd.f32 %v3638, %v3770
        %v3772 = vpop.f32.mrb[0].mxu0
        %3773 = vmatprep.mubr.bf16.mxu0 0
        %3774 = vmatmul.mubr.bf16.gmra.mrb[0].mxu0 %v3402
        %v3775 = vpop.f32.mrb[0].mxu0
        %v3776 = vadd.f32 %v3643, %v3775
        %v3777 = vpop.f32.mrb[0].mxu0
        %v3778 = vpop.f32.mrb[0].mxu0
        %v3779 = vadd.f32 %v3646, %v3778
        %v3780 = vpop.f32.mrb[0].mxu0
        %3781 = vdwg.mxu0
        %v3782 = vld [vmem:[#allocation3 + $0x2] sm:$0xff]
        %v3783 = vld [vmem:[#allocation3 + $0xa] sm:$0xff]
        %v3784 = vld [vmem:[#allocation3 + $0x12] sm:$0xff]
        %v3785 = vld [vmem:[#allocation3 + $0x1a] sm:$0xff]
        %v3786 = vld [vmem:[#allocation3 + $0x22] sm:$0xff]
        %v3787 = vld [vmem:[#allocation3 + $0x2a] sm:$0xff]
        %v3788 = vld [vmem:[#allocation3 + $0x32] sm:$0xff]
        %v3789 = vld [vmem:[#allocation3 + $0x3a] sm:$0xff]
        %v3790 = vld [vmem:[#allocation3 + $0x42] sm:$0xff]
        %v3791 = vld [vmem:[#allocation3 + $0x4a] sm:$0xff]
        %v3792 = vld [vmem:[#allocation3 + $0x52] sm:$0xff]
        %v3793 = vld [vmem:[#allocation3 + $0x5a] sm:$0xff]
        %v3794 = vld [vmem:[#allocation3 + $0x62] sm:$0xff]
        %v3795 = vld [vmem:[#allocation3 + $0x6a] sm:$0xff]
        %v3796 = vld [vmem:[#allocation3 + $0x72] sm:$0xff]
        %v3797 = vld [vmem:[#allocation3 + $0x7a] sm:$0xf]
        %v3798 = vpack.c.bf16 %v3783, %v3782
        %v3799 = vpack.c.bf16 %v3785, %v3784
        %v3800 = vpack.c.bf16 %v3787, %v3786
        %v3801 = vpack.c.bf16 %v3789, %v3788
        %v3802 = vpack.c.bf16 %v3791, %v3790
        %v3803 = vpack.c.bf16 %v3793, %v3792
        %v3804 = vpack.c.bf16 %v3795, %v3794
        %v3805 = vpack.c.bf16 %v3797, %v3796
        %s3806 = scalar_lea.vmem %s4, 88
        %v3807 = vld [vmem:[%s3806] sm:$0xf]
        %v3808 = vld [vmem:[%s3806 + $0x4] sm:$0xf]
        %v3809 = vld [vmem:[%s3806 + $0x8] sm:$0xf]
        %v3810 = vld [vmem:[%s3806 + $0xc] sm:$0xf]
        %v3811 = vld [vmem:[%s3806 + $0x10] sm:$0xf]
        %v3812 = vld [vmem:[%s3806 + $0x14] sm:$0xf]
        %v3813 = vld [vmem:[%s3806 + $0x18] sm:$0xf]
        %v3814 = vld [vmem:[%s3806 + $0x1c] sm:$0xf]
        %v3815 = vld [vmem:[%s3806 + $0x20] sm:$0xf]
        %v3816 = vld [vmem:[%s3806 + $0x24] sm:$0xf]
        %v3817 = vld [vmem:[%s3806 + $0x28] sm:$0x3]
        %v3829 = vunpack.c.l.b16 %v3807
        %v3830 = vunpack.c.l.b16 %v3808
        %v3831 = vunpack.c.l.b16 %v3809
        %v3832 = vunpack.c.l.b16 %v3810
        %v3833 = vunpack.c.l.b16 %v3811
        %v3834 = vunpack.c.l.b16 %v3812
        %v3835 = vunpack.c.l.b16 %v3813
        %v3836 = vunpack.c.l.b16 %v3814
        %v3837 = vunpack.c.l.b16 %v3815
        %v3838 = vunpack.c.l.b16 %v3816
        %v3839 = vunpack.c.l.b16 %v3817
        %v3840 = vpack.c.b16 %v3830, %v3829
        %v3841 = vpack.c.b16 %v3832, %v3831
        %v3842 = vpack.c.b16 %v3834, %v3833
        %v3843 = vpack.c.b16 %v3836, %v3835
        %v3844 = vpack.c.b16 %v3838, %v3837
        %v3845 = vpack.c.b16 %v3839, %v3839
        %v3852 = vsel %vm2938, %v3798, 0
        %v3855 = vsel %vm2938, %v3799, 0
        %v3858 = vsel %vm2938, %v3800, 0
        %v3861 = vsel %vm2938, %v3801, 0
        %v3864 = vsel %vm2938, %v3802, 0
        %v3867 = vsel %vm2938, %v3803, 0
        %v3870 = vsel %vm2938, %v3804, 0
        %v3873 = vsel %vm2938, %v3805, 0
        %v3876 = vsel %vm3246, %v3845, 0
        %3878 = vmatprep.subr.bf16.mxu0 0
        %3879 = vmatpush1.bf16.msra.mxu0 %v3840
        %3880 = vmatprep.subr.bf16.mxu0 0
        %3881 = vmatpush1.bf16.msra.mxu0 %v3841
        %3882 = vmatprep.subr.bf16.mxu0 0
        %3883 = vmatpush1.bf16.msra.mxu0 %v3842
        %3884 = vmatprep.subr.bf16.mxu0 0
        %3885 = vmatpush1.bf16.msra.mxu0 %v3843
        %3886 = vmatprep.subr.bf16.mxu0 0
        %3887 = vmatpush1.bf16.msra.mxu0 %v3844
        %3888 = vmatprep.subr.bf16.mxu0 0
        %3889 = vmatpush1.bf16.msra.mxu0 %v3876
        %3890 = vmatprep.subr.bf16.mxu0 0
        %3891 = vmatpush1.bf16.msra.mxu0 0
        %3892 = vmatprep.subr.bf16.mxu0 0
        %3893 = vmatpush1.bf16.msra.mxu0 0
        %3894 = vmatprep.subr.bf16.mxu0 0
        %3895 = vmatpush1.bf16.msra.mxu0 0
        %3896 = vmatprep.subr.bf16.mxu0 0
        %3897 = vmatpush1.bf16.msra.mxu0 0
        %3898 = vmatprep.subr.bf16.mxu0 0
        %3899 = vmatpush1.bf16.msra.mxu0 0
        %3900 = vmatprep.subr.bf16.mxu0 0
        %3901 = vmatpush1.bf16.msra.mxu0 0
        %3902 = vmatprep.subr.bf16.mxu0 0
        %3903 = vmatpush1.bf16.msra.mxu0 0
        %3904 = vmatprep.subr.bf16.mxu0 0
        %3905 = vmatpush1.bf16.msra.mxu0 0
        %3906 = vmatprep.subr.bf16.mxu0 0
        %3907 = vmatpush1.bf16.msra.mxu0 0
        %3908 = vmatprep.subr.bf16.mxu0 0
        %3909 = vmatpush1.bf16.msra.mxu0 0
        %3910 = vmatprep.mubr.bf16.mxu0 0
        %3911 = vmatmul.mubr.bf16.gmra.mrb[0].mxu0 %v3852
        %v3912 = vpop.f32.mrb[0].mxu0
        %v3913 = vadd.f32 0.0, %v3912
        %v3914 = vpop.f32.mrb[0].mxu0
        %v3915 = vpop.f32.mrb[0].mxu0
        %v3916 = vadd.f32 0.0, %v3915
        %v3917 = vpop.f32.mrb[0].mxu0
        %3918 = vmatprep.mubr.bf16.mxu0 0
        %3919 = vmatmul.mubr.bf16.gmra.mrb[0].mxu0 %v3855
        %v3920 = vpop.f32.mrb[0].mxu0
        %v3921 = vadd.f32 0.0, %v3920
        %v3922 = vpop.f32.mrb[0].mxu0
        %v3923 = vpop.f32.mrb[0].mxu0
        %v3924 = vadd.f32 0.0, %v3923
        %v3925 = vpop.f32.mrb[0].mxu0
        %3926 = vmatprep.mubr.bf16.mxu0 0
        %3927 = vmatmul.mubr.bf16.gmra.mrb[0].mxu0 %v3858
        %v3928 = vpop.f32.mrb[0].mxu0
        %v3929 = vadd.f32 0.0, %v3928
        %v3930 = vpop.f32.mrb[0].mxu0
        %v3931 = vpop.f32.mrb[0].mxu0
        %v3932 = vadd.f32 0.0, %v3931
        %v3933 = vpop.f32.mrb[0].mxu0
        %3934 = vmatprep.mubr.bf16.mxu0 0
        %3935 = vmatmul.mubr.bf16.gmra.mrb[0].mxu0 %v3861
        %v3936 = vpop.f32.mrb[0].mxu0
        %v3937 = vadd.f32 0.0, %v3936
        %v3938 = vpop.f32.mrb[0].mxu0
        %v3939 = vpop.f32.mrb[0].mxu0
        %v3940 = vadd.f32 0.0, %v3939
        %v3941 = vpop.f32.mrb[0].mxu0
        %3942 = vmatprep.mubr.bf16.mxu0 0
        %3943 = vmatmul.mubr.bf16.gmra.mrb[0].mxu0 %v3864
        %v3944 = vpop.f32.mrb[0].mxu0
        %v3945 = vadd.f32 0.0, %v3944
        %v3946 = vpop.f32.mrb[0].mxu0
        %v3947 = vpop.f32.mrb[0].mxu0
        %v3948 = vadd.f32 0.0, %v3947
        %v3949 = vpop.f32.mrb[0].mxu0
        %3950 = vmatprep.mubr.bf16.mxu0 0
        %3951 = vmatmul.mubr.bf16.gmra.mrb[0].mxu0 %v3867
        %v3952 = vpop.f32.mrb[0].mxu0
        %v3953 = vadd.f32 0.0, %v3952
        %v3954 = vpop.f32.mrb[0].mxu0
        %v3955 = vpop.f32.mrb[0].mxu0
        %v3956 = vadd.f32 0.0, %v3955
        %v3957 = vpop.f32.mrb[0].mxu0
        %3958 = vmatprep.mubr.bf16.mxu0 0
        %3959 = vmatmul.mubr.bf16.gmra.mrb[0].mxu0 %v3870
        %v3960 = vpop.f32.mrb[0].mxu0
        %v3961 = vadd.f32 0.0, %v3960
        %v3962 = vpop.f32.mrb[0].mxu0
        %v3963 = vpop.f32.mrb[0].mxu0
        %v3964 = vadd.f32 0.0, %v3963
        %v3965 = vpop.f32.mrb[0].mxu0
        %3966 = vmatprep.mubr.bf16.mxu0 0
        %3967 = vmatmul.mubr.bf16.gmra.mrb[0].mxu0 %v3873
        %v3968 = vpop.f32.mrb[0].mxu0
        %v3969 = vadd.f32 0.0, %v3968
        %v3970 = vpop.f32.mrb[0].mxu0
        %v3971 = vpop.f32.mrb[0].mxu0
        %v3972 = vadd.f32 0.0, %v3971
        %v3973 = vpop.f32.mrb[0].mxu0
        %3974 = vdwg.mxu0
        %v3975 = vadd.f32 %v3442, %v3913
        %v3976 = vadd.f32 %v3445, %v3916
        %v3977 = vadd.f32 %v3450, %v3921
        %v3978 = vadd.f32 %v3453, %v3924
        %v3979 = vadd.f32 %v3458, %v3929
        %v3980 = vadd.f32 %v3461, %v3932
        %v3981 = vadd.f32 %v3466, %v3937
        %v3982 = vadd.f32 %v3469, %v3940
        %v3983 = vadd.f32 %v3474, %v3945
        %v3984 = vadd.f32 %v3477, %v3948
        %v3985 = vadd.f32 %v3482, %v3953
        %v3986 = vadd.f32 %v3485, %v3956
        %v3987 = vadd.f32 %v3490, %v3961
        %v3988 = vadd.f32 %v3493, %v3964
        %v3989 = vadd.f32 %v3498, %v3969
        %v3990 = vadd.f32 %v3501, %v3972
        %s3991 = scalar_lea.vmem %s5, 88
        %v3992 = vld [vmem:[%s3991] sm:$0xf]
        %v3993 = vld [vmem:[%s3991 + $0x4] sm:$0xf]
        %v3994 = vld [vmem:[%s3991 + $0x8] sm:$0xf]
        %v3995 = vld [vmem:[%s3991 + $0xc] sm:$0xf]
        %v3996 = vld [vmem:[%s3991 + $0x10] sm:$0xf]
        %v3997 = vld [vmem:[%s3991 + $0x14] sm:$0xf]
        %v3998 = vld [vmem:[%s3991 + $0x18] sm:$0xf]
        %v3999 = vld [vmem:[%s3991 + $0x1c] sm:$0xf]
        %v4000 = vld [vmem:[%s3991 + $0x20] sm:$0xf]
        %v4001 = vld [vmem:[%s3991 + $0x24] sm:$0xf]
        %v4002 = vld [vmem:[%s3991 + $0x28] sm:$0x3]
        %v4014 = vunpack.c.l.b16 %v3992
        %v4015 = vunpack.c.l.b16 %v3993
        %v4016 = vunpack.c.l.b16 %v3994
        %v4017 = vunpack.c.l.b16 %v3995
        %v4018 = vunpack.c.l.b16 %v3996
        %v4019 = vunpack.c.l.b16 %v3997
        %v4020 = vunpack.c.l.b16 %v3998
        %v4021 = vunpack.c.l.b16 %v3999
        %v4022 = vunpack.c.l.b16 %v4000
        %v4023 = vunpack.c.l.b16 %v4001
        %v4024 = vunpack.c.l.b16 %v4002
        %v4025 = vpack.c.b16 %v4015, %v4014
        %v4026 = vpack.c.b16 %v4017, %v4016
        %v4027 = vpack.c.b16 %v4019, %v4018
        %v4028 = vpack.c.b16 %v4021, %v4020
        %v4029 = vpack.c.b16 %v4023, %v4022
        %v4030 = vpack.c.b16 %v4024, %v4024
        %v4037 = vsel %vm3246, %v4030, 0
        %4039 = vmatprep.subr.bf16.mxu0 0
        %4040 = vmatpush1.bf16.msra.mxu0 %v4025
        %4041 = vmatprep.subr.bf16.mxu0 0
        %4042 = vmatpush1.bf16.msra.mxu0 %v4026
        %4043 = vmatprep.subr.bf16.mxu0 0
        %4044 = vmatpush1.bf16.msra.mxu0 %v4027
        %4045 = vmatprep.subr.bf16.mxu0 0
        %4046 = vmatpush1.bf16.msra.mxu0 %v4028
        %4047 = vmatprep.subr.bf16.mxu0 0
        %4048 = vmatpush1.bf16.msra.mxu0 %v4029
        %4049 = vmatprep.subr.bf16.mxu0 0
        %4050 = vmatpush1.bf16.msra.mxu0 %v4037
        %4051 = vmatprep.subr.bf16.mxu0 0
        %4052 = vmatpush1.bf16.msra.mxu0 0
        %4053 = vmatprep.subr.bf16.mxu0 0
        %4054 = vmatpush1.bf16.msra.mxu0 0
        %4055 = vmatprep.subr.bf16.mxu0 0
        %4056 = vmatpush1.bf16.msra.mxu0 0
        %4057 = vmatprep.subr.bf16.mxu0 0
        %4058 = vmatpush1.bf16.msra.mxu0 0
        %4059 = vmatprep.subr.bf16.mxu0 0
        %4060 = vmatpush1.bf16.msra.mxu0 0
        %4061 = vmatprep.subr.bf16.mxu0 0
        %4062 = vmatpush1.bf16.msra.mxu0 0
        %4063 = vmatprep.subr.bf16.mxu0 0
        %4064 = vmatpush1.bf16.msra.mxu0 0
        %4065 = vmatprep.subr.bf16.mxu0 0
        %4066 = vmatpush1.bf16.msra.mxu0 0
        %4067 = vmatprep.subr.bf16.mxu0 0
        %4068 = vmatpush1.bf16.msra.mxu0 0
        %4069 = vmatprep.subr.bf16.mxu0 0
        %4070 = vmatpush1.bf16.msra.mxu0 0
        %4071 = vmatprep.mubr.bf16.mxu0 0
        %4072 = vmatmul.mubr.bf16.gmra.mrb[0].mxu0 %v3852
        %v4073 = vpop.f32.mrb[0].mxu0
        %v4074 = vadd.f32 0.0, %v4073
        %v4075 = vpop.f32.mrb[0].mxu0
        %v4076 = vpop.f32.mrb[0].mxu0
        %v4077 = vadd.f32 0.0, %v4076
        %v4078 = vpop.f32.mrb[0].mxu0
        %4079 = vmatprep.mubr.bf16.mxu0 0
        %4080 = vmatmul.mubr.bf16.gmra.mrb[0].mxu0 %v3855
        %v4081 = vpop.f32.mrb[0].mxu0
        %v4082 = vadd.f32 0.0, %v4081
        %v4083 = vpop.f32.mrb[0].mxu0
        %v4084 = vpop.f32.mrb[0].mxu0
        %v4085 = vadd.f32 0.0, %v4084
        %v4086 = vpop.f32.mrb[0].mxu0
        %4087 = vmatprep.mubr.bf16.mxu0 0
        %4088 = vmatmul.mubr.bf16.gmra.mrb[0].mxu0 %v3858
        %v4089 = vpop.f32.mrb[0].mxu0
        %v4090 = vadd.f32 0.0, %v4089
        %v4091 = vpop.f32.mrb[0].mxu0
        %v4092 = vpop.f32.mrb[0].mxu0
        %v4093 = vadd.f32 0.0, %v4092
        %v4094 = vpop.f32.mrb[0].mxu0
        %4095 = vmatprep.mubr.bf16.mxu0 0
        %4096 = vmatmul.mubr.bf16.gmra.mrb[0].mxu0 %v3861
        %v4097 = vpop.f32.mrb[0].mxu0
        %v4098 = vadd.f32 0.0, %v4097
        %v4099 = vpop.f32.mrb[0].mxu0
        %v4100 = vpop.f32.mrb[0].mxu0
        %v4101 = vadd.f32 0.0, %v4100
        %v4102 = vpop.f32.mrb[0].mxu0
        %4103 = vmatprep.mubr.bf16.mxu0 0
        %4104 = vmatmul.mubr.bf16.gmra.mrb[0].mxu0 %v3864
        %v4105 = vpop.f32.mrb[0].mxu0
        %v4106 = vadd.f32 0.0, %v4105
        %v4107 = vpop.f32.mrb[0].mxu0
        %v4108 = vpop.f32.mrb[0].mxu0
        %v4109 = vadd.f32 0.0, %v4108
        %v4110 = vpop.f32.mrb[0].mxu0
        %4111 = vmatprep.mubr.bf16.mxu0 0
        %4112 = vmatmul.mubr.bf16.gmra.mrb[0].mxu0 %v3867
        %v4113 = vpop.f32.mrb[0].mxu0
        %v4114 = vadd.f32 0.0, %v4113
        %v4115 = vpop.f32.mrb[0].mxu0
        %v4116 = vpop.f32.mrb[0].mxu0
        %v4117 = vadd.f32 0.0, %v4116
        %v4118 = vpop.f32.mrb[0].mxu0
        %4119 = vmatprep.mubr.bf16.mxu0 0
        %4120 = vmatmul.mubr.bf16.gmra.mrb[0].mxu0 %v3870
        %v4121 = vpop.f32.mrb[0].mxu0
        %v4122 = vadd.f32 0.0, %v4121
        %v4123 = vpop.f32.mrb[0].mxu0
        %v4124 = vpop.f32.mrb[0].mxu0
        %v4125 = vadd.f32 0.0, %v4124
        %v4126 = vpop.f32.mrb[0].mxu0
        %4127 = vmatprep.mubr.bf16.mxu0 0
        %4128 = vmatmul.mubr.bf16.gmra.mrb[0].mxu0 %v3873
        %v4129 = vpop.f32.mrb[0].mxu0
        %v4130 = vadd.f32 0.0, %v4129
        %v4131 = vpop.f32.mrb[0].mxu0
        %v4132 = vpop.f32.mrb[0].mxu0
        %v4133 = vadd.f32 0.0, %v4132
        %v4134 = vpop.f32.mrb[0].mxu0
        %4135 = vdwg.mxu0
        %v4136 = vadd.f32 %v3720, %v4074
        %v4137 = vadd.f32 %v3723, %v4077
        %v4138 = vadd.f32 %v3728, %v4082
        %v4139 = vadd.f32 %v3731, %v4085
        %v4140 = vadd.f32 %v3736, %v4090
        %v4141 = vadd.f32 %v3739, %v4093
        %v4142 = vadd.f32 %v3744, %v4098
        %v4143 = vadd.f32 %v3747, %v4101
        %v4144 = vadd.f32 %v3752, %v4106
        %v4145 = vadd.f32 %v3755, %v4109
        %v4146 = vadd.f32 %v3760, %v4114
        %v4147 = vadd.f32 %v3763, %v4117
        %v4148 = vadd.f32 %v3768, %v4122
        %v4149 = vadd.f32 %v3771, %v4125
        %v4150 = vadd.f32 %v3776, %v4130
        %v4151 = vadd.f32 %v3779, %v4133
        %v4152 = vld [vmem:[#allocation3 + $0x3] sm:$0xff]
        %v4153 = vld [vmem:[#allocation3 + $0xb] sm:$0xff]
        %v4154 = vld [vmem:[#allocation3 + $0x13] sm:$0xff]
        %v4155 = vld [vmem:[#allocation3 + $0x1b] sm:$0xff]
        %v4156 = vld [vmem:[#allocation3 + $0x23] sm:$0xff]
        %v4157 = vld [vmem:[#allocation3 + $0x2b] sm:$0xff]
        %v4158 = vld [vmem:[#allocation3 + $0x33] sm:$0xff]
        %v4159 = vld [vmem:[#allocation3 + $0x3b] sm:$0xff]
        %v4160 = vld [vmem:[#allocation3 + $0x43] sm:$0xff]
        %v4161 = vld [vmem:[#allocation3 + $0x4b] sm:$0xff]
        %v4162 = vld [vmem:[#allocation3 + $0x53] sm:$0xff]
        %v4163 = vld [vmem:[#allocation3 + $0x5b] sm:$0xff]
        %v4164 = vld [vmem:[#allocation3 + $0x63] sm:$0xff]
        %v4165 = vld [vmem:[#allocation3 + $0x6b] sm:$0xff]
        %v4166 = vld [vmem:[#allocation3 + $0x73] sm:$0xff]
        %v4167 = vld [vmem:[#allocation3 + $0x7b] sm:$0xf]
        %v4168 = vpack.c.bf16 %v4153, %v4152
        %v4169 = vpack.c.bf16 %v4155, %v4154
        %v4170 = vpack.c.bf16 %v4157, %v4156
        %v4171 = vpack.c.bf16 %v4159, %v4158
        %v4172 = vpack.c.bf16 %v4161, %v4160
        %v4173 = vpack.c.bf16 %v4163, %v4162
        %v4174 = vpack.c.bf16 %v4165, %v4164
        %v4175 = vpack.c.bf16 %v4167, %v4166
        %s4176 = scalar_lea.vmem %s4, 132
        %v4177 = vld [vmem:[%s4176] sm:$0xf]
        %v4178 = vld [vmem:[%s4176 + $0x4] sm:$0xf]
        %v4179 = vld [vmem:[%s4176 + $0x8] sm:$0xf]
        %v4180 = vld [vmem:[%s4176 + $0xc] sm:$0xf]
        %v4181 = vld [vmem:[%s4176 + $0x10] sm:$0xf]
        %v4182 = vld [vmem:[%s4176 + $0x14] sm:$0xf]
        %v4183 = vld [vmem:[%s4176 + $0x18] sm:$0xf]
        %v4184 = vld [vmem:[%s4176 + $0x1c] sm:$0xf]
        %v4185 = vld [vmem:[%s4176 + $0x20] sm:$0xf]
        %v4186 = vld [vmem:[%s4176 + $0x24] sm:$0xf]
        %v4187 = vld [vmem:[%s4176 + $0x28] sm:$0x3]
        %v4199 = vunpack.c.l.b16 %v4177
        %v4200 = vunpack.c.l.b16 %v4178
        %v4201 = vunpack.c.l.b16 %v4179
        %v4202 = vunpack.c.l.b16 %v4180
        %v4203 = vunpack.c.l.b16 %v4181
        %v4204 = vunpack.c.l.b16 %v4182
        %v4205 = vunpack.c.l.b16 %v4183
        %v4206 = vunpack.c.l.b16 %v4184
        %v4207 = vunpack.c.l.b16 %v4185
        %v4208 = vunpack.c.l.b16 %v4186
        %v4209 = vunpack.c.l.b16 %v4187
        %v4210 = vpack.c.b16 %v4200, %v4199
        %v4211 = vpack.c.b16 %v4202, %v4201
        %v4212 = vpack.c.b16 %v4204, %v4203
        %v4213 = vpack.c.b16 %v4206, %v4205
        %v4214 = vpack.c.b16 %v4208, %v4207
        %v4215 = vpack.c.b16 %v4209, %v4209
        %v4222 = vsel %vm2938, %v4168, 0
        %v4225 = vsel %vm2938, %v4169, 0
        %v4228 = vsel %vm2938, %v4170, 0
        %v4231 = vsel %vm2938, %v4171, 0
        %v4234 = vsel %vm2938, %v4172, 0
        %v4237 = vsel %vm2938, %v4173, 0
        %v4240 = vsel %vm2938, %v4174, 0
        %v4243 = vsel %vm2938, %v4175, 0
        %v4246 = vsel %vm3246, %v4215, 0
        %4248 = vmatprep.subr.bf16.mxu0 0
        %4249 = vmatpush1.bf16.msra.mxu0 %v4210
        %4250 = vmatprep.subr.bf16.mxu0 0
        %4251 = vmatpush1.bf16.msra.mxu0 %v4211
        %4252 = vmatprep.subr.bf16.mxu0 0
        %4253 = vmatpush1.bf16.msra.mxu0 %v4212
        %4254 = vmatprep.subr.bf16.mxu0 0
        %4255 = vmatpush1.bf16.msra.mxu0 %v4213
        %4256 = vmatprep.subr.bf16.mxu0 0
        %4257 = vmatpush1.bf16.msra.mxu0 %v4214
        %4258 = vmatprep.subr.bf16.mxu0 0
        %4259 = vmatpush1.bf16.msra.mxu0 %v4246
        %4260 = vmatprep.subr.bf16.mxu0 0
        %4261 = vmatpush1.bf16.msra.mxu0 0
        %4262 = vmatprep.subr.bf16.mxu0 0
        %4263 = vmatpush1.bf16.msra.mxu0 0
        %4264 = vmatprep.subr.bf16.mxu0 0
        %4265 = vmatpush1.bf16.msra.mxu0 0
        %4266 = vmatprep.subr.bf16.mxu0 0
        %4267 = vmatpush1.bf16.msra.mxu0 0
        %4268 = vmatprep.subr.bf16.mxu0 0
        %4269 = vmatpush1.bf16.msra.mxu0 0
        %4270 = vmatprep.subr.bf16.mxu0 0
        %4271 = vmatpush1.bf16.msra.mxu0 0
        %4272 = vmatprep.subr.bf16.mxu0 0
        %4273 = vmatpush1.bf16.msra.mxu0 0
        %4274 = vmatprep.subr.bf16.mxu0 0
        %4275 = vmatpush1.bf16.msra.mxu0 0
        %4276 = vmatprep.subr.bf16.mxu0 0
        %4277 = vmatpush1.bf16.msra.mxu0 0
        %4278 = vmatprep.subr.bf16.mxu0 0
        %4279 = vmatpush1.bf16.msra.mxu0 0
        %4280 = vmatprep.mubr.bf16.mxu0 0
        %4281 = vmatmul.mubr.bf16.gmra.mrb[0].mxu0 %v4222
        %v4282 = vpop.f32.mrb[0].mxu0
        %v4283 = vadd.f32 0.0, %v4282
        %v4284 = vpop.f32.mrb[0].mxu0
        %v4285 = vpop.f32.mrb[0].mxu0
        %v4286 = vadd.f32 0.0, %v4285
        %v4287 = vpop.f32.mrb[0].mxu0
        %4288 = vmatprep.mubr.bf16.mxu0 0
        %4289 = vmatmul.mubr.bf16.gmra.mrb[0].mxu0 %v4225
        %v4290 = vpop.f32.mrb[0].mxu0
        %v4291 = vadd.f32 0.0, %v4290
        %v4292 = vpop.f32.mrb[0].mxu0
        %v4293 = vpop.f32.mrb[0].mxu0
        %v4294 = vadd.f32 0.0, %v4293
        %v4295 = vpop.f32.mrb[0].mxu0
        %4296 = vmatprep.mubr.bf16.mxu0 0
        %4297 = vmatmul.mubr.bf16.gmra.mrb[0].mxu0 %v4228
        %v4298 = vpop.f32.mrb[0].mxu0
        %v4299 = vadd.f32 0.0, %v4298
        %v4300 = vpop.f32.mrb[0].mxu0
        %v4301 = vpop.f32.mrb[0].mxu0
        %v4302 = vadd.f32 0.0, %v4301
        %v4303 = vpop.f32.mrb[0].mxu0
        %4304 = vmatprep.mubr.bf16.mxu0 0
        %4305 = vmatmul.mubr.bf16.gmra.mrb[0].mxu0 %v4231
        %v4306 = vpop.f32.mrb[0].mxu0
        %v4307 = vadd.f32 0.0, %v4306
        %v4308 = vpop.f32.mrb[0].mxu0
        %v4309 = vpop.f32.mrb[0].mxu0
        %v4310 = vadd.f32 0.0, %v4309
        %v4311 = vpop.f32.mrb[0].mxu0
        %4312 = vmatprep.mubr.bf16.mxu0 0
        %4313 = vmatmul.mubr.bf16.gmra.mrb[0].mxu0 %v4234
        %v4314 = vpop.f32.mrb[0].mxu0
        %v4315 = vadd.f32 0.0, %v4314
        %v4316 = vpop.f32.mrb[0].mxu0
        %v4317 = vpop.f32.mrb[0].mxu0
        %v4318 = vadd.f32 0.0, %v4317
        %v4319 = vpop.f32.mrb[0].mxu0
        %4320 = vmatprep.mubr.bf16.mxu0 0
        %4321 = vmatmul.mubr.bf16.gmra.mrb[0].mxu0 %v4237
        %v4322 = vpop.f32.mrb[0].mxu0
        %v4323 = vadd.f32 0.0, %v4322
        %v4324 = vpop.f32.mrb[0].mxu0
        %v4325 = vpop.f32.mrb[0].mxu0
        %v4326 = vadd.f32 0.0, %v4325
        %v4327 = vpop.f32.mrb[0].mxu0
        %4328 = vmatprep.mubr.bf16.mxu0 0
        %4329 = vmatmul.mubr.bf16.gmra.mrb[0].mxu0 %v4240
        %v4330 = vpop.f32.mrb[0].mxu0
        %v4331 = vadd.f32 0.0, %v4330
        %v4332 = vpop.f32.mrb[0].mxu0
        %v4333 = vpop.f32.mrb[0].mxu0
        %v4334 = vadd.f32 0.0, %v4333
        %v4335 = vpop.f32.mrb[0].mxu0
        %4336 = vmatprep.mubr.bf16.mxu0 0
        %4337 = vmatmul.mubr.bf16.gmra.mrb[0].mxu0 %v4243
        %v4338 = vpop.f32.mrb[0].mxu0
        %v4339 = vadd.f32 0.0, %v4338
        %v4340 = vpop.f32.mrb[0].mxu0
        %v4341 = vpop.f32.mrb[0].mxu0
        %v4342 = vadd.f32 0.0, %v4341
        %v4343 = vpop.f32.mrb[0].mxu0
        %4344 = vdwg.mxu0
        %v4345 = vadd.f32 %v3975, %v4283
        %v4346 = vadd.f32 %v3976, %v4286
        %v4347 = vadd.f32 %v3977, %v4291
        %v4348 = vadd.f32 %v3978, %v4294
        %v4349 = vadd.f32 %v3979, %v4299
        %v4350 = vadd.f32 %v3980, %v4302
        %v4351 = vadd.f32 %v3981, %v4307
        %v4352 = vadd.f32 %v3982, %v4310
        %v4353 = vadd.f32 %v3983, %v4315
        %v4354 = vadd.f32 %v3984, %v4318
        %v4355 = vadd.f32 %v3985, %v4323
        %v4356 = vadd.f32 %v3986, %v4326
        %v4357 = vadd.f32 %v3987, %v4331
        %v4358 = vadd.f32 %v3988, %v4334
        %v4359 = vadd.f32 %v3989, %v4339
        %v4360 = vadd.f32 %v3990, %v4342
        %s4361 = scalar_lea.vmem %s5, 132
        %v4362 = vld [vmem:[%s4361] sm:$0xf]
        %v4363 = vld [vmem:[%s4361 + $0x4] sm:$0xf]
        %v4364 = vld [vmem:[%s4361 + $0x8] sm:$0xf]
        %v4365 = vld [vmem:[%s4361 + $0xc] sm:$0xf]
        %v4366 = vld [vmem:[%s4361 + $0x10] sm:$0xf]
        %v4367 = vld [vmem:[%s4361 + $0x14] sm:$0xf]
        %v4368 = vld [vmem:[%s4361 + $0x18] sm:$0xf]
        %v4369 = vld [vmem:[%s4361 + $0x1c] sm:$0xf]
        %v4370 = vld [vmem:[%s4361 + $0x20] sm:$0xf]
        %v4371 = vld [vmem:[%s4361 + $0x24] sm:$0xf]
        %v4372 = vld [vmem:[%s4361 + $0x28] sm:$0x3]
        %v4384 = vunpack.c.l.b16 %v4362
        %v4385 = vunpack.c.l.b16 %v4363
        %v4386 = vunpack.c.l.b16 %v4364
        %v4387 = vunpack.c.l.b16 %v4365
        %v4388 = vunpack.c.l.b16 %v4366
        %v4389 = vunpack.c.l.b16 %v4367
        %v4390 = vunpack.c.l.b16 %v4368
        %v4391 = vunpack.c.l.b16 %v4369
        %v4392 = vunpack.c.l.b16 %v4370
        %v4393 = vunpack.c.l.b16 %v4371
        %v4394 = vunpack.c.l.b16 %v4372
        %v4395 = vpack.c.b16 %v4385, %v4384
        %v4396 = vpack.c.b16 %v4387, %v4386
        %v4397 = vpack.c.b16 %v4389, %v4388
        %v4398 = vpack.c.b16 %v4391, %v4390
        %v4399 = vpack.c.b16 %v4393, %v4392
        %v4400 = vpack.c.b16 %v4394, %v4394
        %v4407 = vsel %vm3246, %v4400, 0
        %4409 = vmatprep.subr.bf16.mxu0 0
        %4410 = vmatpush1.bf16.msra.mxu0 %v4395
        %4411 = vmatprep.subr.bf16.mxu0 0
        %4412 = vmatpush1.bf16.msra.mxu0 %v4396
        %4413 = vmatprep.subr.bf16.mxu0 0
        %4414 = vmatpush1.bf16.msra.mxu0 %v4397
        %4415 = vmatprep.subr.bf16.mxu0 0
        %4416 = vmatpush1.bf16.msra.mxu0 %v4398
        %4417 = vmatprep.subr.bf16.mxu0 0
        %4418 = vmatpush1.bf16.msra.mxu0 %v4399
        %4419 = vmatprep.subr.bf16.mxu0 0
        %4420 = vmatpush1.bf16.msra.mxu0 %v4407
        %4421 = vmatprep.subr.bf16.mxu0 0
        %4422 = vmatpush1.bf16.msra.mxu0 0
        %4423 = vmatprep.subr.bf16.mxu0 0
        %4424 = vmatpush1.bf16.msra.mxu0 0
        %4425 = vmatprep.subr.bf16.mxu0 0
        %4426 = vmatpush1.bf16.msra.mxu0 0
        %4427 = vmatprep.subr.bf16.mxu0 0
        %4428 = vmatpush1.bf16.msra.mxu0 0
        %4429 = vmatprep.subr.bf16.mxu0 0
        %4430 = vmatpush1.bf16.msra.mxu0 0
        %4431 = vmatprep.subr.bf16.mxu0 0
        %4432 = vmatpush1.bf16.msra.mxu0 0
        %4433 = vmatprep.subr.bf16.mxu0 0
        %4434 = vmatpush1.bf16.msra.mxu0 0
        %4435 = vmatprep.subr.bf16.mxu0 0
        %4436 = vmatpush1.bf16.msra.mxu0 0
        %4437 = vmatprep.subr.bf16.mxu0 0
        %4438 = vmatpush1.bf16.msra.mxu0 0
        %4439 = vmatprep.subr.bf16.mxu0 0
        %4440 = vmatpush1.bf16.msra.mxu0 0
        %4441 = vmatprep.mubr.bf16.mxu0 0
        %4442 = vmatmul.mubr.bf16.gmra.mrb[0].mxu0 %v4222
        %v4443 = vpop.f32.mrb[0].mxu0
        %v4444 = vadd.f32 0.0, %v4443
        %v4445 = vpop.f32.mrb[0].mxu0
        %v4446 = vpop.f32.mrb[0].mxu0
        %v4447 = vadd.f32 0.0, %v4446
        %v4448 = vpop.f32.mrb[0].mxu0
        %4449 = vmatprep.mubr.bf16.mxu0 0
        %4450 = vmatmul.mubr.bf16.gmra.mrb[0].mxu0 %v4225
        %v4451 = vpop.f32.mrb[0].mxu0
        %v4452 = vadd.f32 0.0, %v4451
        %v4453 = vpop.f32.mrb[0].mxu0
        %v4454 = vpop.f32.mrb[0].mxu0
        %v4455 = vadd.f32 0.0, %v4454
        %v4456 = vpop.f32.mrb[0].mxu0
        %4457 = vmatprep.mubr.bf16.mxu0 0
        %4458 = vmatmul.mubr.bf16.gmra.mrb[0].mxu0 %v4228
        %v4459 = vpop.f32.mrb[0].mxu0
        %v4460 = vadd.f32 0.0, %v4459
        %v4461 = vpop.f32.mrb[0].mxu0
        %v4462 = vpop.f32.mrb[0].mxu0
        %v4463 = vadd.f32 0.0, %v4462
        %v4464 = vpop.f32.mrb[0].mxu0
        %4465 = vmatprep.mubr.bf16.mxu0 0
        %4466 = vmatmul.mubr.bf16.gmra.mrb[0].mxu0 %v4231
        %v4467 = vpop.f32.mrb[0].mxu0
        %v4468 = vadd.f32 0.0, %v4467
        %v4469 = vpop.f32.mrb[0].mxu0
        %v4470 = vpop.f32.mrb[0].mxu0
        %v4471 = vadd.f32 0.0, %v4470
        %v4472 = vpop.f32.mrb[0].mxu0
        %4473 = vmatprep.mubr.bf16.mxu0 0
        %4474 = vmatmul.mubr.bf16.gmra.mrb[0].mxu0 %v4234
        %v4475 = vpop.f32.mrb[0].mxu0
        %v4476 = vadd.f32 0.0, %v4475
        %v4477 = vpop.f32.mrb[0].mxu0
        %v4478 = vpop.f32.mrb[0].mxu0
        %v4479 = vadd.f32 0.0, %v4478
        %v4480 = vpop.f32.mrb[0].mxu0
        %4481 = vmatprep.mubr.bf16.mxu0 0
        %4482 = vmatmul.mubr.bf16.gmra.mrb[0].mxu0 %v4237
        %v4483 = vpop.f32.mrb[0].mxu0
        %v4484 = vadd.f32 0.0, %v4483
        %v4485 = vpop.f32.mrb[0].mxu0
        %v4486 = vpop.f32.mrb[0].mxu0
        %v4487 = vadd.f32 0.0, %v4486
        %v4488 = vpop.f32.mrb[0].mxu0
        %4489 = vmatprep.mubr.bf16.mxu0 0
        %4490 = vmatmul.mubr.bf16.gmra.mrb[0].mxu0 %v4240
        %v4491 = vpop.f32.mrb[0].mxu0
        %v4492 = vadd.f32 0.0, %v4491
        %v4493 = vpop.f32.mrb[0].mxu0
        %v4494 = vpop.f32.mrb[0].mxu0
        %v4495 = vadd.f32 0.0, %v4494
        %v4496 = vpop.f32.mrb[0].mxu0
        %4497 = vmatprep.mubr.bf16.mxu0 0
        %4498 = vmatmul.mubr.bf16.gmra.mrb[0].mxu0 %v4243
        %v4499 = vpop.f32.mrb[0].mxu0
        %v4500 = vadd.f32 0.0, %v4499
        %v4501 = vpop.f32.mrb[0].mxu0
        %v4502 = vpop.f32.mrb[0].mxu0
        %v4503 = vadd.f32 0.0, %v4502
        %v4504 = vpop.f32.mrb[0].mxu0
        %4505 = vdwg.mxu0
        %v4506 = vadd.f32 %v4136, %v4444
        %v4507 = vadd.f32 %v4137, %v4447
        %v4508 = vadd.f32 %v4138, %v4452
        %v4509 = vadd.f32 %v4139, %v4455
        %v4510 = vadd.f32 %v4140, %v4460
        %v4511 = vadd.f32 %v4141, %v4463
        %v4512 = vadd.f32 %v4142, %v4468
        %v4513 = vadd.f32 %v4143, %v4471
        %v4514 = vadd.f32 %v4144, %v4476
        %v4515 = vadd.f32 %v4145, %v4479
        %v4516 = vadd.f32 %v4146, %v4484
        %v4517 = vadd.f32 %v4147, %v4487
        %v4518 = vadd.f32 %v4148, %v4492
        %v4519 = vadd.f32 %v4149, %v4495
        %v4520 = vadd.f32 %v4150, %v4500
        %v4521 = vadd.f32 %v4151, %v4503
        %v4522 = vld [vmem:[#allocation3 + $0x4] sm:$0xff]
        %v4523 = vld [vmem:[#allocation3 + $0xc] sm:$0xff]
        %v4524 = vld [vmem:[#allocation3 + $0x14] sm:$0xff]
        %v4525 = vld [vmem:[#allocation3 + $0x1c] sm:$0xff]
        %v4526 = vld [vmem:[#allocation3 + $0x24] sm:$0xff]
        %v4527 = vld [vmem:[#allocation3 + $0x2c] sm:$0xff]
        %v4528 = vld [vmem:[#allocation3 + $0x34] sm:$0xff]
        %v4529 = vld [vmem:[#allocation3 + $0x3c] sm:$0xff]
        %v4530 = vld [vmem:[#allocation3 + $0x44] sm:$0xff]
        %v4531 = vld [vmem:[#allocation3 + $0x4c] sm:$0xff]
        %v4532 = vld [vmem:[#allocation3 + $0x54] sm:$0xff]
        %v4533 = vld [vmem:[#allocation3 + $0x5c] sm:$0xff]
        %v4534 = vld [vmem:[#allocation3 + $0x64] sm:$0xff]
        %v4535 = vld [vmem:[#allocation3 + $0x6c] sm:$0xff]
        %v4536 = vld [vmem:[#allocation3 + $0x74] sm:$0xff]
        %v4537 = vld [vmem:[#allocation3 + $0x7c] sm:$0xf]
        %v4538 = vpack.c.bf16 %v4523, %v4522
        %v4539 = vpack.c.bf16 %v4525, %v4524
        %v4540 = vpack.c.bf16 %v4527, %v4526
        %v4541 = vpack.c.bf16 %v4529, %v4528
        %v4542 = vpack.c.bf16 %v4531, %v4530
        %v4543 = vpack.c.bf16 %v4533, %v4532
        %v4544 = vpack.c.bf16 %v4535, %v4534
        %v4545 = vpack.c.bf16 %v4537, %v4536
        %s4546 = scalar_lea.vmem %s4, 176
        %v4547 = vld [vmem:[%s4546] sm:$0xf]
        %v4548 = vld [vmem:[%s4546 + $0x4] sm:$0xf]
        %v4549 = vld [vmem:[%s4546 + $0x8] sm:$0xf]
        %v4550 = vld [vmem:[%s4546 + $0xc] sm:$0xf]
        %v4551 = vld [vmem:[%s4546 + $0x10] sm:$0xf]
        %v4552 = vld [vmem:[%s4546 + $0x14] sm:$0xf]
        %v4553 = vld [vmem:[%s4546 + $0x18] sm:$0xf]
        %v4554 = vld [vmem:[%s4546 + $0x1c] sm:$0xf]
        %v4555 = vld [vmem:[%s4546 + $0x20] sm:$0xf]
        %v4556 = vld [vmem:[%s4546 + $0x24] sm:$0xf]
        %v4557 = vld [vmem:[%s4546 + $0x28] sm:$0x3]
        %v4569 = vunpack.c.l.b16 %v4547
        %v4570 = vunpack.c.l.b16 %v4548
        %v4571 = vunpack.c.l.b16 %v4549
        %v4572 = vunpack.c.l.b16 %v4550
        %v4573 = vunpack.c.l.b16 %v4551
        %v4574 = vunpack.c.l.b16 %v4552
        %v4575 = vunpack.c.l.b16 %v4553
        %v4576 = vunpack.c.l.b16 %v4554
        %v4577 = vunpack.c.l.b16 %v4555
        %v4578 = vunpack.c.l.b16 %v4556
        %v4579 = vunpack.c.l.b16 %v4557
        %v4580 = vpack.c.b16 %v4570, %v4569
        %v4581 = vpack.c.b16 %v4572, %v4571
        %v4582 = vpack.c.b16 %v4574, %v4573
        %v4583 = vpack.c.b16 %v4576, %v4575
        %v4584 = vpack.c.b16 %v4578, %v4577
        %v4585 = vpack.c.b16 %v4579, %v4579
        %v4592 = vsel %vm2938, %v4538, 0
        %v4595 = vsel %vm2938, %v4539, 0
        %v4598 = vsel %vm2938, %v4540, 0
        %v4601 = vsel %vm2938, %v4541, 0
        %v4604 = vsel %vm2938, %v4542, 0
        %v4607 = vsel %vm2938, %v4543, 0
        %v4610 = vsel %vm2938, %v4544, 0
        %v4613 = vsel %vm2938, %v4545, 0
        %v4616 = vsel %vm3246, %v4585, 0
        %4618 = vmatprep.subr.bf16.mxu0 0
        %4619 = vmatpush1.bf16.msra.mxu0 %v4580
        %4620 = vmatprep.subr.bf16.mxu0 0
        %4621 = vmatpush1.bf16.msra.mxu0 %v4581
        %4622 = vmatprep.subr.bf16.mxu0 0
        %4623 = vmatpush1.bf16.msra.mxu0 %v4582
        %4624 = vmatprep.subr.bf16.mxu0 0
        %4625 = vmatpush1.bf16.msra.mxu0 %v4583
        %4626 = vmatprep.subr.bf16.mxu0 0
        %4627 = vmatpush1.bf16.msra.mxu0 %v4584
        %4628 = vmatprep.subr.bf16.mxu0 0
        %4629 = vmatpush1.bf16.msra.mxu0 %v4616
        %4630 = vmatprep.subr.bf16.mxu0 0
        %4631 = vmatpush1.bf16.msra.mxu0 0
        %4632 = vmatprep.subr.bf16.mxu0 0
        %4633 = vmatpush1.bf16.msra.mxu0 0
        %4634 = vmatprep.subr.bf16.mxu0 0
        %4635 = vmatpush1.bf16.msra.mxu0 0
        %4636 = vmatprep.subr.bf16.mxu0 0
        %4637 = vmatpush1.bf16.msra.mxu0 0
        %4638 = vmatprep.subr.bf16.mxu0 0
        %4639 = vmatpush1.bf16.msra.mxu0 0
        %4640 = vmatprep.subr.bf16.mxu0 0
        %4641 = vmatpush1.bf16.msra.mxu0 0
        %4642 = vmatprep.subr.bf16.mxu0 0
        %4643 = vmatpush1.bf16.msra.mxu0 0
        %4644 = vmatprep.subr.bf16.mxu0 0
        %4645 = vmatpush1.bf16.msra.mxu0 0
        %4646 = vmatprep.subr.bf16.mxu0 0
        %4647 = vmatpush1.bf16.msra.mxu0 0
        %4648 = vmatprep.subr.bf16.mxu0 0
        %4649 = vmatpush1.bf16.msra.mxu0 0
        %4650 = vmatprep.mubr.bf16.mxu0 0
        %4651 = vmatmul.mubr.bf16.gmra.mrb[0].mxu0 %v4592
        %v4652 = vpop.f32.mrb[0].mxu0
        %v4653 = vadd.f32 0.0, %v4652
        %v4654 = vpop.f32.mrb[0].mxu0
        %v4655 = vpop.f32.mrb[0].mxu0
        %v4656 = vadd.f32 0.0, %v4655
        %v4657 = vpop.f32.mrb[0].mxu0
        %4658 = vmatprep.mubr.bf16.mxu0 0
        %4659 = vmatmul.mubr.bf16.gmra.mrb[0].mxu0 %v4595
        %v4660 = vpop.f32.mrb[0].mxu0
        %v4661 = vadd.f32 0.0, %v4660
        %v4662 = vpop.f32.mrb[0].mxu0
        %v4663 = vpop.f32.mrb[0].mxu0
        %v4664 = vadd.f32 0.0, %v4663
        %v4665 = vpop.f32.mrb[0].mxu0
        %4666 = vmatprep.mubr.bf16.mxu0 0
        %4667 = vmatmul.mubr.bf16.gmra.mrb[0].mxu0 %v4598
        %v4668 = vpop.f32.mrb[0].mxu0
        %v4669 = vadd.f32 0.0, %v4668
        %v4670 = vpop.f32.mrb[0].mxu0
        %v4671 = vpop.f32.mrb[0].mxu0
        %v4672 = vadd.f32 0.0, %v4671
        %v4673 = vpop.f32.mrb[0].mxu0
        %4674 = vmatprep.mubr.bf16.mxu0 0
        %4675 = vmatmul.mubr.bf16.gmra.mrb[0].mxu0 %v4601
        %v4676 = vpop.f32.mrb[0].mxu0
        %v4677 = vadd.f32 0.0, %v4676
        %v4678 = vpop.f32.mrb[0].mxu0
        %v4679 = vpop.f32.mrb[0].mxu0
        %v4680 = vadd.f32 0.0, %v4679
        %v4681 = vpop.f32.mrb[0].mxu0
        %4682 = vmatprep.mubr.bf16.mxu0 0
        %4683 = vmatmul.mubr.bf16.gmra.mrb[0].mxu0 %v4604
        %v4684 = vpop.f32.mrb[0].mxu0
        %v4685 = vadd.f32 0.0, %v4684
        %v4686 = vpop.f32.mrb[0].mxu0
        %v4687 = vpop.f32.mrb[0].mxu0
        %v4688 = vadd.f32 0.0, %v4687
        %v4689 = vpop.f32.mrb[0].mxu0
        %4690 = vmatprep.mubr.bf16.mxu0 0
        %4691 = vmatmul.mubr.bf16.gmra.mrb[0].mxu0 %v4607
        %v4692 = vpop.f32.mrb[0].mxu0
        %v4693 = vadd.f32 0.0, %v4692
        %v4694 = vpop.f32.mrb[0].mxu0
        %v4695 = vpop.f32.mrb[0].mxu0
        %v4696 = vadd.f32 0.0, %v4695
        %v4697 = vpop.f32.mrb[0].mxu0
        %4698 = vmatprep.mubr.bf16.mxu0 0
        %4699 = vmatmul.mubr.bf16.gmra.mrb[0].mxu0 %v4610
        %v4700 = vpop.f32.mrb[0].mxu0
        %v4701 = vadd.f32 0.0, %v4700
        %v4702 = vpop.f32.mrb[0].mxu0
        %v4703 = vpop.f32.mrb[0].mxu0
        %v4704 = vadd.f32 0.0, %v4703
        %v4705 = vpop.f32.mrb[0].mxu0
        %4706 = vmatprep.mubr.bf16.mxu0 0
        %4707 = vmatmul.mubr.bf16.gmra.mrb[0].mxu0 %v4613
        %v4708 = vpop.f32.mrb[0].mxu0
        %v4709 = vadd.f32 0.0, %v4708
        %v4710 = vpop.f32.mrb[0].mxu0
        %v4711 = vpop.f32.mrb[0].mxu0
        %v4712 = vadd.f32 0.0, %v4711
        %v4713 = vpop.f32.mrb[0].mxu0
        %4714 = vdwg.mxu0
        %v4715 = vadd.f32 %v4345, %v4653
        %v4716 = vadd.f32 %v4346, %v4656
        %v4717 = vadd.f32 %v4347, %v4661
        %v4718 = vadd.f32 %v4348, %v4664
        %v4719 = vadd.f32 %v4349, %v4669
        %v4720 = vadd.f32 %v4350, %v4672
        %v4721 = vadd.f32 %v4351, %v4677
        %v4722 = vadd.f32 %v4352, %v4680
        %v4723 = vadd.f32 %v4353, %v4685
        %v4724 = vadd.f32 %v4354, %v4688
        %v4725 = vadd.f32 %v4355, %v4693
        %v4726 = vadd.f32 %v4356, %v4696
        %v4727 = vadd.f32 %v4357, %v4701
        %v4728 = vadd.f32 %v4358, %v4704
        %v4729 = vadd.f32 %v4359, %v4709
        %v4730 = vadd.f32 %v4360, %v4712
        %s4731 = scalar_lea.vmem %s5, 176
        %v4732 = vld [vmem:[%s4731] sm:$0xf]
        %v4733 = vld [vmem:[%s4731 + $0x4] sm:$0xf]
        %v4734 = vld [vmem:[%s4731 + $0x8] sm:$0xf]
        %v4735 = vld [vmem:[%s4731 + $0xc] sm:$0xf]
        %v4736 = vld [vmem:[%s4731 + $0x10] sm:$0xf]
        %v4737 = vld [vmem:[%s4731 + $0x14] sm:$0xf]
        %v4738 = vld [vmem:[%s4731 + $0x18] sm:$0xf]
        %v4739 = vld [vmem:[%s4731 + $0x1c] sm:$0xf]
        %v4740 = vld [vmem:[%s4731 + $0x20] sm:$0xf]
        %v4741 = vld [vmem:[%s4731 + $0x24] sm:$0xf]
        %v4742 = vld [vmem:[%s4731 + $0x28] sm:$0x3]
        %v4754 = vunpack.c.l.b16 %v4732
        %v4755 = vunpack.c.l.b16 %v4733
        %v4756 = vunpack.c.l.b16 %v4734
        %v4757 = vunpack.c.l.b16 %v4735
        %v4758 = vunpack.c.l.b16 %v4736
        %v4759 = vunpack.c.l.b16 %v4737
        %v4760 = vunpack.c.l.b16 %v4738
        %v4761 = vunpack.c.l.b16 %v4739
        %v4762 = vunpack.c.l.b16 %v4740
        %v4763 = vunpack.c.l.b16 %v4741
        %v4764 = vunpack.c.l.b16 %v4742
        %v4765 = vpack.c.b16 %v4755, %v4754
        %v4766 = vpack.c.b16 %v4757, %v4756
        %v4767 = vpack.c.b16 %v4759, %v4758
        %v4768 = vpack.c.b16 %v4761, %v4760
        %v4769 = vpack.c.b16 %v4763, %v4762
        %v4770 = vpack.c.b16 %v4764, %v4764
        %v4777 = vsel %vm3246, %v4770, 0
        %4779 = vmatprep.subr.bf16.mxu0 0
        %4780 = vmatpush1.bf16.msra.mxu0 %v4765
        %4781 = vmatprep.subr.bf16.mxu0 0
        %4782 = vmatpush1.bf16.msra.mxu0 %v4766
        %4783 = vmatprep.subr.bf16.mxu0 0
        %4784 = vmatpush1.bf16.msra.mxu0 %v4767
        %4785 = vmatprep.subr.bf16.mxu0 0
        %4786 = vmatpush1.bf16.msra.mxu0 %v4768
        %4787 = vmatprep.subr.bf16.mxu0 0
        %4788 = vmatpush1.bf16.msra.mxu0 %v4769
        %4789 = vmatprep.subr.bf16.mxu0 0
        %4790 = vmatpush1.bf16.msra.mxu0 %v4777
        %4791 = vmatprep.subr.bf16.mxu0 0
        %4792 = vmatpush1.bf16.msra.mxu0 0
        %4793 = vmatprep.subr.bf16.mxu0 0
        %4794 = vmatpush1.bf16.msra.mxu0 0
        %4795 = vmatprep.subr.bf16.mxu0 0
        %4796 = vmatpush1.bf16.msra.mxu0 0
        %4797 = vmatprep.subr.bf16.mxu0 0
        %4798 = vmatpush1.bf16.msra.mxu0 0
        %4799 = vmatprep.subr.bf16.mxu0 0
        %4800 = vmatpush1.bf16.msra.mxu0 0
        %4801 = vmatprep.subr.bf16.mxu0 0
        %4802 = vmatpush1.bf16.msra.mxu0 0
        %4803 = vmatprep.subr.bf16.mxu0 0
        %4804 = vmatpush1.bf16.msra.mxu0 0
        %4805 = vmatprep.subr.bf16.mxu0 0
        %4806 = vmatpush1.bf16.msra.mxu0 0
        %4807 = vmatprep.subr.bf16.mxu0 0
        %4808 = vmatpush1.bf16.msra.mxu0 0
        %4809 = vmatprep.subr.bf16.mxu0 0
        %4810 = vmatpush1.bf16.msra.mxu0 0
        %4811 = vmatprep.mubr.bf16.mxu0 0
        %4812 = vmatmul.mubr.bf16.gmra.mrb[0].mxu0 %v4592
        %v4813 = vpop.f32.mrb[0].mxu0
        %v4814 = vadd.f32 0.0, %v4813
        %v4815 = vpop.f32.mrb[0].mxu0
        %v4816 = vpop.f32.mrb[0].mxu0
        %v4817 = vadd.f32 0.0, %v4816
        %v4818 = vpop.f32.mrb[0].mxu0
        %4819 = vmatprep.mubr.bf16.mxu0 0
        %4820 = vmatmul.mubr.bf16.gmra.mrb[0].mxu0 %v4595
        %v4821 = vpop.f32.mrb[0].mxu0
        %v4822 = vadd.f32 0.0, %v4821
        %v4823 = vpop.f32.mrb[0].mxu0
        %v4824 = vpop.f32.mrb[0].mxu0
        %v4825 = vadd.f32 0.0, %v4824
        %v4826 = vpop.f32.mrb[0].mxu0
        %4827 = vmatprep.mubr.bf16.mxu0 0
        %4828 = vmatmul.mubr.bf16.gmra.mrb[0].mxu0 %v4598
        %v4829 = vpop.f32.mrb[0].mxu0
        %v4830 = vadd.f32 0.0, %v4829
        %v4831 = vpop.f32.mrb[0].mxu0
        %v4832 = vpop.f32.mrb[0].mxu0
        %v4833 = vadd.f32 0.0, %v4832
        %v4834 = vpop.f32.mrb[0].mxu0
        %4835 = vmatprep.mubr.bf16.mxu0 0
        %4836 = vmatmul.mubr.bf16.gmra.mrb[0].mxu0 %v4601
        %v4837 = vpop.f32.mrb[0].mxu0
        %v4838 = vadd.f32 0.0, %v4837
        %v4839 = vpop.f32.mrb[0].mxu0
        %v4840 = vpop.f32.mrb[0].mxu0
        %v4841 = vadd.f32 0.0, %v4840
        %v4842 = vpop.f32.mrb[0].mxu0
        %4843 = vmatprep.mubr.bf16.mxu0 0
        %4844 = vmatmul.mubr.bf16.gmra.mrb[0].mxu0 %v4604
        %v4845 = vpop.f32.mrb[0].mxu0
        %v4846 = vadd.f32 0.0, %v4845
        %v4847 = vpop.f32.mrb[0].mxu0
        %v4848 = vpop.f32.mrb[0].mxu0
        %v4849 = vadd.f32 0.0, %v4848
        %v4850 = vpop.f32.mrb[0].mxu0
        %4851 = vmatprep.mubr.bf16.mxu0 0
        %4852 = vmatmul.mubr.bf16.gmra.mrb[0].mxu0 %v4607
        %v4853 = vpop.f32.mrb[0].mxu0
        %v4854 = vadd.f32 0.0, %v4853
        %v4855 = vpop.f32.mrb[0].mxu0
        %v4856 = vpop.f32.mrb[0].mxu0
        %v4857 = vadd.f32 0.0, %v4856
        %v4858 = vpop.f32.mrb[0].mxu0
        %4859 = vmatprep.mubr.bf16.mxu0 0
        %4860 = vmatmul.mubr.bf16.gmra.mrb[0].mxu0 %v4610
        %v4861 = vpop.f32.mrb[0].mxu0
        %v4862 = vadd.f32 0.0, %v4861
        %v4863 = vpop.f32.mrb[0].mxu0
        %v4864 = vpop.f32.mrb[0].mxu0
        %v4865 = vadd.f32 0.0, %v4864
        %v4866 = vpop.f32.mrb[0].mxu0
        %4867 = vmatprep.mubr.bf16.mxu0 0
        %4868 = vmatmul.mubr.bf16.gmra.mrb[0].mxu0 %v4613
        %v4869 = vpop.f32.mrb[0].mxu0
        %v4870 = vadd.f32 0.0, %v4869
        %v4871 = vpop.f32.mrb[0].mxu0
        %v4872 = vpop.f32.mrb[0].mxu0
        %v4873 = vadd.f32 0.0, %v4872
        %v4874 = vpop.f32.mrb[0].mxu0
        %4875 = vdwg.mxu0
        %v4876 = vadd.f32 %v4506, %v4814
        %v4877 = vadd.f32 %v4507, %v4817
        %v4878 = vadd.f32 %v4508, %v4822
        %v4879 = vadd.f32 %v4509, %v4825
        %v4880 = vadd.f32 %v4510, %v4830
        %v4881 = vadd.f32 %v4511, %v4833
        %v4882 = vadd.f32 %v4512, %v4838
        %v4883 = vadd.f32 %v4513, %v4841
        %v4884 = vadd.f32 %v4514, %v4846
        %v4885 = vadd.f32 %v4515, %v4849
        %v4886 = vadd.f32 %v4516, %v4854
        %v4887 = vadd.f32 %v4517, %v4857
        %v4888 = vadd.f32 %v4518, %v4862
        %v4889 = vadd.f32 %v4519, %v4865
        %v4890 = vadd.f32 %v4520, %v4870
        %v4891 = vadd.f32 %v4521, %v4873
        %v4892 = vmax.f32 %v4715, %v4876
        %v4893 = vmax.f32 %v4716, %v4877
        %v4894 = vmax.f32 %v4717, %v4878
        %v4895 = vmax.f32 %v4718, %v4879
        %v4896 = vmax.f32 %v4719, %v4880
        %v4897 = vmax.f32 %v4720, %v4881
        %v4898 = vmax.f32 %v4721, %v4882
        %v4899 = vmax.f32 %v4722, %v4883
        %v4900 = vmax.f32 %v4723, %v4884
        %v4901 = vmax.f32 %v4724, %v4885
        %v4902 = vmax.f32 %v4725, %v4886
        %v4903 = vmax.f32 %v4726, %v4887
        %v4904 = vmax.f32 %v4727, %v4888
        %v4905 = vmax.f32 %v4728, %v4889
        %v4906 = vmax.f32 %v4729, %v4890
        %v4907 = vmax.f32 %v4730, %v4891
        %vm4908 = vcmask 654336
        %4909 = vst.msk [vmem:[#allocation4] sm:$0xff] %vm4908, %v4892
        %4910 = vst.msk [vmem:[#allocation4 + $0x8] sm:$0xff] %vm4908, %v4893
        %4911 = vst.msk [vmem:[#allocation4 + $0x10] sm:$0xff] %vm4908, %v4894
        %4912 = vst.msk [vmem:[#allocation4 + $0x18] sm:$0xff] %vm4908, %v4895
        %4913 = vst.msk [vmem:[#allocation4 + $0x20] sm:$0xff] %vm4908, %v4896
        %4914 = vst.msk [vmem:[#allocation4 + $0x28] sm:$0xff] %vm4908, %v4897
        %4915 = vst.msk [vmem:[#allocation4 + $0x30] sm:$0xff] %vm4908, %v4898
        %4916 = vst.msk [vmem:[#allocation4 + $0x38] sm:$0xff] %vm4908, %v4899
        %4917 = vst.msk [vmem:[#allocation4 + $0x40] sm:$0xff] %vm4908, %v4900
        %4918 = vst.msk [vmem:[#allocation4 + $0x48] sm:$0xff] %vm4908, %v4901
        %4919 = vst.msk [vmem:[#allocation4 + $0x50] sm:$0xff] %vm4908, %v4902
        %4920 = vst.msk [vmem:[#allocation4 + $0x58] sm:$0xff] %vm4908, %v4903
        %4921 = vst.msk [vmem:[#allocation4 + $0x60] sm:$0xff] %vm4908, %v4904
        %4922 = vst.msk [vmem:[#allocation4 + $0x68] sm:$0xff] %vm4908, %v4905
        %4923 = vst.msk [vmem:[#allocation4 + $0x70] sm:$0xff] %vm4908, %v4906
        %vm4924 = vcmask 650240
        %4925 = vst.msk [vmem:[#allocation4 + $0x78] sm:$0xf] %vm4924, %v4907
        %4926 = vst.msk [vmem:[#allocation4 + $0x7c] sm:$0xf] %vm4924, 0.0
        %v4927 = vld [vmem:[#allocation4] ss:$2 sm:$0xff]
        %s4928 = scalar_lea.vmem [#allocation4], 16
        %v4929 = vld [vmem:[%s4928] ss:$2 sm:$0xff]
        %s4930 = scalar_lea.vmem [#allocation4], 32
        %v4931 = vld [vmem:[%s4930] ss:$2 sm:$0xff]
        %s4932 = scalar_lea.vmem [#allocation4], 48
        %v4933 = vld [vmem:[%s4932] ss:$2 sm:$0xff]
        %s4934 = scalar_lea.vmem [#allocation4], 64
        %v4935 = vld [vmem:[%s4934] ss:$2 sm:$0xff]
        %s4936 = scalar_lea.vmem [#allocation4], 80
        %v4937 = vld [vmem:[%s4936] ss:$2 sm:$0xff]
        %s4938 = scalar_lea.vmem [#allocation4], 96
        %v4939 = vld [vmem:[%s4938] ss:$2 sm:$0xff]
        %s4940 = scalar_lea.vmem [#allocation4], 112
        %v4941 = vld [vmem:[%s4940] ss:$2 sm:$0xff]
        %s4942 = scalar_lea.vmem [#allocation4], 1
        %v4943 = vld [vmem:[%s4942] ss:$2 sm:$0xff]
        %s4944 = scalar_lea.vmem [#allocation4], 17
        %v4945 = vld [vmem:[%s4944] ss:$2 sm:$0xff]
        %s4946 = scalar_lea.vmem [#allocation4], 33
        %v4947 = vld [vmem:[%s4946] ss:$2 sm:$0xff]
        %s4948 = scalar_lea.vmem [#allocation4], 49
        %v4949 = vld [vmem:[%s4948] ss:$2 sm:$0xff]
        %s4950 = scalar_lea.vmem [#allocation4], 65
        %v4951 = vld [vmem:[%s4950] ss:$2 sm:$0xff]
        %s4952 = scalar_lea.vmem [#allocation4], 81
        %v4953 = vld [vmem:[%s4952] ss:$2 sm:$0xff]
        %s4954 = scalar_lea.vmem [#allocation4], 97
        %v4955 = vld [vmem:[%s4954] ss:$2 sm:$0xff]
        %s4956 = scalar_lea.vmem [#allocation4], 113
        %v4957 = vld [vmem:[%s4956] ss:$2 sm:$0xff]
        %v4958 = vmax.f32 %v4927, %v4943
        %v4959 = vmax.f32 %v4929, %v4945
        %v4960 = vmax.f32 %v4931, %v4947
        %v4961 = vmax.f32 %v4933, %v4949
        %v4962 = vmax.f32 %v4935, %v4951
        %v4963 = vmax.f32 %v4937, %v4953
        %v4964 = vmax.f32 %v4939, %v4955
        %v4965 = vmax.f32 %v4941, %v4957
        %v4966 = vld [vmem:[%s6] sm:$0x1]
        %v4968 = vlaneseq
        %v4969 = vshrl.u32 %v4968, 7
        %v4970 = vsub.s32 0, %v4969
        %v4971 = vrot.slane %v4966, %v4970
        %v4973 = vadd.f32 %v4958, %v4971
        %v4974 = vadd.f32 %v4959, %v4971
        %v4975 = vadd.f32 %v4960, %v4971
        %v4976 = vadd.f32 %v4961, %v4971
        %v4977 = vadd.f32 %v4962, %v4971
        %v4978 = vadd.f32 %v4963, %v4971
        %v4979 = vadd.f32 %v4964, %v4971
        %v4980 = vadd.f32 %v4965, %v4971
        %v4981 = vtanh.pop %v4973
        %v4982 = vtanh.pop %v4974
        %v4983 = vtanh.pop %v4975
        %v4984 = vtanh.pop %v4976
        %v4985 = vtanh.pop %v4977
        %v4986 = vtanh.pop %v4978
        %v4987 = vtanh.pop %v4979
        %v4988 = vtanh.pop %v4980
        %4989 = vst.msk [vmem:[#allocation5] sm:$0xff] %vm4908, %v4981
        %4990 = vst.msk [vmem:[#allocation5 + $0x8] sm:$0xff] %vm4908, %v4982
        %4991 = vst.msk [vmem:[#allocation5 + $0x10] sm:$0xff] %vm4908, %v4983
        %4992 = vst.msk [vmem:[#allocation5 + $0x18] sm:$0xff] %vm4908, %v4984
        %4993 = vst.msk [vmem:[#allocation5 + $0x20] sm:$0xff] %vm4908, %v4985
        %4994 = vst.msk [vmem:[#allocation5 + $0x28] sm:$0xff] %vm4908, %v4986
        %4995 = vst.msk [vmem:[#allocation5 + $0x30] sm:$0xff] %vm4908, %v4987
        %4996 = vst.msk [vmem:[#allocation5 + $0x38] sm:$0xff] %vm4908, %v4988
        %v4997 = vld [vmem:[#allocation5] ss:$8 sm:$0xf]
        %v4998 = vld [vmem:[#allocation5] ss:$8 sm:$0xf0]
        %v4999 = vor.u32 %v4997, %v4998
        %v5000 = vpack.c.bf16 %v4999, %v4999
        %v5001 = vld [vmem:[%s7] sm:$0xf]
        %v5002 = vld [vmem:[%s7 + $0x4] sm:$0xf]
        %v5003 = vld [vmem:[%s7 + $0x8] sm:$0xf]
        %v5004 = vld [vmem:[%s7 + $0xc] sm:$0xf]
        %v5005 = vld [vmem:[%s7 + $0x10] sm:$0xf]
        %v5006 = vld [vmem:[%s7 + $0x14] sm:$0xf]
        %v5007 = vld [vmem:[%s7 + $0x18] sm:$0xf]
        %v5008 = vld [vmem:[%s7 + $0x1c] sm:$0xf]
        %v5009 = vld [vmem:[%s7 + $0x20] sm:$0xf]
        %v5010 = vld [vmem:[%s7 + $0x24] sm:$0xf]
        %s5011 = scalar_lea.vmem [#allocation5], 1
        %v5012 = vld [vmem:[%s5011] ss:$8 sm:$0xf]
        %v5013 = vld [vmem:[%s5011] ss:$8 sm:$0xf0]
        %v5014 = vor.u32 %v5012, %v5013
        %v5015 = vpack.c.bf16 %v5014, %v5014
        %s5016 = scalar_lea.vmem %s7, 40
        %v5017 = vld [vmem:[%s5016] sm:$0xf]
        %v5018 = vld [vmem:[%s5016 + $0x4] sm:$0xf]
        %v5019 = vld [vmem:[%s5016 + $0x8] sm:$0xf]
        %v5020 = vld [vmem:[%s5016 + $0xc] sm:$0xf]
        %v5021 = vld [vmem:[%s5016 + $0x10] sm:$0xf]
        %v5022 = vld [vmem:[%s5016 + $0x14] sm:$0xf]
        %v5023 = vld [vmem:[%s5016 + $0x18] sm:$0xf]
        %v5024 = vld [vmem:[%s5016 + $0x1c] sm:$0xf]
        %v5025 = vld [vmem:[%s5016 + $0x20] sm:$0xf]
        %v5026 = vld [vmem:[%s5016 + $0x24] sm:$0xf]
        %v5037 = vunpack.c.l.b16 %v5017
        %v5038 = vunpack.c.l.b16 %v5018
        %v5039 = vunpack.c.l.b16 %v5019
        %v5040 = vunpack.c.l.b16 %v5020
        %v5041 = vunpack.c.l.b16 %v5021
        %v5042 = vunpack.c.l.b16 %v5022
        %v5043 = vunpack.c.l.b16 %v5023
        %v5044 = vunpack.c.l.b16 %v5024
        %v5045 = vunpack.c.l.b16 %v5025
        %v5046 = vunpack.c.l.b16 %v5026
        %v5047 = vpack.c.b16 %v5038, %v5037
        %v5048 = vpack.c.b16 %v5040, %v5039
        %v5049 = vpack.c.b16 %v5042, %v5041
        %v5050 = vpack.c.b16 %v5044, %v5043
        %v5051 = vpack.c.b16 %v5046, %v5045
        %v5058 = vsel %vm4908, %v5015, 0
        %5060 = vmatprep.subr.bf16.mxu0 0
        %5061 = vmatpush1.bf16.msra.mxu0 %v5047
        %5062 = vmatprep.subr.bf16.mxu0 0
        %5063 = vmatpush1.bf16.msra.mxu0 %v5048
        %5064 = vmatprep.subr.bf16.mxu0 0
        %5065 = vmatpush1.bf16.msra.mxu0 %v5049
        %5066 = vmatprep.subr.bf16.mxu0 0
        %5067 = vmatpush1.bf16.msra.mxu0 %v5050
        %5068 = vmatprep.subr.bf16.mxu0 0
        %5069 = vmatpush1.bf16.msra.mxu0 %v5051
        %5070 = vmatprep.subr.bf16.mxu0 0
        %5071 = vmatpush1.bf16.msra.mxu0 0
        %5072 = vmatprep.subr.bf16.mxu0 0
        %5073 = vmatpush1.bf16.msra.mxu0 0
        %5074 = vmatprep.subr.bf16.mxu0 0
        %5075 = vmatpush1.bf16.msra.mxu0 0
        %5076 = vmatprep.subr.bf16.mxu0 0
        %5077 = vmatpush1.bf16.msra.mxu0 0
        %5078 = vmatprep.subr.bf16.mxu0 0
        %5079 = vmatpush1.bf16.msra.mxu0 0
        %5080 = vmatprep.subr.bf16.mxu0 0
        %5081 = vmatpush1.bf16.msra.mxu0 0
        %5082 = vmatprep.subr.bf16.mxu0 0
        %5083 = vmatpush1.bf16.msra.mxu0 0
        %5084 = vmatprep.subr.bf16.mxu0 0
        %5085 = vmatpush1.bf16.msra.mxu0 0
        %5086 = vmatprep.subr.bf16.mxu0 0
        %5087 = vmatpush1.bf16.msra.mxu0 0
        %5088 = vmatprep.subr.bf16.mxu0 0
        %5089 = vmatpush1.bf16.msra.mxu0 0
        %5090 = vmatprep.subr.bf16.mxu0 0
        %5091 = vmatpush1.bf16.msra.mxu0 0
        %5092 = vmatprep.mubr.bf16.mxu0 0
        %5093 = vmatmul.mubr.bf16.gmra.mrb[0].mxu0 %v5058
        %v5094 = vpop.f32.mrb[0].mxu0
        %v5095 = vadd.f32 0.0, %v5094
        %v5096 = vpop.f32.mrb[0].mxu0
        %v5097 = vpop.f32.mrb[0].mxu0
        %v5098 = vpop.f32.mrb[0].mxu0
        %5099 = vdwg.mxu0
        %v5110 = vunpack.c.l.b16 %v5001
        %v5111 = vunpack.c.l.b16 %v5002
        %v5112 = vunpack.c.l.b16 %v5003
        %v5113 = vunpack.c.l.b16 %v5004
        %v5114 = vunpack.c.l.b16 %v5005
        %v5115 = vunpack.c.l.b16 %v5006
        %v5116 = vunpack.c.l.b16 %v5007
        %v5117 = vunpack.c.l.b16 %v5008
        %v5118 = vunpack.c.l.b16 %v5009
        %v5119 = vunpack.c.l.b16 %v5010
        %v5120 = vpack.c.b16 %v5111, %v5110
        %v5121 = vpack.c.b16 %v5113, %v5112
        %v5122 = vpack.c.b16 %v5115, %v5114
        %v5123 = vpack.c.b16 %v5117, %v5116
        %v5124 = vpack.c.b16 %v5119, %v5118
        %v5131 = vsel %vm4908, %v5000, 0
        %5133 = vmatprep.subr.bf16.mxu0 0
        %5134 = vmatpush1.bf16.msra.mxu0 %v5120
        %5135 = vmatprep.subr.bf16.mxu0 0
        %5136 = vmatpush1.bf16.msra.mxu0 %v5121
        %5137 = vmatprep.subr.bf16.mxu0 0
        %5138 = vmatpush1.bf16.msra.mxu0 %v5122
        %5139 = vmatprep.subr.bf16.mxu0 0
        %5140 = vmatpush1.bf16.msra.mxu0 %v5123
        %5141 = vmatprep.subr.bf16.mxu0 0
        %5142 = vmatpush1.bf16.msra.mxu0 %v5124
        %5143 = vmatprep.subr.bf16.mxu0 0
        %5144 = vmatpush1.bf16.msra.mxu0 0
        %5145 = vmatprep.subr.bf16.mxu0 0
        %5146 = vmatpush1.bf16.msra.mxu0 0
        %5147 = vmatprep.subr.bf16.mxu0 0
        %5148 = vmatpush1.bf16.msra.mxu0 0
        %5149 = vmatprep.subr.bf16.mxu0 0
        %5150 = vmatpush1.bf16.msra.mxu0 0
        %5151 = vmatprep.subr.bf16.mxu0 0
        %5152 = vmatpush1.bf16.msra.mxu0 0
        %5153 = vmatprep.subr.bf16.mxu0 0
        %5154 = vmatpush1.bf16.msra.mxu0 0
        %5155 = vmatprep.subr.bf16.mxu0 0
        %5156 = vmatpush1.bf16.msra.mxu0 0
        %5157 = vmatprep.subr.bf16.mxu0 0
        %5158 = vmatpush1.bf16.msra.mxu0 0
        %5159 = vmatprep.subr.bf16.mxu0 0
        %5160 = vmatpush1.bf16.msra.mxu0 0
        %5161 = vmatprep.subr.bf16.mxu0 0
        %5162 = vmatpush1.bf16.msra.mxu0 0
        %5163 = vmatprep.subr.bf16.mxu0 0
        %5164 = vmatpush1.bf16.msra.mxu0 0
        %5165 = vmatprep.mubr.bf16.mxu0 0
        %5166 = vmatmul.mubr.bf16.gmra.mrb[0].mxu0 %v5131
        %v5167 = vpop.f32.mrb[0].mxu0
        %v5168 = vadd.f32 %v5095, %v5167
        %v5169 = vpop.f32.mrb[0].mxu0
        %v5170 = vpop.f32.mrb[0].mxu0
        %v5171 = vpop.f32.mrb[0].mxu0
        %5172 = vdwg.mxu0
        %s5173 = scalar_lea.vmem [#allocation5], 2
        %v5174 = vld [vmem:[%s5173] ss:$8 sm:$0xf]
        %v5175 = vld [vmem:[%s5173] ss:$8 sm:$0xf0]
        %v5176 = vor.u32 %v5174, %v5175
        %v5177 = vpack.c.bf16 %v5176, %v5176
        %s5178 = scalar_lea.vmem %s7, 80
        %v5179 = vld [vmem:[%s5178] sm:$0xf]
        %v5180 = vld [vmem:[%s5178 + $0x4] sm:$0xf]
        %v5181 = vld [vmem:[%s5178 + $0x8] sm:$0xf]
        %v5182 = vld [vmem:[%s5178 + $0xc] sm:$0xf]
        %v5183 = vld [vmem:[%s5178 + $0x10] sm:$0xf]
        %v5184 = vld [vmem:[%s5178 + $0x14] sm:$0xf]
        %v5185 = vld [vmem:[%s5178 + $0x18] sm:$0xf]
        %v5186 = vld [vmem:[%s5178 + $0x1c] sm:$0xf]
        %v5187 = vld [vmem:[%s5178 + $0x20] sm:$0xf]
        %v5188 = vld [vmem:[%s5178 + $0x24] sm:$0xf]
        %v5199 = vunpack.c.l.b16 %v5179
        %v5200 = vunpack.c.l.b16 %v5180
        %v5201 = vunpack.c.l.b16 %v5181
        %v5202 = vunpack.c.l.b16 %v5182
        %v5203 = vunpack.c.l.b16 %v5183
        %v5204 = vunpack.c.l.b16 %v5184
        %v5205 = vunpack.c.l.b16 %v5185
        %v5206 = vunpack.c.l.b16 %v5186
        %v5207 = vunpack.c.l.b16 %v5187
        %v5208 = vunpack.c.l.b16 %v5188
        %v5209 = vpack.c.b16 %v5200, %v5199
        %v5210 = vpack.c.b16 %v5202, %v5201
        %v5211 = vpack.c.b16 %v5204, %v5203
        %v5212 = vpack.c.b16 %v5206, %v5205
        %v5213 = vpack.c.b16 %v5208, %v5207
        %v5220 = vsel %vm4908, %v5177, 0
        %5222 = vmatprep.subr.bf16.mxu0 0
        %5223 = vmatpush1.bf16.msra.mxu0 %v5209
        %5224 = vmatprep.subr.bf16.mxu0 0
        %5225 = vmatpush1.bf16.msra.mxu0 %v5210
        %5226 = vmatprep.subr.bf16.mxu0 0
        %5227 = vmatpush1.bf16.msra.mxu0 %v5211
        %5228 = vmatprep.subr.bf16.mxu0 0
        %5229 = vmatpush1.bf16.msra.mxu0 %v5212
        %5230 = vmatprep.subr.bf16.mxu0 0
        %5231 = vmatpush1.bf16.msra.mxu0 %v5213
        %5232 = vmatprep.subr.bf16.mxu0 0
        %5233 = vmatpush1.bf16.msra.mxu0 0
        %5234 = vmatprep.subr.bf16.mxu0 0
        %5235 = vmatpush1.bf16.msra.mxu0 0
        %5236 = vmatprep.subr.bf16.mxu0 0
        %5237 = vmatpush1.bf16.msra.mxu0 0
        %5238 = vmatprep.subr.bf16.mxu0 0
        %5239 = vmatpush1.bf16.msra.mxu0 0
        %5240 = vmatprep.subr.bf16.mxu0 0
        %5241 = vmatpush1.bf16.msra.mxu0 0
        %5242 = vmatprep.subr.bf16.mxu0 0
        %5243 = vmatpush1.bf16.msra.mxu0 0
        %5244 = vmatprep.subr.bf16.mxu0 0
        %5245 = vmatpush1.bf16.msra.mxu0 0
        %5246 = vmatprep.subr.bf16.mxu0 0
        %5247 = vmatpush1.bf16.msra.mxu0 0
        %5248 = vmatprep.subr.bf16.mxu0 0
        %5249 = vmatpush1.bf16.msra.mxu0 0
        %5250 = vmatprep.subr.bf16.mxu0 0
        %5251 = vmatpush1.bf16.msra.mxu0 0
        %5252 = vmatprep.subr.bf16.mxu0 0
        %5253 = vmatpush1.bf16.msra.mxu0 0
        %5254 = vmatprep.mubr.bf16.mxu0 0
        %5255 = vmatmul.mubr.bf16.gmra.mrb[0].mxu0 %v5220
        %v5256 = vpop.f32.mrb[0].mxu0
        %v5257 = vadd.f32 0.0, %v5256
        %v5258 = vpop.f32.mrb[0].mxu0
        %v5259 = vpop.f32.mrb[0].mxu0
        %v5260 = vpop.f32.mrb[0].mxu0
        %5261 = vdwg.mxu0
        %v5262 = vadd.f32 %v5168, %v5257
        %s5263 = scalar_lea.vmem [#allocation5], 3
        %v5264 = vld [vmem:[%s5263] ss:$8 sm:$0xf]
        %v5265 = vld [vmem:[%s5263] ss:$8 sm:$0xf0]
        %v5266 = vor.u32 %v5264, %v5265
        %v5267 = vpack.c.bf16 %v5266, %v5266
        %s5268 = scalar_lea.vmem %s7, 120
        %v5269 = vld [vmem:[%s5268] sm:$0xf]
        %v5270 = vld [vmem:[%s5268 + $0x4] sm:$0xf]
        %v5271 = vld [vmem:[%s5268 + $0x8] sm:$0xf]
        %v5272 = vld [vmem:[%s5268 + $0xc] sm:$0xf]
        %v5273 = vld [vmem:[%s5268 + $0x10] sm:$0xf]
        %v5274 = vld [vmem:[%s5268 + $0x14] sm:$0xf]
        %v5275 = vld [vmem:[%s5268 + $0x18] sm:$0xf]
        %v5276 = vld [vmem:[%s5268 + $0x1c] sm:$0xf]
        %v5277 = vld [vmem:[%s5268 + $0x20] sm:$0xf]
        %v5278 = vld [vmem:[%s5268 + $0x24] sm:$0xf]
        %v5289 = vunpack.c.l.b16 %v5269
        %v5290 = vunpack.c.l.b16 %v5270
        %v5291 = vunpack.c.l.b16 %v5271
        %v5292 = vunpack.c.l.b16 %v5272
        %v5293 = vunpack.c.l.b16 %v5273
        %v5294 = vunpack.c.l.b16 %v5274
        %v5295 = vunpack.c.l.b16 %v5275
        %v5296 = vunpack.c.l.b16 %v5276
        %v5297 = vunpack.c.l.b16 %v5277
        %v5298 = vunpack.c.l.b16 %v5278
        %v5299 = vpack.c.b16 %v5290, %v5289
        %v5300 = vpack.c.b16 %v5292, %v5291
        %v5301 = vpack.c.b16 %v5294, %v5293
        %v5302 = vpack.c.b16 %v5296, %v5295
        %v5303 = vpack.c.b16 %v5298, %v5297
        %v5310 = vsel %vm4908, %v5267, 0
        %5312 = vmatprep.subr.bf16.mxu0 0
        %5313 = vmatpush1.bf16.msra.mxu0 %v5299
        %5314 = vmatprep.subr.bf16.mxu0 0
        %5315 = vmatpush1.bf16.msra.mxu0 %v5300
        %5316 = vmatprep.subr.bf16.mxu0 0
        %5317 = vmatpush1.bf16.msra.mxu0 %v5301
        %5318 = vmatprep.subr.bf16.mxu0 0
        %5319 = vmatpush1.bf16.msra.mxu0 %v5302
        %5320 = vmatprep.subr.bf16.mxu0 0
        %5321 = vmatpush1.bf16.msra.mxu0 %v5303
        %5322 = vmatprep.subr.bf16.mxu0 0
        %5323 = vmatpush1.bf16.msra.mxu0 0
        %5324 = vmatprep.subr.bf16.mxu0 0
        %5325 = vmatpush1.bf16.msra.mxu0 0
        %5326 = vmatprep.subr.bf16.mxu0 0
        %5327 = vmatpush1.bf16.msra.mxu0 0
        %5328 = vmatprep.subr.bf16.mxu0 0
        %5329 = vmatpush1.bf16.msra.mxu0 0
        %5330 = vmatprep.subr.bf16.mxu0 0
        %5331 = vmatpush1.bf16.msra.mxu0 0
        %5332 = vmatprep.subr.bf16.mxu0 0
        %5333 = vmatpush1.bf16.msra.mxu0 0
        %5334 = vmatprep.subr.bf16.mxu0 0
        %5335 = vmatpush1.bf16.msra.mxu0 0
        %5336 = vmatprep.subr.bf16.mxu0 0
        %5337 = vmatpush1.bf16.msra.mxu0 0
        %5338 = vmatprep.subr.bf16.mxu0 0
        %5339 = vmatpush1.bf16.msra.mxu0 0
        %5340 = vmatprep.subr.bf16.mxu0 0
        %5341 = vmatpush1.bf16.msra.mxu0 0
        %5342 = vmatprep.subr.bf16.mxu0 0
        %5343 = vmatpush1.bf16.msra.mxu0 0
        %5344 = vmatprep.mubr.bf16.mxu0 0
        %5345 = vmatmul.mubr.bf16.gmra.mrb[0].mxu0 %v5310
        %v5346 = vpop.f32.mrb[0].mxu0
        %v5347 = vadd.f32 0.0, %v5346
        %v5348 = vpop.f32.mrb[0].mxu0
        %v5349 = vpop.f32.mrb[0].mxu0
        %v5350 = vpop.f32.mrb[0].mxu0
        %5351 = vdwg.mxu0
        %v5352 = vadd.f32 %v5262, %v5347
        %s5353 = scalar_lea.vmem [#allocation5], 4
        %v5354 = vld [vmem:[%s5353] ss:$8 sm:$0xf]
        %v5355 = vld [vmem:[%s5353] ss:$8 sm:$0xf0]
        %v5356 = vor.u32 %v5354, %v5355
        %v5357 = vpack.c.bf16 %v5356, %v5356
        %s5358 = scalar_lea.vmem %s7, 160
        %v5359 = vld [vmem:[%s5358] sm:$0xf]
        %v5360 = vld [vmem:[%s5358 + $0x4] sm:$0xf]
        %v5361 = vld [vmem:[%s5358 + $0x8] sm:$0xf]
        %v5362 = vld [vmem:[%s5358 + $0xc] sm:$0xf]
        %v5363 = vld [vmem:[%s5358 + $0x10] sm:$0xf]
        %v5364 = vld [vmem:[%s5358 + $0x14] sm:$0xf]
        %v5365 = vld [vmem:[%s5358 + $0x18] sm:$0xf]
        %v5366 = vld [vmem:[%s5358 + $0x1c] sm:$0xf]
        %v5367 = vld [vmem:[%s5358 + $0x20] sm:$0xf]
        %v5368 = vld [vmem:[%s5358 + $0x24] sm:$0xf]
        %v5379 = vunpack.c.l.b16 %v5359
        %v5380 = vunpack.c.l.b16 %v5360
        %v5381 = vunpack.c.l.b16 %v5361
        %v5382 = vunpack.c.l.b16 %v5362
        %v5383 = vunpack.c.l.b16 %v5363
        %v5384 = vunpack.c.l.b16 %v5364
        %v5385 = vunpack.c.l.b16 %v5365
        %v5386 = vunpack.c.l.b16 %v5366
        %v5387 = vunpack.c.l.b16 %v5367
        %v5388 = vunpack.c.l.b16 %v5368
        %v5389 = vpack.c.b16 %v5380, %v5379
        %v5390 = vpack.c.b16 %v5382, %v5381
        %v5391 = vpack.c.b16 %v5384, %v5383
        %v5392 = vpack.c.b16 %v5386, %v5385
        %v5393 = vpack.c.b16 %v5388, %v5387
        %v5400 = vsel %vm4908, %v5357, 0
        %5402 = vmatprep.subr.bf16.mxu0 0
        %5403 = vmatpush1.bf16.msra.mxu0 %v5389
        %5404 = vmatprep.subr.bf16.mxu0 0
        %5405 = vmatpush1.bf16.msra.mxu0 %v5390
        %5406 = vmatprep.subr.bf16.mxu0 0
        %5407 = vmatpush1.bf16.msra.mxu0 %v5391
        %5408 = vmatprep.subr.bf16.mxu0 0
        %5409 = vmatpush1.bf16.msra.mxu0 %v5392
        %5410 = vmatprep.subr.bf16.mxu0 0
        %5411 = vmatpush1.bf16.msra.mxu0 %v5393
        %5412 = vmatprep.subr.bf16.mxu0 0
        %5413 = vmatpush1.bf16.msra.mxu0 0
        %5414 = vmatprep.subr.bf16.mxu0 0
        %5415 = vmatpush1.bf16.msra.mxu0 0
        %5416 = vmatprep.subr.bf16.mxu0 0
        %5417 = vmatpush1.bf16.msra.mxu0 0
        %5418 = vmatprep.subr.bf16.mxu0 0
        %5419 = vmatpush1.bf16.msra.mxu0 0
        %5420 = vmatprep.subr.bf16.mxu0 0
        %5421 = vmatpush1.bf16.msra.mxu0 0
        %5422 = vmatprep.subr.bf16.mxu0 0
        %5423 = vmatpush1.bf16.msra.mxu0 0
        %5424 = vmatprep.subr.bf16.mxu0 0
        %5425 = vmatpush1.bf16.msra.mxu0 0
        %5426 = vmatprep.subr.bf16.mxu0 0
        %5427 = vmatpush1.bf16.msra.mxu0 0
        %5428 = vmatprep.subr.bf16.mxu0 0
        %5429 = vmatpush1.bf16.msra.mxu0 0
        %5430 = vmatprep.subr.bf16.mxu0 0
        %5431 = vmatpush1.bf16.msra.mxu0 0
        %5432 = vmatprep.subr.bf16.mxu0 0
        %5433 = vmatpush1.bf16.msra.mxu0 0
        %5434 = vmatprep.mubr.bf16.mxu0 0
        %5435 = vmatmul.mubr.bf16.gmra.mrb[0].mxu0 %v5400
        %v5436 = vpop.f32.mrb[0].mxu0
        %v5437 = vadd.f32 0.0, %v5436
        %v5438 = vpop.f32.mrb[0].mxu0
        %v5439 = vpop.f32.mrb[0].mxu0
        %v5440 = vpop.f32.mrb[0].mxu0
        %5441 = vdwg.mxu0
        %v5442 = vadd.f32 %v5352, %v5437
        %v5443 = vld [vmem:[%s8] sm:$0x1]
        %v5445 = vlaneseq
        %v5446 = vshrl.u32 %v5445, 7
        %v5447 = vsub.s32 0, %v5446
        %v5448 = vrot.slane %v5443, %v5447
        %v5450 = vadd.f32 %v5442, %v5448
        %v5451 = vtanh.pop %v5450
        %v5452 = vpack.c.bf16 %v5451, %v5451
        %v5453 = vld [vmem:[%s9] sm:$0xf]
        %v5454 = vld [vmem:[%s9 + $0x4] sm:$0xf]
        %v5455 = vld [vmem:[%s9 + $0x8] sm:$0xf]
        %v5456 = vld [vmem:[%s9 + $0xc] sm:$0xf]
        %v5457 = vld [vmem:[%s9 + $0x10] sm:$0xf]
        %v5458 = vld [vmem:[%s9 + $0x14] sm:$0xf]
        %v5459 = vld [vmem:[%s9 + $0x18] sm:$0xf]
        %v5460 = vld [vmem:[%s9 + $0x1c] sm:$0xf]
        %v5461 = vld [vmem:[%s9 + $0x20] sm:$0xf]
        %v5462 = vld [vmem:[%s9 + $0x24] sm:$0xf]
        %v5463 = vld [vmem:[%s9 + $0x28] sm:$0xf]
        %v5464 = vld [vmem:[%s9 + $0x2c] sm:$0xf]
        %v5465 = vld [vmem:[%s9 + $0x30] sm:$0xf]
        %v5466 = vld [vmem:[%s9 + $0x34] sm:$0xf]
        %v5467 = vld [vmem:[%s9 + $0x38] sm:$0xf]
        %v5468 = vld [vmem:[%s10] sm:$0x1]
        %v5470 = vlaneseq
        %v5471 = vshrl.u32 %v5470, 7
        %v5472 = vsub.s32 0, %v5471
        %v5473 = vrot.slane %v5468, %v5472
        %v5490 = vunpack.c.l.b16 %v5453
        %v5491 = vunpack.c.l.b16 %v5454
        %v5492 = vunpack.c.l.b16 %v5455
        %v5493 = vunpack.c.l.b16 %v5456
        %v5494 = vunpack.c.l.b16 %v5457
        %v5495 = vunpack.c.l.b16 %v5458
        %v5496 = vunpack.c.l.b16 %v5459
        %v5497 = vunpack.c.l.b16 %v5460
        %v5498 = vunpack.c.l.b16 %v5461
        %v5499 = vunpack.c.l.b16 %v5462
        %v5500 = vunpack.c.l.b16 %v5463
        %v5501 = vunpack.c.l.b16 %v5464
        %v5502 = vunpack.c.l.b16 %v5465
        %v5503 = vunpack.c.l.b16 %v5466
        %v5504 = vunpack.c.l.b16 %v5467
        %v5505 = vpack.c.b16 %v5491, %v5490
        %v5506 = vpack.c.b16 %v5493, %v5492
        %v5507 = vpack.c.b16 %v5495, %v5494
        %v5508 = vpack.c.b16 %v5497, %v5496
        %v5509 = vpack.c.b16 %v5499, %v5498
        %v5510 = vpack.c.b16 %v5501, %v5500
        %v5511 = vpack.c.b16 %v5503, %v5502
        %v5512 = vpack.c.b16 %v5504, %v5504
        %vm5520 = vcmask 982016
        %v5522 = vsel %vm5520, %v5452, 0
        %vm5524 = vcmask 1043456
        %v5526 = vsel %vm5524, %v5512, 0
        %5528 = vmatprep.subr.bf16.mxu0 0
        %5529 = vmatpush1.bf16.msra.mxu0 %v5505
        %5530 = vmatprep.subr.bf16.mxu0 0
        %5531 = vmatpush1.bf16.msra.mxu0 %v5506
        %5532 = vmatprep.subr.bf16.mxu0 0
        %5533 = vmatpush1.bf16.msra.mxu0 %v5507
        %5534 = vmatprep.subr.bf16.mxu0 0
        %5535 = vmatpush1.bf16.msra.mxu0 %v5508
        %5536 = vmatprep.subr.bf16.mxu0 0
        %5537 = vmatpush1.bf16.msra.mxu0 %v5509
        %5538 = vmatprep.subr.bf16.mxu0 0
        %5539 = vmatpush1.bf16.msra.mxu0 %v5510
        %5540 = vmatprep.subr.bf16.mxu0 0
        %5541 = vmatpush1.bf16.msra.mxu0 %v5511
        %5542 = vmatprep.subr.bf16.mxu0 0
        %5543 = vmatpush1.bf16.msra.mxu0 %v5526
        %5544 = vmatprep.subr.bf16.mxu0 0
        %5545 = vmatpush1.bf16.msra.mxu0 0
        %5546 = vmatprep.subr.bf16.mxu0 0
        %5547 = vmatpush1.bf16.msra.mxu0 0
        %5548 = vmatprep.subr.bf16.mxu0 0
        %5549 = vmatpush1.bf16.msra.mxu0 0
        %5550 = vmatprep.subr.bf16.mxu0 0
        %5551 = vmatpush1.bf16.msra.mxu0 0
        %5552 = vmatprep.subr.bf16.mxu0 0
        %5553 = vmatpush1.bf16.msra.mxu0 0
        %5554 = vmatprep.subr.bf16.mxu0 0
        %5555 = vmatpush1.bf16.msra.mxu0 0
        %5556 = vmatprep.subr.bf16.mxu0 0
        %5557 = vmatpush1.bf16.msra.mxu0 0
        %5558 = vmatprep.subr.bf16.mxu0 0
        %5559 = vmatpush1.bf16.msra.mxu0 0
        %5560 = vmatprep.mubr.bf16.mxu0 0
        %5561 = vmatmul.mubr.bf16.gmra.mrb[0].mxu0 %v5522
        %v5562 = vpop.f32.mrb[0].mxu0
        %v5563 = vadd.f32 %v5473, %v5562
        %v5564 = vpop.f32.mrb[0].mxu0
        %v5565 = vpop.f32.mrb[0].mxu0
        %v5566 = vpop.f32.mrb[0].mxu0
        %5567 = vdwg.mxu0
        %v5568 = vtanh.pop %v5563
        %v5569 = vpack.c.bf16 %v5568, %v5568
        %v5570 = vld [vmem:[%s11] sm:$0xf]
        %v5571 = vld [vmem:[%s11 + $0x4] sm:$0xf]
        %v5572 = vld [vmem:[%s11 + $0x8] sm:$0xf]
        %v5573 = vld [vmem:[%s11 + $0xc] sm:$0xf]
        %v5574 = vld [vmem:[%s11 + $0x10] sm:$0xf]
        %v5575 = vld [vmem:[%s11 + $0x14] sm:$0xf]
        %v5576 = vld [vmem:[%s11 + $0x18] sm:$0xf]
        %v5577 = vld [vmem:[%s11 + $0x1c] sm:$0xf]
        %v5578 = vld [vmem:[%s11 + $0x20] sm:$0xf]
        %v5579 = vld [vmem:[%s11 + $0x24] sm:$0xf]
        %v5580 = vld [vmem:[%s11 + $0x28] sm:$0x3]
        %v5581 = vld [vmem:[%s12] sm:$0x1]
        %v5583 = vlaneseq
        %v5584 = vshrl.u32 %v5583, 7
        %v5585 = vsub.s32 0, %v5584
        %v5586 = vrot.slane %v5581, %v5585
        %v5599 = vunpack.c.l.b16 %v5570
        %v5600 = vunpack.c.l.b16 %v5571
        %v5601 = vunpack.c.l.b16 %v5572
        %v5602 = vunpack.c.l.b16 %v5573
        %v5603 = vunpack.c.l.b16 %v5574
        %v5604 = vunpack.c.l.b16 %v5575
        %v5605 = vunpack.c.l.b16 %v5576
        %v5606 = vunpack.c.l.b16 %v5577
        %v5607 = vunpack.c.l.b16 %v5578
        %v5608 = vunpack.c.l.b16 %v5579
        %v5609 = vunpack.c.l.b16 %v5580
        %v5610 = vpack.c.b16 %v5600, %v5599
        %v5611 = vpack.c.b16 %v5602, %v5601
        %v5612 = vpack.c.b16 %v5604, %v5603
        %v5613 = vpack.c.b16 %v5606, %v5605
        %v5614 = vpack.c.b16 %v5608, %v5607
        %v5615 = vpack.c.b16 %v5609, %v5609
        %v5622 = vsel %vm2938, %v5569, 0
        %v5625 = vsel %vm3246, %v5615, 0
        %5627 = vmatprep.subr.bf16.mxu0 0
        %5628 = vmatpush1.bf16.msra.mxu0 %v5610
        %5629 = vmatprep.subr.bf16.mxu0 0
        %5630 = vmatpush1.bf16.msra.mxu0 %v5611
        %5631 = vmatprep.subr.bf16.mxu0 0
        %5632 = vmatpush1.bf16.msra.mxu0 %v5612
        %5633 = vmatprep.subr.bf16.mxu0 0
        %5634 = vmatpush1.bf16.msra.mxu0 %v5613
        %5635 = vmatprep.subr.bf16.mxu0 0
        %5636 = vmatpush1.bf16.msra.mxu0 %v5614
        %5637 = vmatprep.subr.bf16.mxu0 0
        %5638 = vmatpush1.bf16.msra.mxu0 %v5625
        %5639 = vmatprep.subr.bf16.mxu0 0
        %5640 = vmatpush1.bf16.msra.mxu0 0
        %5641 = vmatprep.subr.bf16.mxu0 0
        %5642 = vmatpush1.bf16.msra.mxu0 0
        %5643 = vmatprep.subr.bf16.mxu0 0
        %5644 = vmatpush1.bf16.msra.mxu0 0
        %5645 = vmatprep.subr.bf16.mxu0 0
        %5646 = vmatpush1.bf16.msra.mxu0 0
        %5647 = vmatprep.subr.bf16.mxu0 0
        %5648 = vmatpush1.bf16.msra.mxu0 0
        %5649 = vmatprep.subr.bf16.mxu0 0
        %5650 = vmatpush1.bf16.msra.mxu0 0
        %5651 = vmatprep.subr.bf16.mxu0 0
        %5652 = vmatpush1.bf16.msra.mxu0 0
        %5653 = vmatprep.subr.bf16.mxu0 0
        %5654 = vmatpush1.bf16.msra.mxu0 0
        %5655 = vmatprep.subr.bf16.mxu0 0
        %5656 = vmatpush1.bf16.msra.mxu0 0
        %5657 = vmatprep.subr.bf16.mxu0 0
        %5658 = vmatpush1.bf16.msra.mxu0 0
        %5659 = vmatprep.mubr.bf16.mxu0 0
        %5660 = vmatmul.mubr.bf16.gmra.mrb[0].mxu0 %v5622
        %v5661 = vpop.f32.mrb[0].mxu0
        %v5662 = vadd.f32 %v5586, %v5661
        %v5663 = vpop.f32.mrb[0].mxu0
        %v5664 = vpop.f32.mrb[0].mxu0
        %v5665 = vpop.f32.mrb[0].mxu0
        %5666 = vdwg.mxu0
        %5667 = vst [vmem:[%s447] sm:$0xff] %v5662
        %s5668 = sand.u32 %s314, 1
        %s5669 = scalar_lea.sflag [#allocation8], %s5668
        %s5670 = sand.u32 %s314, 1
        %s5671 = smul.addr %s5670, 8
        %s5672 = scalar_lea.vmem [#allocation9], %s5671
        // Predicated region
        $region77: #{forward.1} parent=71 // pred_check
          %p5673 = pneg %p324
        $region78: #{forward.1} parent=71 // pred_check_branch
          %5675 = sbr.rel (%p5673) target = $region80
        $region79: #{forward.1} parent=71 // pred_region
          %s5677 = ssub.s32 128, 128
          %5678 = vsyncadd %s5669, %s5677
          %s5679 = smul.addr %s28, 128
          %s5680 = scalar_lea.hbm %s13, %s5679
          %s5682 = sshll.u32 %s5672, 4
          %s5683 = int_to_ptr.vmem [resolvable:$true] %s5682
          %5685 = dma.vmem_to_hbm [thread:$0]  %s5683, 128, %s5680, %s5669
        $region80: #{forward.1} parent=71 // pred_fallthru
          _
      $region72: #{forward.1} parent=5 // pred_fallthru
        _
      %p5686 = scmp.le.s32.totalorder 2, %s23
      // Predicated region
      $region81: #{forward.1} parent=5 // pred_check
        %p5687 = pneg %p5686
      $region82: #{forward.1} parent=5 // pred_check_branch
        %5689 = sbr.rel (%p5687) target = $region84
      $region83: #{forward.1} parent=5 // pred_region
        %s5690 = ssub.s32 %s23, 2
        // Predicated region
        $region85: #{forward.1} parent=83 // pred_check
          %p5691 = pneg %p330
        $region86: #{forward.1} parent=83 // pred_check_branch
          %5693 = sbr.rel (%p5691) target = $region88
        $region87: #{forward.1} parent=83 // pred_region
          %s5694 = sand.u32 %s315, 1
          %s5695 = scalar_lea.sflag [#allocation8], %s5694
          %s5696 = sand.u32 %s315, 1
          %s5697 = smul.addr %s5696, 8
          %s5698 = scalar_lea.vmem [#allocation9], %s5697
          %5699 = dma.done %s5695, 128
        $region88: #{forward.1} parent=83 // pred_fallthru
          _
      $region84: #{forward.1} parent=5 // pred_fallthru
        _
    $region6: #{forward.1} parent=1 // loop_footer
      %s27 = sadd.s32 1, %s23
    $region7: #{forward.1} parent=1 // loop_footer_branch
      %22 = sbr.rel target = $region3
    $region8: #{forward.1} parent=1 // loop_exit
      _
    %5700 = vsyncpa [#allocation7], 1
    %s5701 = scalar_lea.sflag [#allocation7], 1
    %5702 = vsyncpa %s5701, 1
    %5703 = vsyncpa [#allocation8], 1
    %s5704 = scalar_lea.sflag [#allocation8], 1
    %5705 = vsyncpa %s5704, 1

</llo_original>
